<compile_context>
chip_gen: v7x
topology: tpu7x:2x2x1
jax: 0.10.0
libtpu: 0.0.40
codegen_flags: <defaults>
</compile_context>

<pallas_src>
import functools

import jax
import jax.numpy as jnp
from jax import lax
from jax.experimental import pallas as pl
from jax.experimental.pallas import tpu as pltpu

LEAKY_SLOPE = 0.1
BN_EPS = 1e-5


def _leaky(v):
    return jnp.where(v > 0, v, LEAKY_SLOPE * v)


def _lane_pad(w):
    # leading/trailing zero pad (in flat spatial lanes) for the 3x3 conv;
    # >= W+1 and a multiple of 128 so all halo/interior stores are aligned.
    return ((w + 1 + 127) // 128) * 128


def _vmem_limit(nbytes):
    # double-buffered blocks + headroom; stay below v7x's 64 MiB physical VMEM
    return int(min(max(4 * nbytes, 4 * 2 ** 20), 56 * 2 ** 20))


# ---------------------------------------------------------------------------
# pass 1: 1x1 conv (pure channel matmul) + partial BN1 stats per tile
# ---------------------------------------------------------------------------
def conv1_stats_kernel(x_ref, w1_ref, h1_ref, psum_ref, psq_ref):
    # x_ref: (Cin, TS)   w1_ref: (Chid, Cin)   h1_ref: (Chid, TS)
    # psum_ref / psq_ref: (Chid, 1) per-tile partial sums (one-pass stats)
    h = jnp.dot(w1_ref[...], x_ref[...], preferred_element_type=jnp.float32)
    h1_ref[...] = h
    psum_ref[...] = jnp.sum(h, axis=1, keepdims=True)
    psq_ref[...] = jnp.sum(h * h, axis=1, keepdims=True)


# ---------------------------------------------------------------------------
# pass 2: BN1 + leaky, 3x3 conv (pad=1) as a single K=9*Chid matmul,
#         partial BN2 stats (one image per grid step)
# ---------------------------------------------------------------------------
def bn1_conv2_stats_kernel(h1_ref, s1_ref, b1_ref, w2r_ref,
                           h2_ref, psum_ref, psq_ref,
                           pad_ref, slab_ref, *, H, W):
    Chid = h1_ref.shape[0]
    HW = H * W
    LP = _lane_pad(W)

    # BN1 (scale/bias pre-folded from global stats) + leaky relu
    a1 = _leaky(h1_ref[...] * s1_ref[...] + b1_ref[...])

    # flat padded activation: [LP zeros | H*W activation | LP zeros]
    # -> zero only the halo strips (aligned, 128-wide), never the full buffer.
    pad_ref[:, 0:LP] = jnp.zeros((Chid, LP), jnp.float32)
    pad_ref[:, LP + HW:LP + HW + LP] = jnp.zeros((Chid, LP), jnp.float32)
    pad_ref[:, LP:LP + HW] = a1                       # aligned interior store

    # masks killing the wrapped-around left/right image-border taps
    col = lax.broadcasted_iota(jnp.int32, (1, HW), 1) % W
    not_left = col != 0
    not_right = col != (W - 1)

    # im2col slab (9*Chid, HW): each tap is a contiguous lane slice of the
    # flat padded buffer (no reshapes / window copies); writes are aligned
    # sublane blocks (Chid = multiple of 8).
    for t in range(9):
        dy, dx = divmod(t, 3)
        start = LP + (dy - 1) * W + (dx - 1)
        tap = pad_ref[:, start:start + HW]
        if dx == 0:
            tap = jnp.where(not_left, tap, 0.0)
        elif dx == 2:
            tap = jnp.where(not_right, tap, 0.0)
        slab_ref[t * Chid:(t + 1) * Chid, :] = tap

    # single MXU matmul with K = 9*Chid (instead of 9 K=Chid matmuls)
    h2 = jnp.dot(w2r_ref[...], slab_ref[...], preferred_element_type=jnp.float32)
    h2_ref[...] = h2
    psum_ref[...] = jnp.sum(h2, axis=1, keepdims=True)
    psq_ref[...] = jnp.sum(h2 * h2, axis=1, keepdims=True)


# ---------------------------------------------------------------------------
# pass 3: BN2 + leaky + residual add (pointwise, lane-dense tiles)
# ---------------------------------------------------------------------------
def bn2_residual_kernel(h2_ref, x_ref, s2_ref, b2_ref, out_ref):
    y = _leaky(h2_ref[...] * s2_ref[...] + b2_ref[...])
    out_ref[...] = y + x_ref[...]


def _pick_tile(hw):
    for c in (2048, 1024, 512, 256, 128):
        if hw % c == 0 and c < hw:
            return c
    return hw


@jax.jit
def darknet_block(x_nchw, params):
    """params = (w1:(Chid,Cin), g1:(Chid,), b1:(Chid,),
                 w2:(Cin,Chid,3,3), g2:(Cin,), b2:(Cin,))  -- torch layouts."""
    w1, g1, b1, w2, g2, b2 = params
    N, Cin, H, W = x_nchw.shape
    Chid = w1.shape[0]
    HW = H * W
    TS = _pick_tile(HW)
    T = HW // TS
    LP = _lane_pad(W)
    f32 = jnp.float32

    x = x_nchw.reshape(N, Cin, HW).astype(f32)        # NCHW kept native (no transpose)
    w1f = w1.astype(f32)
    # (Cout, Cin, kh, kw) -> (Cout, kh*kw*Cin) matching the slab's K ordering
    w2r = jnp.transpose(w2.astype(f32), (0, 2, 3, 1)).reshape(Cin, 9 * Chid)

    # ---- pass 1: conv1 (1x1) + partial BN1 stats ---------------------------
    bytes1 = 4 * (Cin * TS + Chid * Cin + Chid * TS + 2 * Chid)
    h1, ps1, pq1 = pl.pallas_call(
        conv1_stats_kernel,
        grid=(N, T),
        in_specs=[
            pl.BlockSpec((None, Cin, TS), lambda n, t: (n, 0, t)),
            pl.BlockSpec((Chid, Cin), lambda n, t: (0, 0)),
        ],
        out_specs=(
            pl.BlockSpec((None, Chid, TS), lambda n, t: (n, 0, t)),
            pl.BlockSpec((None, None, Chid, 1), lambda n, t: (n, t, 0, 0)),
            pl.BlockSpec((None, None, Chid, 1), lambda n, t: (n, t, 0, 0)),
        ),
        out_shape=(
            jax.ShapeDtypeStruct((N, Chid, HW), f32),
            jax.ShapeDtypeStruct((N, T, Chid, 1), f32),
            jax.ShapeDtypeStruct((N, T, Chid, 1), f32),
        ),
        compiler_params=pltpu.CompilerParams(
            dimension_semantics=("parallel", "parallel"),
            vmem_limit_bytes=_vmem_limit(bytes1)),
    )(x, w1f)

    # ---- fold global BN1 stats into per-channel scale/bias (tiny) ----------
    cnt = jnp.float32(N * HW)
    mean1 = jnp.sum(ps1, axis=(0, 1)) / cnt                       # (Chid, 1)
    var1 = jnp.sum(pq1, axis=(0, 1)) / cnt - mean1 * mean1
    scale1 = g1.astype(f32).reshape(Chid, 1) * lax.rsqrt(var1 + BN_EPS)
    bias1 = b1.astype(f32).reshape(Chid, 1) - mean1 * scale1

    # ---- pass 2: BN1+leaky, 3x3 conv as single K=9*Chid matmul, stats ------
    bytes2 = 4 * (Chid * HW + 2 * Chid + Cin * 9 * Chid
                  + Cin * HW + 2 * Cin
                  + Chid * (HW + 2 * LP) + 9 * Chid * HW)
    h2, ps2, pq2 = pl.pallas_call(
        functools.partial(bn1_conv2_stats_kernel, H=H, W=W),
        grid=(N,),
        in_specs=[
            pl.BlockSpec((None, Chid, HW), lambda n: (n, 0, 0)),
            pl.BlockSpec((Chid, 1), lambda n: (0, 0)),
            pl.BlockSpec((Chid, 1), lambda n: (0, 0)),
            pl.BlockSpec((Cin, 9 * Chid), lambda n: (0, 0)),
        ],
        out_specs=(
            pl.BlockSpec((None, Cin, HW), lambda n: (n, 0, 0)),
            pl.BlockSpec((None, Cin, 1), lambda n: (n, 0, 0)),
            pl.BlockSpec((None, Cin, 1), lambda n: (n, 0, 0)),
        ),
        out_shape=(
            jax.ShapeDtypeStruct((N, Cin, HW), f32),
            jax.ShapeDtypeStruct((N, Cin, 1), f32),
            jax.ShapeDtypeStruct((N, Cin, 1), f32),
        ),
        scratch_shapes=[
            pltpu.VMEM((Chid, HW + 2 * LP), f32),     # flat padded activation
            pltpu.VMEM((9 * Chid, HW), f32),          # im2col slab (K=9*Chid)
        ],
        compiler_params=pltpu.CompilerParams(
            dimension_semantics=("parallel",),
            vmem_limit_bytes=_vmem_limit(bytes2)),
    )(h1, scale1, bias1, w2r)
    # TODO(synk): for very large H*W, additionally tile pass 2 over row bands
    # with a 1-row halo (the partial-stats reduction already supports it).

    # ---- fold global BN2 stats ---------------------------------------------
    mean2 = jnp.sum(ps2, axis=0) / cnt                            # (Cin, 1)
    var2 = jnp.sum(pq2, axis=0) / cnt - mean2 * mean2
    scale2 = g2.astype(f32).reshape(Cin, 1) * lax.rsqrt(var2 + BN_EPS)
    bias2 = b2.astype(f32).reshape(Cin, 1) - mean2 * scale2

    # ---- pass 3: BN2 + leaky + residual add --------------------------------
    bytes3 = 4 * (3 * Cin * TS + 2 * Cin)
    out = pl.pallas_call(
        bn2_residual_kernel,
        grid=(N, T),
        in_specs=[
            pl.BlockSpec((None, Cin, TS), lambda n, t: (n, 0, t)),
            pl.BlockSpec((None, Cin, TS), lambda n, t: (n, 0, t)),
            pl.BlockSpec((Cin, 1), lambda n, t: (0, 0)),
            pl.BlockSpec((Cin, 1), lambda n, t: (0, 0)),
        ],
        out_specs=pl.BlockSpec((None, Cin, TS), lambda n, t: (n, 0, t)),
        out_shape=jax.ShapeDtypeStruct((N, Cin, HW), f32),
        compiler_params=pltpu.CompilerParams(
            dimension_semantics=("parallel", "parallel"),
            vmem_limit_bytes=_vmem_limit(bytes3)),
    )(h2, x, scale2, bias2)

    return out.reshape(N, Cin, H, W)


def darknet_block_ref(x_nchw, params):
    """Pure-JAX reference (lax.conv, NCHW) for correctness checking."""
    w1, g1, b1, w2, g2, b2 = params
    x = x_nchw.astype(jnp.float32)
    Chid, Cin = w1.shape

    def bn_leaky(h, gamma, beta):
        mean = jnp.mean(h, axis=(0, 2, 3), keepdims=True)
        var = jnp.mean(jnp.square(h - mean), axis=(0, 2, 3), keepdims=True)
        hn = (h - mean) / jnp.sqrt(var + BN_EPS)
        hn = hn * gamma.reshape(1, -1, 1, 1) + beta.reshape(1, -1, 1, 1)
        return jnp.where(hn > 0, hn, LEAKY_SLOPE * hn)

    dn = ('NCHW', 'OIHW', 'NCHW')
    h = lax.conv_general_dilated(x, w1.reshape(Chid, Cin, 1, 1), (1, 1),
                                 'VALID', dimension_numbers=dn,
                                 precision=lax.Precision.HIGHEST)
    h = bn_leaky(h, g1, b1)
    y = lax.conv_general_dilated(h, w2, (1, 1), ((1, 1), (1, 1)),
                                 dimension_numbers=dn,
                                 precision=lax.Precision.HIGHEST)
    y = bn_leaky(y, g2, b2)
    return y + x


if __name__ == "__main__":
    key = jax.random.PRNGKey(0)
    k_x, k_w1, k_w2, k_g1, k_b1, k_g2, k_b2 = jax.random.split(key, 7)

    # Small shapes consistent with DarknetBlock(ch_in=64): NCHW input.
    N, Cin, H, W = 2, 64, 16, 16
    Chid = Cin // 2

    x = jax.random.normal(k_x, (N, Cin, H, W), dtype=jnp.float32)

    # Deterministic synthetic parameters (torch layouts from the module's __init__).
    bw1 = 1.0 / (Cin ** 0.5)
    w1 = jax.random.uniform(k_w1, (Chid, Cin), jnp.float32, -bw1, bw1)
    bw2 = 1.0 / ((Chid * 9) ** 0.5)
    w2 = jax.random.uniform(k_w2, (Cin, Chid, 3, 3), jnp.float32, -bw2, bw2)
    g1 = jax.random.uniform(k_g1, (Chid,), jnp.float32, 0.5, 1.5)
    b1 = jax.random.uniform(k_b1, (Chid,), jnp.float32, -0.5, 0.5)
    g2 = jax.random.uniform(k_g2, (Cin,), jnp.float32, 0.5, 1.5)
    b2 = jax.random.uniform(k_b2, (Cin,), jnp.float32, -0.5, 0.5)
    params = (w1, g1, b1, w2, g2, b2)

    out = jax.block_until_ready(darknet_block(x, params))
    ref = jax.block_until_ready(darknet_block_ref(x, params))

    assert out.shape == (N, Cin, H, W), out.shape
    max_err = float(jnp.max(jnp.abs(out - ref)))
    assert jnp.allclose(out, ref, atol=5e-4, rtol=5e-4), max_err
    print("KERNEL_OK")
</pallas_src>

<mosaic_0001>
module attributes {stable_mosaic.version = 11 : i64} {
  func.func @conv1_stats_kernel(%arg0: i32, %arg1: i32, %arg2: memref<1x64x128xf32, #tpu.memory_space<vmem>>, %arg3: memref<32x64xf32, #tpu.memory_space<vmem>>, %arg4: memref<1x32x128xf32, #tpu.memory_space<vmem>>, %arg5: memref<1x1x32x1xf32, #tpu.memory_space<vmem>>, %arg6: memref<1x1x32x1xf32, #tpu.memory_space<vmem>>) attributes {dimension_semantics = [#tpu.dimension_semantics<parallel>, #tpu.dimension_semantics<parallel>], iteration_bounds = array<i64: 2, 2>, scalar_prefetch = 0 : i64, scratch_operands = 0 : i64, tpu.core_type = #tpu.core_type<tc>, window_params = [{transform_indices = @transform_0, window_bounds = array<i64: 1, 64, 128>}, {pipeline_mode = #tpu.pipeline_mode<synchronous>, transform_indices = @transform_1, window_bounds = array<i64: 32, 64>}, {transform_indices = @transform_2, window_bounds = array<i64: 1, 32, 128>}, {transform_indices = @transform_3, window_bounds = array<i64: 1, 1, 32, 1>}, {transform_indices = @transform_4, window_bounds = array<i64: 1, 1, 32, 1>}]} {
    %c0 = arith.constant 0 : index
    %c0_0 = arith.constant 0 : index
    %0 = vector.load %arg3[%c0, %c0_0] : memref<32x64xf32, #tpu.memory_space<vmem>>, vector<32x64xf32>
    %c0_1 = arith.constant 0 : index
    %c0_2 = arith.constant 0 : index
    %c0_3 = arith.constant 0 : index
    %1 = vector.load %arg2[%c0_1, %c0_2, %c0_3] : memref<1x64x128xf32, #tpu.memory_space<vmem>>, vector<1x64x128xf32>
    %2 = vector.shape_cast %1 : vector<1x64x128xf32> to vector<64x128xf32>
    %cst = arith.constant dense<0.000000e+00> : vector<32x128xf32>
    %3 = tpu.matmul %0, %2, %cst {dimension_numbers = #tpu.dot_dimension_numbers<[1], [0], [0], [1], [0, 0, 1, 1], [], []>} : vector<32x64xf32>, vector<64x128xf32>, vector<32x128xf32> -> vector<32x128xf32>
    %c0_4 = arith.constant 0 : index
    %c0_5 = arith.constant 0 : index
    %c0_6 = arith.constant 0 : index
    %4 = vector.load %arg4[%c0_4, %c0_5, %c0_6] : memref<1x32x128xf32, #tpu.memory_space<vmem>>, vector<1x32x128xf32>
    %5 = vector.shape_cast %4 : vector<1x32x128xf32> to vector<32x128xf32>
    %6 = vector.shape_cast %3 : vector<32x128xf32> to vector<1x32x128xf32>
    tpu.vector_store %arg4[%c0_4, %c0_5, %c0_6], %6 {strides = array<i32>} : memref<1x32x128xf32, #tpu.memory_space<vmem>>, vector<1x32x128xf32>,
    %cst_7 = arith.constant dense<0.000000e+00> : vector<32xf32>
    %7 = vector.multi_reduction <add>, %3, %cst_7 [1] : vector<32x128xf32> to vector<32xf32>
    %8 = vector.shape_cast %7 : vector<32xf32> to vector<32x1xf32>
    %c0_8 = arith.constant 0 : index
    %c0_9 = arith.constant 0 : index
    %c0_10 = arith.constant 0 : index
    %c0_11 = arith.constant 0 : index
    %9 = vector.load %arg5[%c0_8, %c0_9, %c0_10, %c0_11] : memref<1x1x32x1xf32, #tpu.memory_space<vmem>>, vector<1x1x32x1xf32>
    %10 = vector.shape_cast %9 : vector<1x1x32x1xf32> to vector<32x1xf32>
    %11 = vector.shape_cast %8 : vector<32x1xf32> to vector<1x1x32x1xf32>
    tpu.vector_store %arg5[%c0_8, %c0_9, %c0_10, %c0_11], %11 {strides = array<i32>} : memref<1x1x32x1xf32, #tpu.memory_space<vmem>>, vector<1x1x32x1xf32>,
    %12 = arith.mulf %3, %3 : vector<32x128xf32>
    %cst_12 = arith.constant dense<0.000000e+00> : vector<32xf32>
    %13 = vector.multi_reduction <add>, %12, %cst_12 [1] : vector<32x128xf32> to vector<32xf32>
    %14 = vector.shape_cast %13 : vector<32xf32> to vector<32x1xf32>
    %c0_13 = arith.constant 0 : index
    %c0_14 = arith.constant 0 : index
    %c0_15 = arith.constant 0 : index
    %c0_16 = arith.constant 0 : index
    %15 = vector.load %arg6[%c0_13, %c0_14, %c0_15, %c0_16] : memref<1x1x32x1xf32, #tpu.memory_space<vmem>>, vector<1x1x32x1xf32>
    %16 = vector.shape_cast %15 : vector<1x1x32x1xf32> to vector<32x1xf32>
    %17 = vector.shape_cast %14 : vector<32x1xf32> to vector<1x1x32x1xf32>
    tpu.vector_store %arg6[%c0_13, %c0_14, %c0_15, %c0_16], %17 {strides = array<i32>} : memref<1x1x32x1xf32, #tpu.memory_space<vmem>>, vector<1x1x32x1xf32>,
    return
  }
  func.func @transform_0(%arg0: i32, %arg1: i32) -> (i32, i32, i32) {
    %c0_i32 = arith.constant 0 : i32
    %c0_i32_0 = arith.constant 0 : i32
    return %arg0, %c0_i32, %arg1 : i32, i32, i32
  }
  func.func @transform_1(%arg0: i32, %arg1: i32) -> (i32, i32) {
    %c0_i32 = arith.constant 0 : i32
    %c0_i32_0 = arith.constant 0 : i32
    %c0_i32_1 = arith.constant 0 : i32
    return %c0_i32, %c0_i32_0 : i32, i32
  }
  func.func @transform_2(%arg0: i32, %arg1: i32) -> (i32, i32, i32) {
    %c0_i32 = arith.constant 0 : i32
    %c0_i32_0 = arith.constant 0 : i32
    return %arg0, %c0_i32, %arg1 : i32, i32, i32
  }
  func.func @transform_3(%arg0: i32, %arg1: i32) -> (i32, i32, i32, i32) {
    %c0_i32 = arith.constant 0 : i32
    %c0_i32_0 = arith.constant 0 : i32
    %c0_i32_1 = arith.constant 0 : i32
    return %arg0, %arg1, %c0_i32, %c0_i32_0 : i32, i32, i32, i32
  }
  func.func @transform_4(%arg0: i32, %arg1: i32) -> (i32, i32, i32, i32) {
    %c0_i32 = arith.constant 0 : i32
    %c0_i32_0 = arith.constant 0 : i32
    %c0_i32_1 = arith.constant 0 : i32
    return %arg0, %arg1, %c0_i32, %c0_i32_0 : i32, i32, i32, i32
  }
}

module attributes {stable_mosaic.version = 11 : i64} {
  func.func @bn1_conv2_stats_kernel(%arg0: i32, %arg1: memref<1x32x256xf32, #tpu.memory_space<vmem>>, %arg2: memref<32x1xf32, #tpu.memory_space<vmem>>, %arg3: memref<32x1xf32, #tpu.memory_space<vmem>>, %arg4: memref<64x288xf32, #tpu.memory_space<vmem>>, %arg5: memref<1x64x256xf32, #tpu.memory_space<vmem>>, %arg6: memref<1x64x1xf32, #tpu.memory_space<vmem>>, %arg7: memref<1x64x1xf32, #tpu.memory_space<vmem>>, %arg8: memref<32x512xf32, #tpu.memory_space<vmem>>, %arg9: memref<288x256xf32, #tpu.memory_space<vmem>>) attributes {dimension_semantics = [#tpu.dimension_semantics<parallel>], iteration_bounds = array<i64: 2>, scalar_prefetch = 0 : i64, scratch_operands = 2 : i64, tpu.core_type = #tpu.core_type<tc>, window_params = [{transform_indices = @transform_0, window_bounds = array<i64: 1, 32, 256>}, {pipeline_mode = #tpu.pipeline_mode<synchronous>, transform_indices = @transform_1, window_bounds = array<i64: 32, 1>}, {pipeline_mode = #tpu.pipeline_mode<synchronous>, transform_indices = @transform_2, window_bounds = array<i64: 32, 1>}, {pipeline_mode = #tpu.pipeline_mode<synchronous>, transform_indices = @transform_3, window_bounds = array<i64: 64, 288>}, {transform_indices = @transform_4, window_bounds = array<i64: 1, 64, 256>}, {transform_indices = @transform_5, window_bounds = array<i64: 1, 64, 1>}, {transform_indices = @transform_6, window_bounds = array<i64: 1, 64, 1>}]} {
    %c0 = arith.constant 0 : index
    %c0_0 = arith.constant 0 : index
    %c0_1 = arith.constant 0 : index
    %0 = vector.load %arg1[%c0, %c0_0, %c0_1] : memref<1x32x256xf32, #tpu.memory_space<vmem>>, vector<1x32x256xf32>
    %1 = vector.shape_cast %0 : vector<1x32x256xf32> to vector<32x256xf32>
    %c0_2 = arith.constant 0 : index
    %c0_3 = arith.constant 0 : index
    %2 = vector.load %arg2[%c0_2, %c0_3] : memref<32x1xf32, #tpu.memory_space<vmem>>, vector<32x1xf32>
    %3 = vector.broadcast %2 : vector<32x1xf32> to vector<32x256xf32>
    %4 = arith.mulf %1, %3 : vector<32x256xf32>
    %c0_4 = arith.constant 0 : index
    %c0_5 = arith.constant 0 : index
    %5 = vector.load %arg3[%c0_4, %c0_5] : memref<32x1xf32, #tpu.memory_space<vmem>>, vector<32x1xf32>
    %6 = vector.broadcast %5 : vector<32x1xf32> to vector<32x256xf32>
    %7 = arith.addf %4, %6 : vector<32x256xf32>
    %cst = arith.constant 0.000000e+00 : f32
    %8 = vector.broadcast %cst : f32 to vector<32x256xf32>
    %9 = arith.cmpf ogt, %7, %8 : vector<32x256xf32>
    %cst_6 = arith.constant 1.000000e-01 : f32
    %10 = vector.broadcast %cst_6 : f32 to vector<32x256xf32>
    %11 = arith.mulf %10, %7 : vector<32x256xf32>
    %12 = arith.select %9, %7, %11 : vector<32x256xi1>, vector<32x256xf32>
    %cst_7 = arith.constant 0.000000e+00 : f32
    %13 = vector.broadcast %cst_7 : f32 to vector<32x128xf32>
    %c0_8 = arith.constant 0 : index
    %c0_9 = arith.constant 0 : index
    %14 = vector.load %arg8[%c0_8, %c0_9] : memref<32x512xf32, #tpu.memory_space<vmem>>, vector<32x128xf32>
    tpu.vector_store %arg8[%c0_8, %c0_9], %13 {strides = array<i32>} : memref<32x512xf32, #tpu.memory_space<vmem>>, vector<32x128xf32>,
    %cst_10 = arith.constant 0.000000e+00 : f32
    %15 = vector.broadcast %cst_10 : f32 to vector<32x128xf32>
    %c0_11 = arith.constant 0 : index
    %c384 = arith.constant 384 : index
    %16 = vector.load %arg8[%c0_11, %c384] : memref<32x512xf32, #tpu.memory_space<vmem>>, vector<32x128xf32>
    tpu.vector_store %arg8[%c0_11, %c384], %15 {strides = array<i32>} : memref<32x512xf32, #tpu.memory_space<vmem>>, vector<32x128xf32>,
    %c0_12 = arith.constant 0 : index
    %c128 = arith.constant 128 : index
    %17 = vector.load %arg8[%c0_12, %c128] : memref<32x512xf32, #tpu.memory_space<vmem>>, vector<32x256xf32>
    tpu.vector_store %arg8[%c0_12, %c128], %12 {strides = array<i32>} : memref<32x512xf32, #tpu.memory_space<vmem>>, vector<32x256xf32>,
    %18 = tpu.iota {dimensions = array<i32: 1>} : vector<1x256xi32>
    %c16_i32 = arith.constant 16 : i32
    %c0_i32 = arith.constant 0 : i32
    %19 = arith.cmpi eq, %c16_i32, %c0_i32 : i32
    %c1_i32 = arith.constant 1 : i32
    %20 = arith.select %19, %c1_i32, %c16_i32 : i32
    %21 = vector.broadcast %20 : i32 to vector<1x256xi32>
    %22 = arith.remsi %18, %21 : vector<1x256xi32>
    %c0_i32_13 = arith.constant 0 : i32
    %23 = vector.broadcast %c0_i32_13 : i32 to vector<1x256xi32>
    %24 = arith.cmpi ne, %22, %23 : vector<1x256xi32>
    %c0_i32_14 = arith.constant 0 : i32
    %25 = vector.broadcast %c0_i32_14 : i32 to vector<1x256xi32>
    %26 = arith.cmpi slt, %22, %25 : vector<1x256xi32>
    %c0_i32_15 = arith.constant 0 : i32
    %27 = arith.cmpi slt, %20, %c0_i32_15 : i32
    %28 = vector.broadcast %27 : i1 to vector<1x256xi1>
    %29 = vector.broadcast %28 : vector<1x256xi1> to vector<1x256xi1>
    %30 = arith.xori %26, %29 : vector<1x256xi1>
    %31 = arith.andi %30, %24 : vector<1x256xi1>
    %32 = vector.broadcast %20 : i32 to vector<1x256xi32>
    %33 = arith.addi %22, %32 : vector<1x256xi32>
    %34 = arith.select %31, %33, %22 : vector<1x256xi1>, vector<1x256xi32>
    %c0_i32_16 = arith.constant 0 : i32
    %35 = vector.broadcast %c0_i32_16 : i32 to vector<1x256xi32>
    %36 = arith.cmpi ne, %34, %35 : vector<1x256xi32>
    %c15_i32 = arith.constant 15 : i32
    %37 = vector.broadcast %c15_i32 : i32 to vector<1x256xi32>
    %38 = arith.cmpi ne, %34, %37 : vector<1x256xi32>
    %c0_17 = arith.constant 0 : index
    %c111 = arith.constant 111 : index
    %39 = vector.load %arg8[%c0_17, %c111] : memref<32x512xf32, #tpu.memory_space<vmem>>, vector<32x256xf32>
    %cst_18 = arith.constant 0.000000e+00 : f32
    %40 = vector.shape_cast %36 : vector<1x256xi1> to vector<1x256xi1>
    %41 = vector.broadcast %40 : vector<1x256xi1> to vector<32x256xi1>
    %42 = vector.broadcast %cst_18 : f32 to vector<32x256xf32>
    %43 = arith.select %41, %39, %42 : vector<32x256xi1>, vector<32x256xf32>
    %c0_19 = arith.constant 0 : index
    %c0_20 = arith.constant 0 : index
    %44 = vector.load %arg9[%c0_19, %c0_20] : memref<288x256xf32, #tpu.memory_space<vmem>>, vector<32x256xf32>
    tpu.vector_store %arg9[%c0_19, %c0_20], %43 {strides = array<i32>} : memref<288x256xf32, #tpu.memory_space<vmem>>, vector<32x256xf32>,
    %c0_21 = arith.constant 0 : index
    %c112 = arith.constant 112 : index
    %45 = vector.load %arg8[%c0_21, %c112] : memref<32x512xf32, #tpu.memory_space<vmem>>, vector<32x256xf32>
    %c32 = arith.constant 32 : index
    %c0_22 = arith.constant 0 : index
    %46 = vector.load %arg9[%c32, %c0_22] : memref<288x256xf32, #tpu.memory_space<vmem>>, vector<32x256xf32>
    tpu.vector_store %arg9[%c32, %c0_22], %45 {strides = array<i32>} : memref<288x256xf32, #tpu.memory_space<vmem>>, vector<32x256xf32>,
    %c0_23 = arith.constant 0 : index
    %c113 = arith.constant 113 : index
    %47 = vector.load %arg8[%c0_23, %c113] : memref<32x512xf32, #tpu.memory_space<vmem>>, vector<32x256xf32>
    %cst_24 = arith.constant 0.000000e+00 : f32
    %48 = vector.shape_cast %38 : vector<1x256xi1> to vector<1x256xi1>
    %49 = vector.broadcast %48 : vector<1x256xi1> to vector<32x256xi1>
    %50 = vector.broadcast %cst_24 : f32 to vector<32x256xf32>
    %51 = arith.select %49, %47, %50 : vector<32x256xi1>, vector<32x256xf32>
    %c64 = arith.constant 64 : index
    %c0_25 = arith.constant 0 : index
    %52 = vector.load %arg9[%c64, %c0_25] : memref<288x256xf32, #tpu.memory_space<vmem>>, vector<32x256xf32>
    tpu.vector_store %arg9[%c64, %c0_25], %51 {strides = array<i32>} : memref<288x256xf32, #tpu.memory_space<vmem>>, vector<32x256xf32>,
    %c0_26 = arith.constant 0 : index
    %c127 = arith.constant 127 : index
    %53 = vector.load %arg8[%c0_26, %c127] : memref<32x512xf32, #tpu.memory_space<vmem>>, vector<32x256xf32>
    %cst_27 = arith.constant 0.000000e+00 : f32
    %54 = vector.shape_cast %36 : vector<1x256xi1> to vector<1x256xi1>
    %55 = vector.broadcast %54 : vector<1x256xi1> to vector<32x256xi1>
    %56 = vector.broadcast %cst_27 : f32 to vector<32x256xf32>
    %57 = arith.select %55, %53, %56 : vector<32x256xi1>, vector<32x256xf32>
    %c96 = arith.constant 96 : index
    %c0_28 = arith.constant 0 : index
    %58 = vector.load %arg9[%c96, %c0_28] : memref<288x256xf32, #tpu.memory_space<vmem>>, vector<32x256xf32>
    tpu.vector_store %arg9[%c96, %c0_28], %57 {strides = array<i32>} : memref<288x256xf32, #tpu.memory_space<vmem>>, vector<32x256xf32>,
    %c0_29 = arith.constant 0 : index
    %c128_30 = arith.constant 128 : index
    %59 = vector.load %arg8[%c0_29, %c128_30] : memref<32x512xf32, #tpu.memory_space<vmem>>, vector<32x256xf32>
    %c128_31 = arith.constant 128 : index
    %c0_32 = arith.constant 0 : index
    %60 = vector.load %arg9[%c128_31, %c0_32] : memref<288x256xf32, #tpu.memory_space<vmem>>, vector<32x256xf32>
    tpu.vector_store %arg9[%c128_31, %c0_32], %59 {strides = array<i32>} : memref<288x256xf32, #tpu.memory_space<vmem>>, vector<32x256xf32>,
    %c0_33 = arith.constant 0 : index
    %c129 = arith.constant 129 : index
    %61 = vector.load %arg8[%c0_33, %c129] : memref<32x512xf32, #tpu.memory_space<vmem>>, vector<32x256xf32>
    %cst_34 = arith.constant 0.000000e+00 : f32
    %62 = vector.shape_cast %38 : vector<1x256xi1> to vector<1x256xi1>
    %63 = vector.broadcast %62 : vector<1x256xi1> to vector<32x256xi1>
    %64 = vector.broadcast %cst_34 : f32 to vector<32x256xf32>
    %65 = arith.select %63, %61, %64 : vector<32x256xi1>, vector<32x256xf32>
    %c160 = arith.constant 160 : index
    %c0_35 = arith.constant 0 : index
    %66 = vector.load %arg9[%c160, %c0_35] : memref<288x256xf32, #tpu.memory_space<vmem>>, vector<32x256xf32>
    tpu.vector_store %arg9[%c160, %c0_35], %65 {strides = array<i32>} : memref<288x256xf32, #tpu.memory_space<vmem>>, vector<32x256xf32>,
    %c0_36 = arith.constant 0 : index
    %c143 = arith.constant 143 : index
    %67 = vector.load %arg8[%c0_36, %c143] : memref<32x512xf32, #tpu.memory_space<vmem>>, vector<32x256xf32>
    %cst_37 = arith.constant 0.000000e+00 : f32
    %68 = vector.shape_cast %36 : vector<1x256xi1> to vector<1x256xi1>
    %69 = vector.broadcast %68 : vector<1x256xi1> to vector<32x256xi1>
    %70 = vector.broadcast %cst_37 : f32 to vector<32x256xf32>
    %71 = arith.select %69, %67, %70 : vector<32x256xi1>, vector<32x256xf32>
    %c192 = arith.constant 192 : index
    %c0_38 = arith.constant 0 : index
    %72 = vector.load %arg9[%c192, %c0_38] : memref<288x256xf32, #tpu.memory_space<vmem>>, vector<32x256xf32>
    tpu.vector_store %arg9[%c192, %c0_38], %71 {strides = array<i32>} : memref<288x256xf32, #tpu.memory_space<vmem>>, vector<32x256xf32>,
    %c0_39 = arith.constant 0 : index
    %c144 = arith.constant 144 : index
    %73 = vector.load %arg8[%c0_39, %c144] : memref<32x512xf32, #tpu.memory_space<vmem>>, vector<32x256xf32>
    %c224 = arith.constant 224 : index
    %c0_40 = arith.constant 0 : index
    %74 = vector.load %arg9[%c224, %c0_40] : memref<288x256xf32, #tpu.memory_space<vmem>>, vector<32x256xf32>
    tpu.vector_store %arg9[%c224, %c0_40], %73 {strides = array<i32>} : memref<288x256xf32, #tpu.memory_space<vmem>>, vector<32x256xf32>,
    %c0_41 = arith.constant 0 : index
    %c145 = arith.constant 145 : index
    %75 = vector.load %arg8[%c0_41, %c145] : memref<32x512xf32, #tpu.memory_space<vmem>>, vector<32x256xf32>
    %cst_42 = arith.constant 0.000000e+00 : f32
    %76 = vector.shape_cast %38 : vector<1x256xi1> to vector<1x256xi1>
    %77 = vector.broadcast %76 : vector<1x256xi1> to vector<32x256xi1>
    %78 = vector.broadcast %cst_42 : f32 to vector<32x256xf32>
    %79 = arith.select %77, %75, %78 : vector<32x256xi1>, vector<32x256xf32>
    %c256 = arith.constant 256 : index
    %c0_43 = arith.constant 0 : index
    %80 = vector.load %arg9[%c256, %c0_43] : memref<288x256xf32, #tpu.memory_space<vmem>>, vector<32x256xf32>
    tpu.vector_store %arg9[%c256, %c0_43], %79 {strides = array<i32>} : memref<288x256xf32, #tpu.memory_space<vmem>>, vector<32x256xf32>,
    %c0_44 = arith.constant 0 : index
    %c0_45 = arith.constant 0 : index
    %81 = vector.load %arg4[%c0_44, %c0_45] : memref<64x288xf32, #tpu.memory_space<vmem>>, vector<64x288xf32>
    %c0_46 = arith.constant 0 : index
    %c0_47 = arith.constant 0 : index
    %82 = vector.load %arg9[%c0_46, %c0_47] : memref<288x256xf32, #tpu.memory_space<vmem>>, vector<288x256xf32>
    %cst_48 = arith.constant dense<0.000000e+00> : vector<64x256xf32>
    %83 = tpu.matmul %81, %82, %cst_48 {dimension_numbers = #tpu.dot_dimension_numbers<[1], [0], [0], [1], [0, 0, 1, 1], [], []>} : vector<64x288xf32>, vector<288x256xf32>, vector<64x256xf32> -> vector<64x256xf32>
    %c0_49 = arith.constant 0 : index
    %c0_50 = arith.constant 0 : index
    %c0_51 = arith.constant 0 : index
    %84 = vector.load %arg5[%c0_49, %c0_50, %c0_51] : memref<1x64x256xf32, #tpu.memory_space<vmem>>, vector<1x64x256xf32>
    %85 = vector.shape_cast %84 : vector<1x64x256xf32> to vector<64x256xf32>
    %86 = vector.shape_cast %83 : vector<64x256xf32> to vector<1x64x256xf32>
    tpu.vector_store %arg5[%c0_49, %c0_50, %c0_51], %86 {strides = array<i32>} : memref<1x64x256xf32, #tpu.memory_space<vmem>>, vector<1x64x256xf32>,
    %cst_52 = arith.constant dense<0.000000e+00> : vector<64xf32>
    %87 = vector.multi_reduction <add>, %83, %cst_52 [1] : vector<64x256xf32> to vector<64xf32>
    %88 = vector.shape_cast %87 : vector<64xf32> to vector<64x1xf32>
    %c0_53 = arith.constant 0 : index
    %c0_54 = arith.constant 0 : index
    %c0_55 = arith.constant 0 : index
    %89 = vector.load %arg6[%c0_53, %c0_54, %c0_55] : memref<1x64x1xf32, #tpu.memory_space<vmem>>, vector<1x64x1xf32>
    %90 = vector.shape_cast %89 : vector<1x64x1xf32> to vector<64x1xf32>
    %91 = vector.shape_cast %88 : vector<64x1xf32> to vector<1x64x1xf32>
    tpu.vector_store %arg6[%c0_53, %c0_54, %c0_55], %91 {strides = array<i32>} : memref<1x64x1xf32, #tpu.memory_space<vmem>>, vector<1x64x1xf32>,
    %92 = arith.mulf %83, %83 : vector<64x256xf32>
    %cst_56 = arith.constant dense<0.000000e+00> : vector<64xf32>
    %93 = vector.multi_reduction <add>, %92, %cst_56 [1] : vector<64x256xf32> to vector<64xf32>
    %94 = vector.shape_cast %93 : vector<64xf32> to vector<64x1xf32>
    %c0_57 = arith.constant 0 : index
    %c0_58 = arith.constant 0 : index
    %c0_59 = arith.constant 0 : index
    %95 = vector.load %arg7[%c0_57, %c0_58, %c0_59] : memref<1x64x1xf32, #tpu.memory_space<vmem>>, vector<1x64x1xf32>
    %96 = vector.shape_cast %95 : vector<1x64x1xf32> to vector<64x1xf32>
    %97 = vector.shape_cast %94 : vector<64x1xf32> to vector<1x64x1xf32>
    tpu.vector_store %arg7[%c0_57, %c0_58, %c0_59], %97 {strides = array<i32>} : memref<1x64x1xf32, #tpu.memory_space<vmem>>, vector<1x64x1xf32>,
    return
  }
  func.func @transform_0(%arg0: i32) -> (i32, i32, i32) {
    %c0_i32 = arith.constant 0 : i32
    %c0_i32_0 = arith.constant 0 : i32
    %c0_i32_1 = arith.constant 0 : i32
    return %arg0, %c0_i32, %c0_i32_0 : i32, i32, i32
  }
  func.func @transform_1(%arg0: i32) -> (i32, i32) {
    %c0_i32 = arith.constant 0 : i32
    %c0_i32_0 = arith.constant 0 : i32
    %c0_i32_1 = arith.constant 0 : i32
    return %c0_i32, %c0_i32_0 : i32, i32
  }
  func.func @transform_2(%arg0: i32) -> (i32, i32) {
    %c0_i32 = arith.constant 0 : i32
    %c0_i32_0 = arith.constant 0 : i32
    %c0_i32_1 = arith.constant 0 : i32
    return %c0_i32, %c0_i32_0 : i32, i32
  }
  func.func @transform_3(%arg0: i32) -> (i32, i32) {
    %c0_i32 = arith.constant 0 : i32
    %c0_i32_0 = arith.constant 0 : i32
    %c0_i32_1 = arith.constant 0 : i32
    return %c0_i32, %c0_i32_0 : i32, i32
  }
  func.func @transform_4(%arg0: i32) -> (i32, i32, i32) {
    %c0_i32 = arith.constant 0 : i32
    %c0_i32_0 = arith.constant 0 : i32
    %c0_i32_1 = arith.constant 0 : i32
    return %arg0, %c0_i32, %c0_i32_0 : i32, i32, i32
  }
  func.func @transform_5(%arg0: i32) -> (i32, i32, i32) {
    %c0_i32 = arith.constant 0 : i32
    %c0_i32_0 = arith.constant 0 : i32
    %c0_i32_1 = arith.constant 0 : i32
    return %arg0, %c0_i32, %c0_i32_0 : i32, i32, i32
  }
  func.func @transform_6(%arg0: i32) -> (i32, i32, i32) {
    %c0_i32 = arith.constant 0 : i32
    %c0_i32_0 = arith.constant 0 : i32
    %c0_i32_1 = arith.constant 0 : i32
    return %arg0, %c0_i32, %c0_i32_0 : i32, i32, i32
  }
}

module attributes {stable_mosaic.version = 11 : i64} {
  func.func @bn2_residual_kernel(%arg0: i32, %arg1: i32, %arg2: memref<1x64x128xf32, #tpu.memory_space<vmem>>, %arg3: memref<1x64x128xf32, #tpu.memory_space<vmem>>, %arg4: memref<64x1xf32, #tpu.memory_space<vmem>>, %arg5: memref<64x1xf32, #tpu.memory_space<vmem>>, %arg6: memref<1x64x128xf32, #tpu.memory_space<vmem>>) attributes {dimension_semantics = [#tpu.dimension_semantics<parallel>, #tpu.dimension_semantics<parallel>], iteration_bounds = array<i64: 2, 2>, scalar_prefetch = 0 : i64, scratch_operands = 0 : i64, tpu.core_type = #tpu.core_type<tc>, window_params = [{transform_indices = @transform_0, window_bounds = array<i64: 1, 64, 128>}, {transform_indices = @transform_1, window_bounds = array<i64: 1, 64, 128>}, {pipeline_mode = #tpu.pipeline_mode<synchronous>, transform_indices = @transform_2, window_bounds = array<i64: 64, 1>}, {pipeline_mode = #tpu.pipeline_mode<synchronous>, transform_indices = @transform_3, window_bounds = array<i64: 64, 1>}, {transform_indices = @transform_4, window_bounds = array<i64: 1, 64, 128>}]} {
    %c0 = arith.constant 0 : index
    %c0_0 = arith.constant 0 : index
    %c0_1 = arith.constant 0 : index
    %0 = vector.load %arg2[%c0, %c0_0, %c0_1] : memref<1x64x128xf32, #tpu.memory_space<vmem>>, vector<1x64x128xf32>
    %1 = vector.shape_cast %0 : vector<1x64x128xf32> to vector<64x128xf32>
    %c0_2 = arith.constant 0 : index
    %c0_3 = arith.constant 0 : index
    %2 = vector.load %arg4[%c0_2, %c0_3] : memref<64x1xf32, #tpu.memory_space<vmem>>, vector<64x1xf32>
    %3 = vector.broadcast %2 : vector<64x1xf32> to vector<64x128xf32>
    %4 = arith.mulf %1, %3 : vector<64x128xf32>
    %c0_4 = arith.constant 0 : index
    %c0_5 = arith.constant 0 : index
    %5 = vector.load %arg5[%c0_4, %c0_5] : memref<64x1xf32, #tpu.memory_space<vmem>>, vector<64x1xf32>
    %6 = vector.broadcast %5 : vector<64x1xf32> to vector<64x128xf32>
    %7 = arith.addf %4, %6 : vector<64x128xf32>
    %cst = arith.constant 0.000000e+00 : f32
    %8 = vector.broadcast %cst : f32 to vector<64x128xf32>
    %9 = arith.cmpf ogt, %7, %8 : vector<64x128xf32>
    %cst_6 = arith.constant 1.000000e-01 : f32
    %10 = vector.broadcast %cst_6 : f32 to vector<64x128xf32>
    %11 = arith.mulf %10, %7 : vector<64x128xf32>
    %12 = arith.select %9, %7, %11 : vector<64x128xi1>, vector<64x128xf32>
    %c0_7 = arith.constant 0 : index
    %c0_8 = arith.constant 0 : index
    %c0_9 = arith.constant 0 : index
    %13 = vector.load %arg3[%c0_7, %c0_8, %c0_9] : memref<1x64x128xf32, #tpu.memory_space<vmem>>, vector<1x64x128xf32>
    %14 = vector.shape_cast %13 : vector<1x64x128xf32> to vector<64x128xf32>
    %15 = arith.addf %12, %14 : vector<64x128xf32>
    %c0_10 = arith.constant 0 : index
    %c0_11 = arith.constant 0 : index
    %c0_12 = arith.constant 0 : index
    %16 = vector.load %arg6[%c0_10, %c0_11, %c0_12] : memref<1x64x128xf32, #tpu.memory_space<vmem>>, vector<1x64x128xf32>
    %17 = vector.shape_cast %16 : vector<1x64x128xf32> to vector<64x128xf32>
    %18 = vector.shape_cast %15 : vector<64x128xf32> to vector<1x64x128xf32>
    tpu.vector_store %arg6[%c0_10, %c0_11, %c0_12], %18 {strides = array<i32>} : memref<1x64x128xf32, #tpu.memory_space<vmem>>, vector<1x64x128xf32>,
    return
  }
  func.func @transform_0(%arg0: i32, %arg1: i32) -> (i32, i32, i32) {
    %c0_i32 = arith.constant 0 : i32
    %c0_i32_0 = arith.constant 0 : i32
    return %arg0, %c0_i32, %arg1 : i32, i32, i32
  }
  func.func @transform_1(%arg0: i32, %arg1: i32) -> (i32, i32, i32) {
    %c0_i32 = arith.constant 0 : i32
    %c0_i32_0 = arith.constant 0 : i32
    return %arg0, %c0_i32, %arg1 : i32, i32, i32
  }
  func.func @transform_2(%arg0: i32, %arg1: i32) -> (i32, i32) {
    %c0_i32 = arith.constant 0 : i32
    %c0_i32_0 = arith.constant 0 : i32
    %c0_i32_1 = arith.constant 0 : i32
    return %c0_i32, %c0_i32_0 : i32, i32
  }
  func.func @transform_3(%arg0: i32, %arg1: i32) -> (i32, i32) {
    %c0_i32 = arith.constant 0 : i32
    %c0_i32_0 = arith.constant 0 : i32
    %c0_i32_1 = arith.constant 0 : i32
    return %c0_i32, %c0_i32_0 : i32, i32
  }
  func.func @transform_4(%arg0: i32, %arg1: i32) -> (i32, i32, i32) {
    %c0_i32 = arith.constant 0 : i32
    %c0_i32_0 = arith.constant 0 : i32
    return %arg0, %c0_i32, %arg1 : i32, i32, i32
  }
}

</mosaic_0001>

<llo_original>
// kernel: darknet_block.3
$region0: #{darknet_block.3}
  #allocation0 [shape = 'u32[]', space=smem, size = 0x4, offset = 0x4, fixed_abs, tag = 'smem constant byte address 0x4 - core index']
  #allocation1 [shape = 'u32[144,128]{1,0:T(1,128)}', space=vmem, size = 0x12000, scoped, tag = 'internal scratch']
  %s0 = inlined_call_operand.vmem [shape: f32[2,64,256], index: 0, kind: input, shape index: {}]
  %s1 = inlined_call_operand.vmem [shape: f32[32,64], index: 1, kind: input, shape index: {}]
  %s2 = inlined_call_operand.vmem [shape: f32[2,32,256], index: 2, kind: output, shape index: {0}]
  %s3 = inlined_call_operand.vmem [shape: f32[2,2,32,1], index: 3, kind: output, shape index: {1}]
  %s4 = inlined_call_operand.vmem [shape: f32[2,2,32,1], index: 4, kind: output, shape index: {2}]
  %5 = xla_tuple %s2, %s3, %s4
  %s6 = sld [smem:[#allocation0]]
  $region129: #{darknet_block.3} parent=0
    _
  %s8 = ssub.s32 1, %s6
  %s9 = scalar_select 0, %s8, %s6
  $region1: #{darknet_block.3} parent=0
    #allocation2 [shape = 'u8[65536]{0}', space=vmem, size = 0x10000, scoped, tag = 'input window, operand 0']
    #allocation3 [shape = 'u8[32768]{0}', space=vmem, size = 0x8000, scoped, tag = 'output window, operand 0']
    loop: start=0, step=1, limit=6
    $region2: #{darknet_block.3} parent=1 // loop_pre_header
      _
    $region3: #{darknet_block.3} parent=1 // loop_header
      %s11 = sphi 0, %s15
      %p12 = scmp.ge.s32.totalorder %s11, 6
      %s18 = sphi 0, %s30
      %s19 = sphi 0, %s26
      %s20 = sphi 0, %s18
      %s21 = sphi 0, %s19
      %s22 = sphi 0, %s20
      %s23 = sphi 0, %s21
      %s35 = sphi 0, %s37
      %s38 = sphi 0, %s35
      %s39 = sphi 0, %s38
      %s55 = sphi 0, %s39
      %s59 = sphi 0, %s59
      %s61 = sphi 0, %s59
      %s62 = sphi 0, %s61
      %s76 = sphi 0, %s62
      %s84 = sphi 0, %s86
      %s87 = sphi 0, %s84
      %s88 = sphi 0, %s87
      %s104 = sphi 0, %s88
      %s112 = sphi 0, %s114
      %s115 = sphi 0, %s112
      %s116 = sphi 0, %s115
      %s132 = sphi 0, %s116
      %s140 = sphi 0, %s142
      %s143 = sphi 0, %s140
      %s144 = sphi 0, %s143
      %s160 = sphi 0, %s144
    $region4: #{darknet_block.3} parent=1 // loop_header_branch
      %14 = sbr.rel (%p12) target = $region8
    $region5: #{darknet_block.3} parent=1 // loop_body
      %s16 = ssub.s32 %s11, 1
      %s17 = ssub.s32 %s11, 2
      %s24 = sadd.s32 1, %s19
      %p25 = scmp.ge.s32.totalorder %s24, 2
      %s26 = scalar_select %p25, 0, %s24
      %s27 = sadd.s32 1, %s18
      %s28 = scalar_select %p25, %s27, %s18
      %p29 = scmp.ge.s32.totalorder %s28, 2
      %s30 = scalar_select %p29, 0, %s28
      %s31 = ssub.s32 %s18, %s30
      %s32 = ssub.s32 %s19, %s26
      %s33 = sor.u32 %s31, %s32
      %p34 = scmp.eq.s32.totalorder %s33, 0
      %s36 = sadd.s32 %s35, 1
      %s37 = scalar_select %p34, %s35, %s36
      %p40 = pneg %p34
      %p41 = scmp.eq.s32.totalorder %s11, 3
      %p42 = por %p40, %p41
      %p43 = scmp.ne.s32.totalorder %s35, %s38
      %p44 = scmp.eq.s32.totalorder %s11, 0
      %p45 = por %p43, %p44
      %p46 = scmp.ne.s32.totalorder %s35, %s38
      %p47 = scmp.eq.s32.totalorder %s16, 3
      %p48 = por %p46, %p47
      %p49 = scmp.ne.s32.totalorder %s38, %s39
      %p50 = scmp.eq.s32.totalorder %s16, 0
      %p51 = por %p49, %p50
      %p52 = scmp.ne.s32.totalorder %s38, %s39
      %p53 = scmp.eq.s32.totalorder %s17, 3
      %p54 = por %p52, %p53
      %p56 = scmp.ne.s32.totalorder %s39, %s55
      %p57 = scmp.eq.s32.totalorder %s17, 0
      %p58 = por %p56, %p57
      %s60 = sadd.s32 %s59, 1
      %p63 = scmp.eq.s32.totalorder %s11, 3
      %p64 = scmp.ne.s32.totalorder %s59, %s61
      %p65 = scmp.eq.s32.totalorder %s11, 0
      %p66 = por %p64, %p65
      %p67 = scmp.ne.s32.totalorder %s59, %s61
      %p68 = scmp.eq.s32.totalorder %s16, 3
      %p69 = por %p67, %p68
      %p70 = scmp.ne.s32.totalorder %s61, %s62
      %p71 = scmp.eq.s32.totalorder %s16, 0
      %p72 = por %p70, %p71
      %p73 = scmp.ne.s32.totalorder %s61, %s62
      %p74 = scmp.eq.s32.totalorder %s17, 3
      %p75 = por %p73, %p74
      %p77 = scmp.ne.s32.totalorder %s62, %s76
      %p78 = scmp.eq.s32.totalorder %s17, 0
      %p79 = por %p77, %p78
      %s80 = ssub.s32 %s18, %s30
      %s81 = ssub.s32 %s19, %s26
      %s82 = sor.u32 %s80, %s81
      %p83 = scmp.eq.s32.totalorder %s82, 0
      %s85 = sadd.s32 %s84, 1
      %s86 = scalar_select %p83, %s84, %s85
      %p89 = pneg %p83
      %p90 = scmp.eq.s32.totalorder %s11, 3
      %p91 = por %p89, %p90
      %p92 = scmp.ne.s32.totalorder %s84, %s87
      %p93 = scmp.eq.s32.totalorder %s11, 0
      %p94 = por %p92, %p93
      %p95 = scmp.ne.s32.totalorder %s84, %s87
      %p96 = scmp.eq.s32.totalorder %s16, 3
      %p97 = por %p95, %p96
      %p98 = scmp.ne.s32.totalorder %s87, %s88
      %p99 = scmp.eq.s32.totalorder %s16, 0
      %p100 = por %p98, %p99
      %p101 = scmp.ne.s32.totalorder %s87, %s88
      %p102 = scmp.eq.s32.totalorder %s17, 3
      %p103 = por %p101, %p102
      %p105 = scmp.ne.s32.totalorder %s88, %s104
      %p106 = scmp.eq.s32.totalorder %s17, 0
      %p107 = por %p105, %p106
      %s108 = ssub.s32 %s18, %s30
      %s109 = ssub.s32 %s19, %s26
      %s110 = sor.u32 %s108, %s109
      %p111 = scmp.eq.s32.totalorder %s110, 0
      %s113 = sadd.s32 %s112, 1
      %s114 = scalar_select %p111, %s112, %s113
      %p117 = pneg %p111
      %p118 = scmp.eq.s32.totalorder %s11, 3
      %p119 = por %p117, %p118
      %p120 = scmp.ne.s32.totalorder %s112, %s115
      %p121 = scmp.eq.s32.totalorder %s11, 0
      %p122 = por %p120, %p121
      %p123 = scmp.ne.s32.totalorder %s112, %s115
      %p124 = scmp.eq.s32.totalorder %s16, 3
      %p125 = por %p123, %p124
      %p126 = scmp.ne.s32.totalorder %s115, %s116
      %p127 = scmp.eq.s32.totalorder %s16, 0
      %p128 = por %p126, %p127
      %p129 = scmp.ne.s32.totalorder %s115, %s116
      %p130 = scmp.eq.s32.totalorder %s17, 3
      %p131 = por %p129, %p130
      %p133 = scmp.ne.s32.totalorder %s116, %s132
      %p134 = scmp.eq.s32.totalorder %s17, 0
      %p135 = por %p133, %p134
      %s136 = ssub.s32 %s18, %s30
      %s137 = ssub.s32 %s19, %s26
      %s138 = sor.u32 %s136, %s137
      %p139 = scmp.eq.s32.totalorder %s138, 0
      %s141 = sadd.s32 %s140, 1
      %s142 = scalar_select %p139, %s140, %s141
      %p145 = pneg %p139
      %p146 = scmp.eq.s32.totalorder %s11, 3
      %p147 = por %p145, %p146
      %p148 = scmp.ne.s32.totalorder %s140, %s143
      %p149 = scmp.eq.s32.totalorder %s11, 0
      %p150 = por %p148, %p149
      %p151 = scmp.ne.s32.totalorder %s140, %s143
      %p152 = scmp.eq.s32.totalorder %s16, 3
      %p153 = por %p151, %p152
      %p154 = scmp.ne.s32.totalorder %s143, %s144
      %p155 = scmp.eq.s32.totalorder %s16, 0
      %p156 = por %p154, %p155
      %p157 = scmp.ne.s32.totalorder %s143, %s144
      %p158 = scmp.eq.s32.totalorder %s17, 3
      %p159 = por %p157, %p158
      %p161 = scmp.ne.s32.totalorder %s144, %s160
      %p162 = scmp.eq.s32.totalorder %s17, 0
      %p163 = por %p161, %p162
      %p164 = scmp.le.s32.totalorder 1, %s11
      %p165 = scmp.lt.s32.totalorder %s11, 5
      %p166 = pnand %p164, %p165
      %p167 = pneg %p166
      // Predicated region
      $region9: #{darknet_block.3} parent=5 // pred_check
        _
      $region10: #{darknet_block.3} parent=5 // pred_check_branch
        %169 = sbr.rel (%p166) target = $region12
      $region11: #{darknet_block.3} parent=5 // pred_region
        %s170 = ssub.s32 %s11, 1
        // Predicated region
        $region13: #{darknet_block.3} parent=11 // pred_check
          %p171 = pneg %p72
        $region14: #{darknet_block.3} parent=11 // pred_check_branch
          %173 = sbr.rel (%p171) target = $region16
        $region15: #{darknet_block.3} parent=11 // pred_region
          _
        $region16: #{darknet_block.3} parent=11 // pred_fallthru
          _
      $region12: #{darknet_block.3} parent=5 // pred_fallthru
        _
      %p174 = scmp.lt.s32.totalorder %s11, 4
      // Predicated region
      $region17: #{darknet_block.3} parent=5 // pred_check
        %p175 = pneg %p174
      $region18: #{darknet_block.3} parent=5 // pred_check_branch
        %177 = sbr.rel (%p175) target = $region20
      $region19: #{darknet_block.3} parent=5 // pred_region
        // Predicated region
        $region21: #{darknet_block.3} parent=19 // pred_check
          %p178 = pneg %p45
        $region22: #{darknet_block.3} parent=19 // pred_check_branch
          %180 = sbr.rel (%p178) target = $region24
        $region23: #{darknet_block.3} parent=19 // pred_region
          %s181 = sand.u32 %s35, 1
          %s182 = sand.u32 %s35, 1
          %s183 = smul.addr %s182, 64
          %s184 = scalar_lea.vmem [#allocation2], %s183
          %s185 = smul.addr %s18, 16
          %s186 = sadd.s32 %s19, %s185
          %s187 = smul.addr %s186, 8
          %s188 = scalar_lea.vmem %s0, %s187
          // Predicated region
          $region25: #{darknet_block.3} parent=23 // pred_check
            _
          $region26: #{darknet_block.3} parent=23 // pred_check_branch
            %190 = sbr.rel (0) target = $region28
          $region27: #{darknet_block.3} parent=23 // pred_region
            // Predicated region
            $region29: #{darknet_block.3} parent=27 // pred_check
              _
            $region30: #{darknet_block.3} parent=27 // pred_check_branch
              %192 = sbr.rel (0) target = $region32
            $region31: #{darknet_block.3} parent=27 // pred_region
              // Predicated region
              $region44: #{darknet_block.3} parent=31 // pred_check
                _
              $region45: #{darknet_block.3} parent=31 // pred_check_branch
                %221 = sbr.rel (0) target = $region47
              $region46: #{darknet_block.3} parent=31 // pred_region
                loop: start=0, step=1, limit=1
                $region48: #{darknet_block.3} parent=46 // loop_pre_header
                  _
                $region49: #{darknet_block.3} parent=46 // loop_header
                  %s223 = sphi 0, %s227
                  %p224 = scmp.ge.s32.totalorder %s223, 1
                  %s228 = sphi %s188, %s188
                  %s229 = sphi %s184, %s184
                $region50: #{darknet_block.3} parent=46 // loop_header_branch
                  %226 = sbr.rel (%p224) target = $region54
                $region51: #{darknet_block.3} parent=46 // loop_body
                  %v230 = vld [vmem:[%s228] sm:$0xff]
                  %231 = vst [vmem:[%s229] sm:$0xff] %v230
                  %v232 = vld [vmem:[%s228 + $0x10] sm:$0xff]
                  %233 = vst [vmem:[%s229 + $0x8] sm:$0xff] %v232
                  %v234 = vld [vmem:[%s228 + $0x20] sm:$0xff]
                  %235 = vst [vmem:[%s229 + $0x10] sm:$0xff] %v234
                  %v236 = vld [vmem:[%s228 + $0x30] sm:$0xff]
                  %237 = vst [vmem:[%s229 + $0x18] sm:$0xff] %v236
                  %v238 = vld [vmem:[%s228 + $0x40] sm:$0xff]
                  %239 = vst [vmem:[%s229 + $0x20] sm:$0xff] %v238
                  %v240 = vld [vmem:[%s228 + $0x50] sm:$0xff]
                  %241 = vst [vmem:[%s229 + $0x28] sm:$0xff] %v240
                  %v242 = vld [vmem:[%s228 + $0x60] sm:$0xff]
                  %243 = vst [vmem:[%s229 + $0x30] sm:$0xff] %v242
                  %v244 = vld [vmem:[%s228 + $0x70] sm:$0xff]
                  %245 = vst [vmem:[%s229 + $0x38] sm:$0xff] %v244
                $region52: #{darknet_block.3} parent=46 // loop_footer
                  %s227 = sadd.s32 1, %s223
                $region53: #{darknet_block.3} parent=46 // loop_footer_branch
                  %222 = sbr.rel target = $region49
                $region54: #{darknet_block.3} parent=46 // loop_exit
                  _
              $region47: #{darknet_block.3} parent=31 // pred_fallthru
                _
              // Predicated region
              $region55: #{darknet_block.3} parent=31 // pred_check
                _
              $region56: #{darknet_block.3} parent=31 // pred_check_branch
                %247 = sbr.rel target = $region58
              $region57: #{darknet_block.3} parent=31 // pred_region
                _
              $region58: #{darknet_block.3} parent=31 // pred_fallthru
                _
            $region32: #{darknet_block.3} parent=27 // pred_fallthru
              _
            // Predicated region
            $region33: #{darknet_block.3} parent=27 // pred_check
              _
            $region34: #{darknet_block.3} parent=27 // pred_check_branch
              %194 = sbr.rel target = $region36
            $region35: #{darknet_block.3} parent=27 // pred_region
              loop: start=0, step=1, limit=1
              $region37: #{darknet_block.3} parent=35 // loop_pre_header
                _
              $region38: #{darknet_block.3} parent=35 // loop_header
                %s197 = sphi 0, %s201
                %p198 = scmp.ge.s32.totalorder %s197, 1
                %s202 = sphi %s188, %s188
                %s203 = sphi %s184, %s184
              $region39: #{darknet_block.3} parent=35 // loop_header_branch
                %200 = sbr.rel (%p198) target = $region43
              $region40: #{darknet_block.3} parent=35 // loop_body
                %v204 = vld [vmem:[%s202] sm:$0xff]
                %205 = vst [vmem:[%s203] sm:$0xff] %v204
                %v206 = vld [vmem:[%s202 + $0x10] sm:$0xff]
                %207 = vst [vmem:[%s203 + $0x8] sm:$0xff] %v206
                %v208 = vld [vmem:[%s202 + $0x20] sm:$0xff]
                %209 = vst [vmem:[%s203 + $0x10] sm:$0xff] %v208
                %v210 = vld [vmem:[%s202 + $0x30] sm:$0xff]
                %211 = vst [vmem:[%s203 + $0x18] sm:$0xff] %v210
                %v212 = vld [vmem:[%s202 + $0x40] sm:$0xff]
                %213 = vst [vmem:[%s203 + $0x20] sm:$0xff] %v212
                %v214 = vld [vmem:[%s202 + $0x50] sm:$0xff]
                %215 = vst [vmem:[%s203 + $0x28] sm:$0xff] %v214
                %v216 = vld [vmem:[%s202 + $0x60] sm:$0xff]
                %217 = vst [vmem:[%s203 + $0x30] sm:$0xff] %v216
                %v218 = vld [vmem:[%s202 + $0x70] sm:$0xff]
                %219 = vst [vmem:[%s203 + $0x38] sm:$0xff] %v218
              $region41: #{darknet_block.3} parent=35 // loop_footer
                %s201 = sadd.s32 1, %s197
              $region42: #{darknet_block.3} parent=35 // loop_footer_branch
                %196 = sbr.rel target = $region38
              $region43: #{darknet_block.3} parent=35 // loop_exit
                _
            $region36: #{darknet_block.3} parent=27 // pred_fallthru
              _
          $region28: #{darknet_block.3} parent=23 // pred_fallthru
            _
          %248 = vnop
        $region24: #{darknet_block.3} parent=19 // pred_fallthru
          _
      $region20: #{darknet_block.3} parent=5 // pred_fallthru
        _
      %p249 = scmp.le.s32.totalorder 1, %s11
      %p250 = scmp.lt.s32.totalorder %s11, 5
      %p251 = pnand %p249, %p250
      %p252 = pneg %p251
      // Predicated region
      $region59: #{darknet_block.3} parent=5 // pred_check
        _
      $region60: #{darknet_block.3} parent=5 // pred_check_branch
        %254 = sbr.rel (%p251) target = $region62
      $region61: #{darknet_block.3} parent=5 // pred_region
        %s255 = ssub.s32 %s11, 1
        %s256 = sand.u32 %s38, 1
        %s257 = sand.u32 %s38, 1
        %s258 = smul.addr %s257, 64
        %s259 = scalar_lea.vmem [#allocation2], %s258
        // Predicated region
        $region63: #{darknet_block.3} parent=61 // pred_check
          %p260 = pneg %p51
        $region64: #{darknet_block.3} parent=61 // pred_check_branch
          %262 = sbr.rel (%p260) target = $region66
        $region65: #{darknet_block.3} parent=61 // pred_region
          _
        $region66: #{darknet_block.3} parent=61 // pred_fallthru
          _
        %s263 = sand.u32 %s38, 1
        %s264 = sand.u32 %s38, 1
        %s265 = smul.addr %s264, 64
        %s266 = scalar_lea.vmem [#allocation2], %s265
        %p267 = pneg %p51
        %p268 = pneg %p48
        %p269 = pneg %p72
        %p270 = pneg %p69
        %p271 = pneg %p100
        %p272 = pneg %p97
        %s273 = sand.u32 %s87, 1
        %s274 = sand.u32 %s87, 1
        %s275 = smul.addr %s274, 32
        %s276 = scalar_lea.vmem [#allocation3], %s275
        %p277 = pneg %p128
        %p278 = pneg %p125
        %p279 = scmp.lt.s32.totalorder %s20, 1
        %s280 = scalar_select %p279, %s20, 1
        %p281 = scmp.lt.s32.totalorder %s21, 1
        %s282 = scalar_select %p281, %s21, 1
        %s283 = smul.addr %s282, 4
        %s284 = smul.addr %s280, 8
        %s285 = sadd.s32 %s283, %s284
        %s286 = smul.addr %s285, 8
        %s287 = scalar_lea.vmem %s3, %s286
        %p288 = pneg %p156
        %p289 = pneg %p153
        %p290 = scmp.lt.s32.totalorder %s20, 1
        %s291 = scalar_select %p290, %s20, 1
        %p292 = scmp.lt.s32.totalorder %s21, 1
        %s293 = scalar_select %p292, %s21, 1
        %s294 = smul.addr %s293, 4
        %s295 = smul.addr %s291, 8
        %s296 = sadd.s32 %s294, %s295
        %s297 = smul.addr %s296, 8
        %s298 = scalar_lea.vmem %s4, %s297
        %p299 = scmp.lt.s32.totalorder %s20, 1
        %s300 = scalar_select %p299, %s20, 1
        %p301 = scmp.lt.s32.totalorder %s21, 1
        %s302 = scalar_select %p301, %s21, 1
        %s303 = smul.addr %s302, 4
        %s304 = smul.addr %s300, 8
        %s305 = sadd.s32 %s303, %s304
        %s306 = smul.addr %s305, 8
        %s307 = scalar_lea.vmem %s3, %s306
        %p308 = scmp.lt.s32.totalorder %s20, 1
        %s309 = scalar_select %p308, %s20, 1
        %p310 = scmp.lt.s32.totalorder %s21, 1
        %s311 = scalar_select %p310, %s21, 1
        %s312 = smul.addr %s311, 4
        %s313 = smul.addr %s309, 8
        %s314 = sadd.s32 %s312, %s313
        %s315 = smul.addr %s314, 8
        %s316 = scalar_lea.vmem %s4, %s315
        %v317 = vld [vmem:[%s1] sm:$0xff]
        %v318 = vld [vmem:[%s1 + $0x8] sm:$0xff]
        %v319 = vld [vmem:[%s1 + $0x10] sm:$0xff]
        %v320 = vld [vmem:[%s1 + $0x18] sm:$0xff]
        %v321 = vld [vmem:[%s259] sm:$0xff]
        %v322 = vld [vmem:[%s259 + $0x8] sm:$0xff]
        %v323 = vld [vmem:[%s259 + $0x10] sm:$0xff]
        %v324 = vld [vmem:[%s259 + $0x18] sm:$0xff]
        %v325 = vld [vmem:[%s259 + $0x20] sm:$0xff]
        %v326 = vld [vmem:[%s259 + $0x28] sm:$0xff]
        %v327 = vld [vmem:[%s259 + $0x30] sm:$0xff]
        %v328 = vld [vmem:[%s259 + $0x38] sm:$0xff]
        %vm329 = vcmask 523264
        %v331 = vsel %vm329, %v317, 0
        %v334 = vsel %vm329, %v318, 0
        %v337 = vsel %vm329, %v319, 0
        %v340 = vsel %vm329, %v320, 0
        %342 = vmatprep.subr.mxu0 0.0
        %343 = vmatpush1.msra.mxu0 %v321
        %344 = vmatprep.subr.mxu0 0.0
        %345 = vmatpush1.msra.mxu0 %v322
        %346 = vmatprep.subr.mxu0 0.0
        %347 = vmatpush1.msra.mxu0 %v323
        %348 = vmatprep.subr.mxu0 0.0
        %349 = vmatpush1.msra.mxu0 %v324
        %350 = vmatprep.subr.mxu0 0.0
        %351 = vmatpush1.msra.mxu0 %v325
        %352 = vmatprep.subr.mxu0 0.0
        %353 = vmatpush1.msra.mxu0 %v326
        %354 = vmatprep.subr.mxu0 0.0
        %355 = vmatpush1.msra.mxu0 %v327
        %356 = vmatprep.subr.mxu0 0.0
        %357 = vmatpush1.msra.mxu0 %v328
        %358 = vmatprep.subr.mxu0 0.0
        %359 = vmatpush1.msra.mxu0 0.0
        %360 = vmatprep.subr.mxu0 0.0
        %361 = vmatpush1.msra.mxu0 0.0
        %362 = vmatprep.subr.mxu0 0.0
        %363 = vmatpush1.msra.mxu0 0.0
        %364 = vmatprep.subr.mxu0 0.0
        %365 = vmatpush1.msra.mxu0 0.0
        %366 = vmatprep.subr.mxu0 0.0
        %367 = vmatpush1.msra.mxu0 0.0
        %368 = vmatprep.subr.mxu0 0.0
        %369 = vmatpush1.msra.mxu0 0.0
        %370 = vmatprep.subr.mxu0 0.0
        %371 = vmatpush1.msra.mxu0 0.0
        %372 = vmatprep.subr.mxu0 0.0
        %373 = vmatpush1.msra.mxu0 0.0
        %374 = vmatprep.subr.mxu0 0.0
        %375 = vmatpush1.msra.mxu0 0.0
        %376 = vmatprep.subr.mxu0 0.0
        %377 = vmatpush1.msra.mxu0 0.0
        %378 = vmatprep.subr.mxu0 0.0
        %379 = vmatpush1.msra.mxu0 0.0
        %380 = vmatprep.subr.mxu0 0.0
        %381 = vmatpush1.msra.mxu0 0.0
        %382 = vmatprep.subr.mxu0 0.0
        %383 = vmatpush1.msra.mxu0 0.0
        %384 = vmatprep.subr.mxu0 0.0
        %385 = vmatpush1.msra.mxu0 0.0
        %386 = vmatprep.subr.mxu0 0.0
        %387 = vmatpush1.msra.mxu0 0.0
        %388 = vmatprep.subr.mxu0 0.0
        %389 = vmatpush1.msra.mxu0 0.0
        %390 = vmatprep.subr.mxu0 0.0
        %391 = vmatpush1.msra.mxu0 0.0
        %392 = vmatprep.subr.mxu0 0.0
        %393 = vmatpush1.msra.mxu0 0.0
        %394 = vmatprep.subr.mxu0 0.0
        %395 = vmatpush1.msra.mxu0 0.0
        %396 = vmatprep.subr.mxu0 0.0
        %397 = vmatpush1.msra.mxu0 0.0
        %398 = vmatprep.subr.mxu0 0.0
        %399 = vmatpush1.msra.mxu0 0.0
        %400 = vmatprep.subr.mxu0 0.0
        %401 = vmatpush1.msra.mxu0 0.0
        %402 = vmatprep.subr.mxu0 0.0
        %403 = vmatpush1.msra.mxu0 0.0
        %404 = vmatprep.subr.mxu0 0.0
        %405 = vmatpush1.msra.mxu0 0.0
        %406 = vmatprep.mubr.f32.mxu0 0.0
        %407 = vmatmul.mubr.f32.gmra.mrb[0].mxu0 %v331
        %v408 = vpop.f32.mrb[0].mxu0
        %v409 = vadd.f32 0.0, %v408
        %v410 = vpop.f32.mrb[0].mxu0
        %411 = vmatprep.mubr.f32.mxu0 0.0
        %412 = vmatmul.mubr.f32.gmra.mrb[0].mxu0 %v334
        %v413 = vpop.f32.mrb[0].mxu0
        %v414 = vadd.f32 0.0, %v413
        %v415 = vpop.f32.mrb[0].mxu0
        %416 = vmatprep.mubr.f32.mxu0 0.0
        %417 = vmatmul.mubr.f32.gmra.mrb[0].mxu0 %v337
        %v418 = vpop.f32.mrb[0].mxu0
        %v419 = vadd.f32 0.0, %v418
        %v420 = vpop.f32.mrb[0].mxu0
        %421 = vmatprep.mubr.f32.mxu0 0.0
        %422 = vmatmul.mubr.f32.gmra.mrb[0].mxu0 %v340
        %v423 = vpop.f32.mrb[0].mxu0
        %v424 = vadd.f32 0.0, %v423
        %v425 = vpop.f32.mrb[0].mxu0
        %426 = vdwg.mxu0
        %427 = vst [vmem:[%s276] sm:$0xff] %v409
        %428 = vst [vmem:[%s276 + $0x8] sm:$0xff] %v414
        %429 = vst [vmem:[%s276 + $0x10] sm:$0xff] %v419
        %430 = vst [vmem:[%s276 + $0x18] sm:$0xff] %v424
        %431 = vadd.xlane.f32.xlu0 %v409
        %v432 = vpop.xlane.xlu0 %431
        %433 = vadd.xlane.f32.xlu0 %v414
        %v434 = vpop.xlane.xlu0 %433
        %435 = vadd.xlane.f32.xlu0 %v419
        %v436 = vpop.xlane.xlu0 %435
        %437 = vadd.xlane.f32.xlu0 %v424
        %v438 = vpop.xlane.xlu0 %437
        %vm439 = vcmask 7168
        %440 = vst.msk [vmem:[%s307] sm:$0xff] %vm439, %v432
        %441 = vst.msk [vmem:[%s307 + $0x8] sm:$0xff] %vm439, %v434
        %442 = vst.msk [vmem:[%s307 + $0x10] sm:$0xff] %vm439, %v436
        %443 = vst.msk [vmem:[%s307 + $0x18] sm:$0xff] %vm439, %v438
        %v444 = vmul.f32 %v409, %v409
        %v445 = vmul.f32 %v414, %v414
        %v446 = vmul.f32 %v419, %v419
        %v447 = vmul.f32 %v424, %v424
        %448 = vadd.xlane.f32.xlu0 %v444
        %v449 = vpop.xlane.xlu0 %448
        %450 = vadd.xlane.f32.xlu0 %v445
        %v451 = vpop.xlane.xlu0 %450
        %452 = vadd.xlane.f32.xlu0 %v446
        %v453 = vpop.xlane.xlu0 %452
        %454 = vadd.xlane.f32.xlu0 %v447
        %v455 = vpop.xlane.xlu0 %454
        %456 = vst.msk [vmem:[%s316] sm:$0xff] %vm439, %v449
        %457 = vst.msk [vmem:[%s316 + $0x8] sm:$0xff] %vm439, %v451
        %458 = vst.msk [vmem:[%s316 + $0x10] sm:$0xff] %vm439, %v453
        %459 = vst.msk [vmem:[%s316 + $0x18] sm:$0xff] %vm439, %v455
        %s460 = sand.u32 %s87, 1
        %s461 = sand.u32 %s87, 1
        %s462 = smul.addr %s461, 32
        %s463 = scalar_lea.vmem [#allocation3], %s462
        %p464 = scmp.lt.s32.totalorder %s20, 1
        %s465 = scalar_select %p464, %s20, 1
        %p466 = scmp.lt.s32.totalorder %s21, 1
        %s467 = scalar_select %p466, %s21, 1
        %s468 = smul.addr %s467, 4
        %s469 = smul.addr %s465, 8
        %s470 = sadd.s32 %s468, %s469
        %s471 = smul.addr %s470, 8
        %s472 = scalar_lea.vmem %s3, %s471
        %p473 = scmp.lt.s32.totalorder %s20, 1
        %s474 = scalar_select %p473, %s20, 1
        %p475 = scmp.lt.s32.totalorder %s21, 1
        %s476 = scalar_select %p475, %s21, 1
        %s477 = smul.addr %s476, 4
        %s478 = smul.addr %s474, 8
        %s479 = sadd.s32 %s477, %s478
        %s480 = smul.addr %s479, 8
        %s481 = scalar_lea.vmem %s4, %s480
        // Predicated region
        $region67: #{darknet_block.3} parent=61 // pred_check
          %p482 = pneg %p97
        $region68: #{darknet_block.3} parent=61 // pred_check_branch
          %484 = sbr.rel (%p482) target = $region70
        $region69: #{darknet_block.3} parent=61 // pred_region
          %s485 = smul.addr %s20, 8
          %s486 = sadd.s32 %s21, %s485
          %s487 = smul.addr %s486, 8
          %s488 = scalar_lea.vmem %s2, %s487
          // Predicated region
          $region71: #{darknet_block.3} parent=69 // pred_check
            _
          $region72: #{darknet_block.3} parent=69 // pred_check_branch
            %490 = sbr.rel (0) target = $region74
          $region73: #{darknet_block.3} parent=69 // pred_region
            // Predicated region
            $region75: #{darknet_block.3} parent=73 // pred_check
              _
            $region76: #{darknet_block.3} parent=73 // pred_check_branch
              %492 = sbr.rel (0) target = $region78
            $region77: #{darknet_block.3} parent=73 // pred_region
              // Predicated region
              $region90: #{darknet_block.3} parent=77 // pred_check
                _
              $region91: #{darknet_block.3} parent=77 // pred_check_branch
                %513 = sbr.rel (0) target = $region93
              $region92: #{darknet_block.3} parent=77 // pred_region
                loop: start=0, step=1, limit=1
                $region94: #{darknet_block.3} parent=92 // loop_pre_header
                  _
                $region95: #{darknet_block.3} parent=92 // loop_header
                  %s515 = sphi 0, %s519
                  %p516 = scmp.ge.s32.totalorder %s515, 1
                  %s520 = sphi %s463, %s463
                  %s521 = sphi %s488, %s488
                $region96: #{darknet_block.3} parent=92 // loop_header_branch
                  %518 = sbr.rel (%p516) target = $region100
                $region97: #{darknet_block.3} parent=92 // loop_body
                  %v522 = vld [vmem:[%s520] sm:$0xff]
                  %523 = vst [vmem:[%s521] sm:$0xff] %v522
                  %v524 = vld [vmem:[%s520 + $0x8] sm:$0xff]
                  %525 = vst [vmem:[%s521 + $0x10] sm:$0xff] %v524
                  %v526 = vld [vmem:[%s520 + $0x10] sm:$0xff]
                  %527 = vst [vmem:[%s521 + $0x20] sm:$0xff] %v526
                  %v528 = vld [vmem:[%s520 + $0x18] sm:$0xff]
                  %529 = vst [vmem:[%s521 + $0x30] sm:$0xff] %v528
                $region98: #{darknet_block.3} parent=92 // loop_footer
                  %s519 = sadd.s32 1, %s515
                $region99: #{darknet_block.3} parent=92 // loop_footer_branch
                  %514 = sbr.rel target = $region95
                $region100: #{darknet_block.3} parent=92 // loop_exit
                  _
              $region93: #{darknet_block.3} parent=77 // pred_fallthru
                _
              // Predicated region
              $region101: #{darknet_block.3} parent=77 // pred_check
                _
              $region102: #{darknet_block.3} parent=77 // pred_check_branch
                %531 = sbr.rel target = $region104
              $region103: #{darknet_block.3} parent=77 // pred_region
                _
              $region104: #{darknet_block.3} parent=77 // pred_fallthru
                _
            $region78: #{darknet_block.3} parent=73 // pred_fallthru
              _
            // Predicated region
            $region79: #{darknet_block.3} parent=73 // pred_check
              _
            $region80: #{darknet_block.3} parent=73 // pred_check_branch
              %494 = sbr.rel target = $region82
            $region81: #{darknet_block.3} parent=73 // pred_region
              loop: start=0, step=1, limit=1
              $region83: #{darknet_block.3} parent=81 // loop_pre_header
                _
              $region84: #{darknet_block.3} parent=81 // loop_header
                %s497 = sphi 0, %s501
                %p498 = scmp.ge.s32.totalorder %s497, 1
                %s502 = sphi %s463, %s463
                %s503 = sphi %s488, %s488
              $region85: #{darknet_block.3} parent=81 // loop_header_branch
                %500 = sbr.rel (%p498) target = $region89
              $region86: #{darknet_block.3} parent=81 // loop_body
                %v504 = vld [vmem:[%s502] sm:$0xff]
                %505 = vst [vmem:[%s503] sm:$0xff] %v504
                %v506 = vld [vmem:[%s502 + $0x8] sm:$0xff]
                %507 = vst [vmem:[%s503 + $0x10] sm:$0xff] %v506
                %v508 = vld [vmem:[%s502 + $0x10] sm:$0xff]
                %509 = vst [vmem:[%s503 + $0x20] sm:$0xff] %v508
                %v510 = vld [vmem:[%s502 + $0x18] sm:$0xff]
                %511 = vst [vmem:[%s503 + $0x30] sm:$0xff] %v510
              $region87: #{darknet_block.3} parent=81 // loop_footer
                %s501 = sadd.s32 1, %s497
              $region88: #{darknet_block.3} parent=81 // loop_footer_branch
                %496 = sbr.rel target = $region84
              $region89: #{darknet_block.3} parent=81 // loop_exit
                _
            $region82: #{darknet_block.3} parent=73 // pred_fallthru
              _
          $region74: #{darknet_block.3} parent=69 // pred_fallthru
            _
          %532 = vnop
        $region70: #{darknet_block.3} parent=61 // pred_fallthru
          _
        // Predicated region
        $region105: #{darknet_block.3} parent=61 // pred_check
          %p533 = pneg %p125
        $region106: #{darknet_block.3} parent=61 // pred_check_branch
          %535 = sbr.rel (%p533) target = $region108
        $region107: #{darknet_block.3} parent=61 // pred_region
          _
        $region108: #{darknet_block.3} parent=61 // pred_fallthru
          _
        // Predicated region
        $region109: #{darknet_block.3} parent=61 // pred_check
          %p536 = pneg %p153
        $region110: #{darknet_block.3} parent=61 // pred_check_branch
          %538 = sbr.rel (%p536) target = $region112
        $region111: #{darknet_block.3} parent=61 // pred_region
          _
        $region112: #{darknet_block.3} parent=61 // pred_fallthru
          _
      $region62: #{darknet_block.3} parent=5 // pred_fallthru
        _
      %p539 = scmp.le.s32.totalorder 2, %s11
      // Predicated region
      $region113: #{darknet_block.3} parent=5 // pred_check
        %p540 = pneg %p539
      $region114: #{darknet_block.3} parent=5 // pred_check_branch
        %542 = sbr.rel (%p540) target = $region116
      $region115: #{darknet_block.3} parent=5 // pred_region
        %s543 = ssub.s32 %s11, 2
        // Predicated region
        $region117: #{darknet_block.3} parent=115 // pred_check
          %p544 = pneg %p103
        $region118: #{darknet_block.3} parent=115 // pred_check_branch
          %546 = sbr.rel (%p544) target = $region120
        $region119: #{darknet_block.3} parent=115 // pred_region
          %s547 = sand.u32 %s88, 1
          %s548 = sand.u32 %s88, 1
          %s549 = smul.addr %s548, 32
          %s550 = scalar_lea.vmem [#allocation3], %s549
        $region120: #{darknet_block.3} parent=115 // pred_fallthru
          _
        // Predicated region
        $region121: #{darknet_block.3} parent=115 // pred_check
          %p551 = pneg %p131
        $region122: #{darknet_block.3} parent=115 // pred_check_branch
          %553 = sbr.rel (%p551) target = $region124
        $region123: #{darknet_block.3} parent=115 // pred_region
          %p554 = scmp.lt.s32.totalorder %s22, 1
          %s555 = scalar_select %p554, %s22, 1
          %p556 = scmp.lt.s32.totalorder %s23, 1
          %s557 = scalar_select %p556, %s23, 1
          %s558 = smul.addr %s557, 4
          %s559 = smul.addr %s555, 8
          %s560 = sadd.s32 %s558, %s559
          %s561 = smul.addr %s560, 8
          %s562 = scalar_lea.vmem %s3, %s561
        $region124: #{darknet_block.3} parent=115 // pred_fallthru
          _
        // Predicated region
        $region125: #{darknet_block.3} parent=115 // pred_check
          %p563 = pneg %p159
        $region126: #{darknet_block.3} parent=115 // pred_check_branch
          %565 = sbr.rel (%p563) target = $region128
        $region127: #{darknet_block.3} parent=115 // pred_region
          %p566 = scmp.lt.s32.totalorder %s22, 1
          %s567 = scalar_select %p566, %s22, 1
          %p568 = scmp.lt.s32.totalorder %s23, 1
          %s569 = scalar_select %p568, %s23, 1
          %s570 = smul.addr %s569, 4
          %s571 = smul.addr %s567, 8
          %s572 = sadd.s32 %s570, %s571
          %s573 = smul.addr %s572, 8
          %s574 = scalar_lea.vmem %s4, %s573
        $region128: #{darknet_block.3} parent=115 // pred_fallthru
          _
      $region116: #{darknet_block.3} parent=5 // pred_fallthru
        _
    $region6: #{darknet_block.3} parent=1 // loop_footer
      %s15 = sadd.s32 1, %s11
    $region7: #{darknet_block.3} parent=1 // loop_footer_branch
      %10 = sbr.rel target = $region3
    $region8: #{darknet_block.3} parent=1 // loop_exit
      _

// kernel: darknet_block.5
$region0: #{darknet_block.5}
  #allocation0 [shape = 'u32[]', space=smem, size = 0x4, offset = 0x4, fixed_abs, tag = 'smem constant byte address 0x4 - core index']
  #allocation1 [shape = 'u32[144,128]{1,0:T(1,128)}', space=vmem, size = 0x12000, scoped, tag = 'internal scratch']
  %s0 = inlined_call_operand.vmem [shape: f32[2,64,256], index: 0, kind: input, shape index: {}]
  %s1 = inlined_call_operand.vmem [shape: f32[2,64,256], index: 1, kind: input, shape index: {}]
  %s2 = inlined_call_operand.vmem [shape: f32[64,1], index: 2, kind: input, shape index: {}]
  %s3 = inlined_call_operand.vmem [shape: f32[64,1], index: 3, kind: input, shape index: {}]
  %s4 = inlined_call_operand.vmem [shape: f32[2,64,256], index: 4, kind: output, shape index: {}]
  %s5 = sld [smem:[#allocation0]]
  $region159: #{darknet_block.5} parent=0
    _
  %s7 = ssub.s32 1, %s5
  %s8 = scalar_select 0, %s7, %s5
  $region1: #{darknet_block.5} parent=0
    #allocation2 [shape = 'u8[65536]{0}', space=vmem, size = 0x10000, scoped, tag = 'input window, operand 0']
    #allocation3 [shape = 'u8[65536]{0}', space=vmem, size = 0x10000, scoped, tag = 'input window, operand 1']
    #allocation4 [shape = 'u8[65536]{0}', space=vmem, size = 0x10000, scoped, tag = 'output window, operand 0']
    loop: start=0, step=1, limit=6
    $region2: #{darknet_block.5} parent=1 // loop_pre_header
      _
    $region3: #{darknet_block.5} parent=1 // loop_header
      %s10 = sphi 0, %s14
      %p11 = scmp.ge.s32.totalorder %s10, 6
      %s17 = sphi 0, %s29
      %s18 = sphi 0, %s25
      %s19 = sphi 0, %s17
      %s20 = sphi 0, %s18
      %s21 = sphi 0, %s19
      %s22 = sphi 0, %s20
      %s34 = sphi 0, %s36
      %s37 = sphi 0, %s34
      %s38 = sphi 0, %s37
      %s54 = sphi 0, %s38
      %s62 = sphi 0, %s64
      %s65 = sphi 0, %s62
      %s66 = sphi 0, %s65
      %s82 = sphi 0, %s66
      %s86 = sphi 0, %s86
      %s88 = sphi 0, %s86
      %s89 = sphi 0, %s88
      %s103 = sphi 0, %s89
      %s107 = sphi 0, %s107
      %s109 = sphi 0, %s107
      %s110 = sphi 0, %s109
      %s124 = sphi 0, %s110
      %s132 = sphi 0, %s134
      %s135 = sphi 0, %s132
      %s136 = sphi 0, %s135
      %s152 = sphi 0, %s136
    $region4: #{darknet_block.5} parent=1 // loop_header_branch
      %13 = sbr.rel (%p11) target = $region8
    $region5: #{darknet_block.5} parent=1 // loop_body
      %s15 = ssub.s32 %s10, 1
      %s16 = ssub.s32 %s10, 2
      %s23 = sadd.s32 1, %s18
      %p24 = scmp.ge.s32.totalorder %s23, 2
      %s25 = scalar_select %p24, 0, %s23
      %s26 = sadd.s32 1, %s17
      %s27 = scalar_select %p24, %s26, %s17
      %p28 = scmp.ge.s32.totalorder %s27, 2
      %s29 = scalar_select %p28, 0, %s27
      %s30 = ssub.s32 %s17, %s29
      %s31 = ssub.s32 %s18, %s25
      %s32 = sor.u32 %s30, %s31
      %p33 = scmp.eq.s32.totalorder %s32, 0
      %s35 = sadd.s32 %s34, 1
      %s36 = scalar_select %p33, %s34, %s35
      %p39 = pneg %p33
      %p40 = scmp.eq.s32.totalorder %s10, 3
      %p41 = por %p39, %p40
      %p42 = scmp.ne.s32.totalorder %s34, %s37
      %p43 = scmp.eq.s32.totalorder %s10, 0
      %p44 = por %p42, %p43
      %p45 = scmp.ne.s32.totalorder %s34, %s37
      %p46 = scmp.eq.s32.totalorder %s15, 3
      %p47 = por %p45, %p46
      %p48 = scmp.ne.s32.totalorder %s37, %s38
      %p49 = scmp.eq.s32.totalorder %s15, 0
      %p50 = por %p48, %p49
      %p51 = scmp.ne.s32.totalorder %s37, %s38
      %p52 = scmp.eq.s32.totalorder %s16, 3
      %p53 = por %p51, %p52
      %p55 = scmp.ne.s32.totalorder %s38, %s54
      %p56 = scmp.eq.s32.totalorder %s16, 0
      %p57 = por %p55, %p56
      %s58 = ssub.s32 %s17, %s29
      %s59 = ssub.s32 %s18, %s25
      %s60 = sor.u32 %s58, %s59
      %p61 = scmp.eq.s32.totalorder %s60, 0
      %s63 = sadd.s32 %s62, 1
      %s64 = scalar_select %p61, %s62, %s63
      %p67 = pneg %p61
      %p68 = scmp.eq.s32.totalorder %s10, 3
      %p69 = por %p67, %p68
      %p70 = scmp.ne.s32.totalorder %s62, %s65
      %p71 = scmp.eq.s32.totalorder %s10, 0
      %p72 = por %p70, %p71
      %p73 = scmp.ne.s32.totalorder %s62, %s65
      %p74 = scmp.eq.s32.totalorder %s15, 3
      %p75 = por %p73, %p74
      %p76 = scmp.ne.s32.totalorder %s65, %s66
      %p77 = scmp.eq.s32.totalorder %s15, 0
      %p78 = por %p76, %p77
      %p79 = scmp.ne.s32.totalorder %s65, %s66
      %p80 = scmp.eq.s32.totalorder %s16, 3
      %p81 = por %p79, %p80
      %p83 = scmp.ne.s32.totalorder %s66, %s82
      %p84 = scmp.eq.s32.totalorder %s16, 0
      %p85 = por %p83, %p84
      %s87 = sadd.s32 %s86, 1
      %p90 = scmp.eq.s32.totalorder %s10, 3
      %p91 = scmp.ne.s32.totalorder %s86, %s88
      %p92 = scmp.eq.s32.totalorder %s10, 0
      %p93 = por %p91, %p92
      %p94 = scmp.ne.s32.totalorder %s86, %s88
      %p95 = scmp.eq.s32.totalorder %s15, 3
      %p96 = por %p94, %p95
      %p97 = scmp.ne.s32.totalorder %s88, %s89
      %p98 = scmp.eq.s32.totalorder %s15, 0
      %p99 = por %p97, %p98
      %p100 = scmp.ne.s32.totalorder %s88, %s89
      %p101 = scmp.eq.s32.totalorder %s16, 3
      %p102 = por %p100, %p101
      %p104 = scmp.ne.s32.totalorder %s89, %s103
      %p105 = scmp.eq.s32.totalorder %s16, 0
      %p106 = por %p104, %p105
      %s108 = sadd.s32 %s107, 1
      %p111 = scmp.eq.s32.totalorder %s10, 3
      %p112 = scmp.ne.s32.totalorder %s107, %s109
      %p113 = scmp.eq.s32.totalorder %s10, 0
      %p114 = por %p112, %p113
      %p115 = scmp.ne.s32.totalorder %s107, %s109
      %p116 = scmp.eq.s32.totalorder %s15, 3
      %p117 = por %p115, %p116
      %p118 = scmp.ne.s32.totalorder %s109, %s110
      %p119 = scmp.eq.s32.totalorder %s15, 0
      %p120 = por %p118, %p119
      %p121 = scmp.ne.s32.totalorder %s109, %s110
      %p122 = scmp.eq.s32.totalorder %s16, 3
      %p123 = por %p121, %p122
      %p125 = scmp.ne.s32.totalorder %s110, %s124
      %p126 = scmp.eq.s32.totalorder %s16, 0
      %p127 = por %p125, %p126
      %s128 = ssub.s32 %s17, %s29
      %s129 = ssub.s32 %s18, %s25
      %s130 = sor.u32 %s128, %s129
      %p131 = scmp.eq.s32.totalorder %s130, 0
      %s133 = sadd.s32 %s132, 1
      %s134 = scalar_select %p131, %s132, %s133
      %p137 = pneg %p131
      %p138 = scmp.eq.s32.totalorder %s10, 3
      %p139 = por %p137, %p138
      %p140 = scmp.ne.s32.totalorder %s132, %s135
      %p141 = scmp.eq.s32.totalorder %s10, 0
      %p142 = por %p140, %p141
      %p143 = scmp.ne.s32.totalorder %s132, %s135
      %p144 = scmp.eq.s32.totalorder %s15, 3
      %p145 = por %p143, %p144
      %p146 = scmp.ne.s32.totalorder %s135, %s136
      %p147 = scmp.eq.s32.totalorder %s15, 0
      %p148 = por %p146, %p147
      %p149 = scmp.ne.s32.totalorder %s135, %s136
      %p150 = scmp.eq.s32.totalorder %s16, 3
      %p151 = por %p149, %p150
      %p153 = scmp.ne.s32.totalorder %s136, %s152
      %p154 = scmp.eq.s32.totalorder %s16, 0
      %p155 = por %p153, %p154
      %p156 = scmp.le.s32.totalorder 1, %s10
      %p157 = scmp.lt.s32.totalorder %s10, 5
      %p158 = pnand %p156, %p157
      %p159 = pneg %p158
      // Predicated region
      $region9: #{darknet_block.5} parent=5 // pred_check
        _
      $region10: #{darknet_block.5} parent=5 // pred_check_branch
        %161 = sbr.rel (%p158) target = $region12
      $region11: #{darknet_block.5} parent=5 // pred_region
        %s162 = ssub.s32 %s10, 1
        // Predicated region
        $region13: #{darknet_block.5} parent=11 // pred_check
          %p163 = pneg %p99
        $region14: #{darknet_block.5} parent=11 // pred_check_branch
          %165 = sbr.rel (%p163) target = $region16
        $region15: #{darknet_block.5} parent=11 // pred_region
          _
        $region16: #{darknet_block.5} parent=11 // pred_fallthru
          _
        // Predicated region
        $region17: #{darknet_block.5} parent=11 // pred_check
          %p166 = pneg %p120
        $region18: #{darknet_block.5} parent=11 // pred_check_branch
          %168 = sbr.rel (%p166) target = $region20
        $region19: #{darknet_block.5} parent=11 // pred_region
          _
        $region20: #{darknet_block.5} parent=11 // pred_fallthru
          _
      $region12: #{darknet_block.5} parent=5 // pred_fallthru
        _
      %p169 = scmp.lt.s32.totalorder %s10, 4
      // Predicated region
      $region21: #{darknet_block.5} parent=5 // pred_check
        %p170 = pneg %p169
      $region22: #{darknet_block.5} parent=5 // pred_check_branch
        %172 = sbr.rel (%p170) target = $region24
      $region23: #{darknet_block.5} parent=5 // pred_region
        // Predicated region
        $region25: #{darknet_block.5} parent=23 // pred_check
          %p173 = pneg %p44
        $region26: #{darknet_block.5} parent=23 // pred_check_branch
          %175 = sbr.rel (%p173) target = $region28
        $region27: #{darknet_block.5} parent=23 // pred_region
          %s176 = sand.u32 %s34, 1
          %s177 = sand.u32 %s34, 1
          %s178 = smul.addr %s177, 64
          %s179 = scalar_lea.vmem [#allocation2], %s178
          %s180 = smul.addr %s17, 16
          %s181 = sadd.s32 %s18, %s180
          %s182 = smul.addr %s181, 8
          %s183 = scalar_lea.vmem %s0, %s182
          // Predicated region
          $region29: #{darknet_block.5} parent=27 // pred_check
            _
          $region30: #{darknet_block.5} parent=27 // pred_check_branch
            %185 = sbr.rel (0) target = $region32
          $region31: #{darknet_block.5} parent=27 // pred_region
            // Predicated region
            $region33: #{darknet_block.5} parent=31 // pred_check
              _
            $region34: #{darknet_block.5} parent=31 // pred_check_branch
              %187 = sbr.rel (0) target = $region36
            $region35: #{darknet_block.5} parent=31 // pred_region
              // Predicated region
              $region48: #{darknet_block.5} parent=35 // pred_check
                _
              $region49: #{darknet_block.5} parent=35 // pred_check_branch
                %216 = sbr.rel (0) target = $region51
              $region50: #{darknet_block.5} parent=35 // pred_region
                loop: start=0, step=1, limit=1
                $region52: #{darknet_block.5} parent=50 // loop_pre_header
                  _
                $region53: #{darknet_block.5} parent=50 // loop_header
                  %s218 = sphi 0, %s222
                  %p219 = scmp.ge.s32.totalorder %s218, 1
                  %s223 = sphi %s183, %s183
                  %s224 = sphi %s179, %s179
                $region54: #{darknet_block.5} parent=50 // loop_header_branch
                  %221 = sbr.rel (%p219) target = $region58
                $region55: #{darknet_block.5} parent=50 // loop_body
                  %v225 = vld [vmem:[%s223] sm:$0xff]
                  %226 = vst [vmem:[%s224] sm:$0xff] %v225
                  %v227 = vld [vmem:[%s223 + $0x10] sm:$0xff]
                  %228 = vst [vmem:[%s224 + $0x8] sm:$0xff] %v227
                  %v229 = vld [vmem:[%s223 + $0x20] sm:$0xff]
                  %230 = vst [vmem:[%s224 + $0x10] sm:$0xff] %v229
                  %v231 = vld [vmem:[%s223 + $0x30] sm:$0xff]
                  %232 = vst [vmem:[%s224 + $0x18] sm:$0xff] %v231
                  %v233 = vld [vmem:[%s223 + $0x40] sm:$0xff]
                  %234 = vst [vmem:[%s224 + $0x20] sm:$0xff] %v233
                  %v235 = vld [vmem:[%s223 + $0x50] sm:$0xff]
                  %236 = vst [vmem:[%s224 + $0x28] sm:$0xff] %v235
                  %v237 = vld [vmem:[%s223 + $0x60] sm:$0xff]
                  %238 = vst [vmem:[%s224 + $0x30] sm:$0xff] %v237
                  %v239 = vld [vmem:[%s223 + $0x70] sm:$0xff]
                  %240 = vst [vmem:[%s224 + $0x38] sm:$0xff] %v239
                $region56: #{darknet_block.5} parent=50 // loop_footer
                  %s222 = sadd.s32 1, %s218
                $region57: #{darknet_block.5} parent=50 // loop_footer_branch
                  %217 = sbr.rel target = $region53
                $region58: #{darknet_block.5} parent=50 // loop_exit
                  _
              $region51: #{darknet_block.5} parent=35 // pred_fallthru
                _
              // Predicated region
              $region59: #{darknet_block.5} parent=35 // pred_check
                _
              $region60: #{darknet_block.5} parent=35 // pred_check_branch
                %242 = sbr.rel target = $region62
              $region61: #{darknet_block.5} parent=35 // pred_region
                _
              $region62: #{darknet_block.5} parent=35 // pred_fallthru
                _
            $region36: #{darknet_block.5} parent=31 // pred_fallthru
              _
            // Predicated region
            $region37: #{darknet_block.5} parent=31 // pred_check
              _
            $region38: #{darknet_block.5} parent=31 // pred_check_branch
              %189 = sbr.rel target = $region40
            $region39: #{darknet_block.5} parent=31 // pred_region
              loop: start=0, step=1, limit=1
              $region41: #{darknet_block.5} parent=39 // loop_pre_header
                _
              $region42: #{darknet_block.5} parent=39 // loop_header
                %s192 = sphi 0, %s196
                %p193 = scmp.ge.s32.totalorder %s192, 1
                %s197 = sphi %s183, %s183
                %s198 = sphi %s179, %s179
              $region43: #{darknet_block.5} parent=39 // loop_header_branch
                %195 = sbr.rel (%p193) target = $region47
              $region44: #{darknet_block.5} parent=39 // loop_body
                %v199 = vld [vmem:[%s197] sm:$0xff]
                %200 = vst [vmem:[%s198] sm:$0xff] %v199
                %v201 = vld [vmem:[%s197 + $0x10] sm:$0xff]
                %202 = vst [vmem:[%s198 + $0x8] sm:$0xff] %v201
                %v203 = vld [vmem:[%s197 + $0x20] sm:$0xff]
                %204 = vst [vmem:[%s198 + $0x10] sm:$0xff] %v203
                %v205 = vld [vmem:[%s197 + $0x30] sm:$0xff]
                %206 = vst [vmem:[%s198 + $0x18] sm:$0xff] %v205
                %v207 = vld [vmem:[%s197 + $0x40] sm:$0xff]
                %208 = vst [vmem:[%s198 + $0x20] sm:$0xff] %v207
                %v209 = vld [vmem:[%s197 + $0x50] sm:$0xff]
                %210 = vst [vmem:[%s198 + $0x28] sm:$0xff] %v209
                %v211 = vld [vmem:[%s197 + $0x60] sm:$0xff]
                %212 = vst [vmem:[%s198 + $0x30] sm:$0xff] %v211
                %v213 = vld [vmem:[%s197 + $0x70] sm:$0xff]
                %214 = vst [vmem:[%s198 + $0x38] sm:$0xff] %v213
              $region45: #{darknet_block.5} parent=39 // loop_footer
                %s196 = sadd.s32 1, %s192
              $region46: #{darknet_block.5} parent=39 // loop_footer_branch
                %191 = sbr.rel target = $region42
              $region47: #{darknet_block.5} parent=39 // loop_exit
                _
            $region40: #{darknet_block.5} parent=31 // pred_fallthru
              _
          $region32: #{darknet_block.5} parent=27 // pred_fallthru
            _
          %243 = vnop
        $region28: #{darknet_block.5} parent=23 // pred_fallthru
          _
        // Predicated region
        $region63: #{darknet_block.5} parent=23 // pred_check
          %p244 = pneg %p72
        $region64: #{darknet_block.5} parent=23 // pred_check_branch
          %246 = sbr.rel (%p244) target = $region66
        $region65: #{darknet_block.5} parent=23 // pred_region
          %s247 = sand.u32 %s62, 1
          %s248 = sand.u32 %s62, 1
          %s249 = smul.addr %s248, 64
          %s250 = scalar_lea.vmem [#allocation3], %s249
          %s251 = smul.addr %s17, 16
          %s252 = sadd.s32 %s18, %s251
          %s253 = smul.addr %s252, 8
          %s254 = scalar_lea.vmem %s1, %s253
          // Predicated region
          $region67: #{darknet_block.5} parent=65 // pred_check
            _
          $region68: #{darknet_block.5} parent=65 // pred_check_branch
            %256 = sbr.rel (0) target = $region70
          $region69: #{darknet_block.5} parent=65 // pred_region
            // Predicated region
            $region71: #{darknet_block.5} parent=69 // pred_check
              _
            $region72: #{darknet_block.5} parent=69 // pred_check_branch
              %258 = sbr.rel (0) target = $region74
            $region73: #{darknet_block.5} parent=69 // pred_region
              // Predicated region
              $region86: #{darknet_block.5} parent=73 // pred_check
                _
              $region87: #{darknet_block.5} parent=73 // pred_check_branch
                %287 = sbr.rel (0) target = $region89
              $region88: #{darknet_block.5} parent=73 // pred_region
                loop: start=0, step=1, limit=1
                $region90: #{darknet_block.5} parent=88 // loop_pre_header
                  _
                $region91: #{darknet_block.5} parent=88 // loop_header
                  %s289 = sphi 0, %s293
                  %p290 = scmp.ge.s32.totalorder %s289, 1
                  %s294 = sphi %s254, %s254
                  %s295 = sphi %s250, %s250
                $region92: #{darknet_block.5} parent=88 // loop_header_branch
                  %292 = sbr.rel (%p290) target = $region96
                $region93: #{darknet_block.5} parent=88 // loop_body
                  %v296 = vld [vmem:[%s294] sm:$0xff]
                  %297 = vst [vmem:[%s295] sm:$0xff] %v296
                  %v298 = vld [vmem:[%s294 + $0x10] sm:$0xff]
                  %299 = vst [vmem:[%s295 + $0x8] sm:$0xff] %v298
                  %v300 = vld [vmem:[%s294 + $0x20] sm:$0xff]
                  %301 = vst [vmem:[%s295 + $0x10] sm:$0xff] %v300
                  %v302 = vld [vmem:[%s294 + $0x30] sm:$0xff]
                  %303 = vst [vmem:[%s295 + $0x18] sm:$0xff] %v302
                  %v304 = vld [vmem:[%s294 + $0x40] sm:$0xff]
                  %305 = vst [vmem:[%s295 + $0x20] sm:$0xff] %v304
                  %v306 = vld [vmem:[%s294 + $0x50] sm:$0xff]
                  %307 = vst [vmem:[%s295 + $0x28] sm:$0xff] %v306
                  %v308 = vld [vmem:[%s294 + $0x60] sm:$0xff]
                  %309 = vst [vmem:[%s295 + $0x30] sm:$0xff] %v308
                  %v310 = vld [vmem:[%s294 + $0x70] sm:$0xff]
                  %311 = vst [vmem:[%s295 + $0x38] sm:$0xff] %v310
                $region94: #{darknet_block.5} parent=88 // loop_footer
                  %s293 = sadd.s32 1, %s289
                $region95: #{darknet_block.5} parent=88 // loop_footer_branch
                  %288 = sbr.rel target = $region91
                $region96: #{darknet_block.5} parent=88 // loop_exit
                  _
              $region89: #{darknet_block.5} parent=73 // pred_fallthru
                _
              // Predicated region
              $region97: #{darknet_block.5} parent=73 // pred_check
                _
              $region98: #{darknet_block.5} parent=73 // pred_check_branch
                %313 = sbr.rel target = $region100
              $region99: #{darknet_block.5} parent=73 // pred_region
                _
              $region100: #{darknet_block.5} parent=73 // pred_fallthru
                _
            $region74: #{darknet_block.5} parent=69 // pred_fallthru
              _
            // Predicated region
            $region75: #{darknet_block.5} parent=69 // pred_check
              _
            $region76: #{darknet_block.5} parent=69 // pred_check_branch
              %260 = sbr.rel target = $region78
            $region77: #{darknet_block.5} parent=69 // pred_region
              loop: start=0, step=1, limit=1
              $region79: #{darknet_block.5} parent=77 // loop_pre_header
                _
              $region80: #{darknet_block.5} parent=77 // loop_header
                %s263 = sphi 0, %s267
                %p264 = scmp.ge.s32.totalorder %s263, 1
                %s268 = sphi %s254, %s254
                %s269 = sphi %s250, %s250
              $region81: #{darknet_block.5} parent=77 // loop_header_branch
                %266 = sbr.rel (%p264) target = $region85
              $region82: #{darknet_block.5} parent=77 // loop_body
                %v270 = vld [vmem:[%s268] sm:$0xff]
                %271 = vst [vmem:[%s269] sm:$0xff] %v270
                %v272 = vld [vmem:[%s268 + $0x10] sm:$0xff]
                %273 = vst [vmem:[%s269 + $0x8] sm:$0xff] %v272
                %v274 = vld [vmem:[%s268 + $0x20] sm:$0xff]
                %275 = vst [vmem:[%s269 + $0x10] sm:$0xff] %v274
                %v276 = vld [vmem:[%s268 + $0x30] sm:$0xff]
                %277 = vst [vmem:[%s269 + $0x18] sm:$0xff] %v276
                %v278 = vld [vmem:[%s268 + $0x40] sm:$0xff]
                %279 = vst [vmem:[%s269 + $0x20] sm:$0xff] %v278
                %v280 = vld [vmem:[%s268 + $0x50] sm:$0xff]
                %281 = vst [vmem:[%s269 + $0x28] sm:$0xff] %v280
                %v282 = vld [vmem:[%s268 + $0x60] sm:$0xff]
                %283 = vst [vmem:[%s269 + $0x30] sm:$0xff] %v282
                %v284 = vld [vmem:[%s268 + $0x70] sm:$0xff]
                %285 = vst [vmem:[%s269 + $0x38] sm:$0xff] %v284
              $region83: #{darknet_block.5} parent=77 // loop_footer
                %s267 = sadd.s32 1, %s263
              $region84: #{darknet_block.5} parent=77 // loop_footer_branch
                %262 = sbr.rel target = $region80
              $region85: #{darknet_block.5} parent=77 // loop_exit
                _
            $region78: #{darknet_block.5} parent=69 // pred_fallthru
              _
          $region70: #{darknet_block.5} parent=65 // pred_fallthru
            _
          %314 = vnop
        $region66: #{darknet_block.5} parent=23 // pred_fallthru
          _
      $region24: #{darknet_block.5} parent=5 // pred_fallthru
        _
      %p315 = scmp.le.s32.totalorder 1, %s10
      %p316 = scmp.lt.s32.totalorder %s10, 5
      %p317 = pnand %p315, %p316
      %p318 = pneg %p317
      // Predicated region
      $region101: #{darknet_block.5} parent=5 // pred_check
        _
      $region102: #{darknet_block.5} parent=5 // pred_check_branch
        %320 = sbr.rel (%p317) target = $region104
      $region103: #{darknet_block.5} parent=5 // pred_region
        %s321 = ssub.s32 %s10, 1
        %s322 = sand.u32 %s37, 1
        %s323 = sand.u32 %s37, 1
        %s324 = smul.addr %s323, 64
        %s325 = scalar_lea.vmem [#allocation2], %s324
        // Predicated region
        $region105: #{darknet_block.5} parent=103 // pred_check
          %p326 = pneg %p50
        $region106: #{darknet_block.5} parent=103 // pred_check_branch
          %328 = sbr.rel (%p326) target = $region108
        $region107: #{darknet_block.5} parent=103 // pred_region
          _
        $region108: #{darknet_block.5} parent=103 // pred_fallthru
          _
        %s329 = sand.u32 %s65, 1
        %s330 = sand.u32 %s65, 1
        %s331 = smul.addr %s330, 64
        %s332 = scalar_lea.vmem [#allocation3], %s331
        // Predicated region
        $region109: #{darknet_block.5} parent=103 // pred_check
          %p333 = pneg %p78
        $region110: #{darknet_block.5} parent=103 // pred_check_branch
          %335 = sbr.rel (%p333) target = $region112
        $region111: #{darknet_block.5} parent=103 // pred_region
          _
        $region112: #{darknet_block.5} parent=103 // pred_fallthru
          _
        %s336 = sand.u32 %s37, 1
        %s337 = sand.u32 %s37, 1
        %s338 = smul.addr %s337, 64
        %s339 = scalar_lea.vmem [#allocation2], %s338
        %p340 = pneg %p50
        %p341 = pneg %p47
        %s342 = sand.u32 %s65, 1
        %s343 = sand.u32 %s65, 1
        %s344 = smul.addr %s343, 64
        %s345 = scalar_lea.vmem [#allocation3], %s344
        %p346 = pneg %p78
        %p347 = pneg %p75
        %p348 = pneg %p99
        %p349 = pneg %p96
        %p350 = pneg %p120
        %p351 = pneg %p117
        %p352 = pneg %p148
        %p353 = pneg %p145
        %s354 = sand.u32 %s135, 1
        %s355 = sand.u32 %s135, 1
        %s356 = smul.addr %s355, 64
        %s357 = scalar_lea.vmem [#allocation4], %s356
        %v358 = vld [vmem:[%s325] sm:$0xff]
        %v359 = vld [vmem:[%s325 + $0x8] sm:$0xff]
        %v360 = vld [vmem:[%s325 + $0x10] sm:$0xff]
        %v361 = vld [vmem:[%s325 + $0x18] sm:$0xff]
        %v362 = vld [vmem:[%s325 + $0x20] sm:$0xff]
        %v363 = vld [vmem:[%s325 + $0x28] sm:$0xff]
        %v364 = vld [vmem:[%s325 + $0x30] sm:$0xff]
        %v365 = vld [vmem:[%s325 + $0x38] sm:$0xff]
        %v366 = vld [vmem:[%s2] sm:$0xff]
        %v367 = vld [vmem:[%s2 + $0x8] sm:$0xff]
        %v368 = vld [vmem:[%s2 + $0x10] sm:$0xff]
        %v369 = vld [vmem:[%s2 + $0x18] sm:$0xff]
        %v370 = vld [vmem:[%s2 + $0x20] sm:$0xff]
        %v371 = vld [vmem:[%s2 + $0x28] sm:$0xff]
        %v372 = vld [vmem:[%s2 + $0x30] sm:$0xff]
        %v373 = vld [vmem:[%s2 + $0x38] sm:$0xff]
        %375 = vset.pattern.permute.xlu0 0
        %376 = vperm.xlu0 %375, %v366
        %v377 = vpop.permute.xlu0 %376
        %380 = vset.pattern.permute.xlu0 0
        %381 = vperm.xlu0 %380, %v367
        %v382 = vpop.permute.xlu0 %381
        %385 = vset.pattern.permute.xlu0 0
        %386 = vperm.xlu0 %385, %v368
        %v387 = vpop.permute.xlu0 %386
        %390 = vset.pattern.permute.xlu0 0
        %391 = vperm.xlu0 %390, %v369
        %v392 = vpop.permute.xlu0 %391
        %395 = vset.pattern.permute.xlu0 0
        %396 = vperm.xlu0 %395, %v370
        %v397 = vpop.permute.xlu0 %396
        %400 = vset.pattern.permute.xlu0 0
        %401 = vperm.xlu0 %400, %v371
        %v402 = vpop.permute.xlu0 %401
        %405 = vset.pattern.permute.xlu0 0
        %406 = vperm.xlu0 %405, %v372
        %v407 = vpop.permute.xlu0 %406
        %410 = vset.pattern.permute.xlu0 0
        %411 = vperm.xlu0 %410, %v373
        %v412 = vpop.permute.xlu0 %411
        %v414 = vmul.f32 %v358, %v377
        %v415 = vmul.f32 %v359, %v382
        %v416 = vmul.f32 %v360, %v387
        %v417 = vmul.f32 %v361, %v392
        %v418 = vmul.f32 %v362, %v397
        %v419 = vmul.f32 %v363, %v402
        %v420 = vmul.f32 %v364, %v407
        %v421 = vmul.f32 %v365, %v412
        %v422 = vld [vmem:[%s3] sm:$0xff]
        %v423 = vld [vmem:[%s3 + $0x8] sm:$0xff]
        %v424 = vld [vmem:[%s3 + $0x10] sm:$0xff]
        %v425 = vld [vmem:[%s3 + $0x18] sm:$0xff]
        %v426 = vld [vmem:[%s3 + $0x20] sm:$0xff]
        %v427 = vld [vmem:[%s3 + $0x28] sm:$0xff]
        %v428 = vld [vmem:[%s3 + $0x30] sm:$0xff]
        %v429 = vld [vmem:[%s3 + $0x38] sm:$0xff]
        %431 = vset.pattern.permute.xlu0 0
        %432 = vperm.xlu0 %431, %v422
        %v433 = vpop.permute.xlu0 %432
        %436 = vset.pattern.permute.xlu0 0
        %437 = vperm.xlu0 %436, %v423
        %v438 = vpop.permute.xlu0 %437
        %441 = vset.pattern.permute.xlu0 0
        %442 = vperm.xlu0 %441, %v424
        %v443 = vpop.permute.xlu0 %442
        %446 = vset.pattern.permute.xlu0 0
        %447 = vperm.xlu0 %446, %v425
        %v448 = vpop.permute.xlu0 %447
        %451 = vset.pattern.permute.xlu0 0
        %452 = vperm.xlu0 %451, %v426
        %v453 = vpop.permute.xlu0 %452
        %456 = vset.pattern.permute.xlu0 0
        %457 = vperm.xlu0 %456, %v427
        %v458 = vpop.permute.xlu0 %457
        %461 = vset.pattern.permute.xlu0 0
        %462 = vperm.xlu0 %461, %v428
        %v463 = vpop.permute.xlu0 %462
        %466 = vset.pattern.permute.xlu0 0
        %467 = vperm.xlu0 %466, %v429
        %v468 = vpop.permute.xlu0 %467
        %v470 = vadd.f32 %v414, %v433
        %v471 = vadd.f32 %v415, %v438
        %v472 = vadd.f32 %v416, %v443
        %v473 = vadd.f32 %v417, %v448
        %v474 = vadd.f32 %v418, %v453
        %v475 = vadd.f32 %v419, %v458
        %v476 = vadd.f32 %v420, %v463
        %v477 = vadd.f32 %v421, %v468
        %vm478 = vcmp.gt.f32.partialorder %v470, 0.0
        %vm479 = vcmp.gt.f32.partialorder %v471, 0.0
        %vm480 = vcmp.gt.f32.partialorder %v472, 0.0
        %vm481 = vcmp.gt.f32.partialorder %v473, 0.0
        %vm482 = vcmp.gt.f32.partialorder %v474, 0.0
        %vm483 = vcmp.gt.f32.partialorder %v475, 0.0
        %vm484 = vcmp.gt.f32.partialorder %v476, 0.0
        %vm485 = vcmp.gt.f32.partialorder %v477, 0.0
        %v486 = vmul.f32 %v470, 0.1
        %v487 = vmul.f32 %v471, 0.1
        %v488 = vmul.f32 %v472, 0.1
        %v489 = vmul.f32 %v473, 0.1
        %v490 = vmul.f32 %v474, 0.1
        %v491 = vmul.f32 %v475, 0.1
        %v492 = vmul.f32 %v476, 0.1
        %v493 = vmul.f32 %v477, 0.1
        %v494 = vsel %vm478, %v470, %v486
        %v495 = vsel %vm479, %v471, %v487
        %v496 = vsel %vm480, %v472, %v488
        %v497 = vsel %vm481, %v473, %v489
        %v498 = vsel %vm482, %v474, %v490
        %v499 = vsel %vm483, %v475, %v491
        %v500 = vsel %vm484, %v476, %v492
        %v501 = vsel %vm485, %v477, %v493
        %v502 = vld [vmem:[%s332] sm:$0xff]
        %v503 = vld [vmem:[%s332 + $0x8] sm:$0xff]
        %v504 = vld [vmem:[%s332 + $0x10] sm:$0xff]
        %v505 = vld [vmem:[%s332 + $0x18] sm:$0xff]
        %v506 = vld [vmem:[%s332 + $0x20] sm:$0xff]
        %v507 = vld [vmem:[%s332 + $0x28] sm:$0xff]
        %v508 = vld [vmem:[%s332 + $0x30] sm:$0xff]
        %v509 = vld [vmem:[%s332 + $0x38] sm:$0xff]
        %v510 = vadd.f32 %v494, %v502
        %v511 = vadd.f32 %v495, %v503
        %v512 = vadd.f32 %v496, %v504
        %v513 = vadd.f32 %v497, %v505
        %v514 = vadd.f32 %v498, %v506
        %v515 = vadd.f32 %v499, %v507
        %v516 = vadd.f32 %v500, %v508
        %v517 = vadd.f32 %v501, %v509
        %518 = vst [vmem:[%s357] sm:$0xff] %v510
        %519 = vst [vmem:[%s357 + $0x8] sm:$0xff] %v511
        %520 = vst [vmem:[%s357 + $0x10] sm:$0xff] %v512
        %521 = vst [vmem:[%s357 + $0x18] sm:$0xff] %v513
        %522 = vst [vmem:[%s357 + $0x20] sm:$0xff] %v514
        %523 = vst [vmem:[%s357 + $0x28] sm:$0xff] %v515
        %524 = vst [vmem:[%s357 + $0x30] sm:$0xff] %v516
        %525 = vst [vmem:[%s357 + $0x38] sm:$0xff] %v517
        %s526 = sand.u32 %s135, 1
        %s527 = sand.u32 %s135, 1
        %s528 = smul.addr %s527, 64
        %s529 = scalar_lea.vmem [#allocation4], %s528
        // Predicated region
        $region113: #{darknet_block.5} parent=103 // pred_check
          %p530 = pneg %p145
        $region114: #{darknet_block.5} parent=103 // pred_check_branch
          %532 = sbr.rel (%p530) target = $region116
        $region115: #{darknet_block.5} parent=103 // pred_region
          %s533 = smul.addr %s19, 16
          %s534 = sadd.s32 %s20, %s533
          %s535 = smul.addr %s534, 8
          %s536 = scalar_lea.vmem %s4, %s535
          // Predicated region
          $region117: #{darknet_block.5} parent=115 // pred_check
            _
          $region118: #{darknet_block.5} parent=115 // pred_check_branch
            %538 = sbr.rel (0) target = $region120
          $region119: #{darknet_block.5} parent=115 // pred_region
            // Predicated region
            $region121: #{darknet_block.5} parent=119 // pred_check
              _
            $region122: #{darknet_block.5} parent=119 // pred_check_branch
              %540 = sbr.rel (0) target = $region124
            $region123: #{darknet_block.5} parent=119 // pred_region
              // Predicated region
              $region136: #{darknet_block.5} parent=123 // pred_check
                _
              $region137: #{darknet_block.5} parent=123 // pred_check_branch
                %569 = sbr.rel (0) target = $region139
              $region138: #{darknet_block.5} parent=123 // pred_region
                loop: start=0, step=1, limit=1
                $region140: #{darknet_block.5} parent=138 // loop_pre_header
                  _
                $region141: #{darknet_block.5} parent=138 // loop_header
                  %s571 = sphi 0, %s575
                  %p572 = scmp.ge.s32.totalorder %s571, 1
                  %s576 = sphi %s529, %s529
                  %s577 = sphi %s536, %s536
                $region142: #{darknet_block.5} parent=138 // loop_header_branch
                  %574 = sbr.rel (%p572) target = $region146
                $region143: #{darknet_block.5} parent=138 // loop_body
                  %v578 = vld [vmem:[%s576] sm:$0xff]
                  %579 = vst [vmem:[%s577] sm:$0xff] %v578
                  %v580 = vld [vmem:[%s576 + $0x8] sm:$0xff]
                  %581 = vst [vmem:[%s577 + $0x10] sm:$0xff] %v580
                  %v582 = vld [vmem:[%s576 + $0x10] sm:$0xff]
                  %583 = vst [vmem:[%s577 + $0x20] sm:$0xff] %v582
                  %v584 = vld [vmem:[%s576 + $0x18] sm:$0xff]
                  %585 = vst [vmem:[%s577 + $0x30] sm:$0xff] %v584
                  %v586 = vld [vmem:[%s576 + $0x20] sm:$0xff]
                  %587 = vst [vmem:[%s577 + $0x40] sm:$0xff] %v586
                  %v588 = vld [vmem:[%s576 + $0x28] sm:$0xff]
                  %589 = vst [vmem:[%s577 + $0x50] sm:$0xff] %v588
                  %v590 = vld [vmem:[%s576 + $0x30] sm:$0xff]
                  %591 = vst [vmem:[%s577 + $0x60] sm:$0xff] %v590
                  %v592 = vld [vmem:[%s576 + $0x38] sm:$0xff]
                  %593 = vst [vmem:[%s577 + $0x70] sm:$0xff] %v592
                $region144: #{darknet_block.5} parent=138 // loop_footer
                  %s575 = sadd.s32 1, %s571
                $region145: #{darknet_block.5} parent=138 // loop_footer_branch
                  %570 = sbr.rel target = $region141
                $region146: #{darknet_block.5} parent=138 // loop_exit
                  _
              $region139: #{darknet_block.5} parent=123 // pred_fallthru
                _
              // Predicated region
              $region147: #{darknet_block.5} parent=123 // pred_check
                _
              $region148: #{darknet_block.5} parent=123 // pred_check_branch
                %595 = sbr.rel target = $region150
              $region149: #{darknet_block.5} parent=123 // pred_region
                _
              $region150: #{darknet_block.5} parent=123 // pred_fallthru
                _
            $region124: #{darknet_block.5} parent=119 // pred_fallthru
              _
            // Predicated region
            $region125: #{darknet_block.5} parent=119 // pred_check
              _
            $region126: #{darknet_block.5} parent=119 // pred_check_branch
              %542 = sbr.rel target = $region128
            $region127: #{darknet_block.5} parent=119 // pred_region
              loop: start=0, step=1, limit=1
              $region129: #{darknet_block.5} parent=127 // loop_pre_header
                _
              $region130: #{darknet_block.5} parent=127 // loop_header
                %s545 = sphi 0, %s549
                %p546 = scmp.ge.s32.totalorder %s545, 1
                %s550 = sphi %s529, %s529
                %s551 = sphi %s536, %s536
              $region131: #{darknet_block.5} parent=127 // loop_header_branch
                %548 = sbr.rel (%p546) target = $region135
              $region132: #{darknet_block.5} parent=127 // loop_body
                %v552 = vld [vmem:[%s550] sm:$0xff]
                %553 = vst [vmem:[%s551] sm:$0xff] %v552
                %v554 = vld [vmem:[%s550 + $0x8] sm:$0xff]
                %555 = vst [vmem:[%s551 + $0x10] sm:$0xff] %v554
                %v556 = vld [vmem:[%s550 + $0x10] sm:$0xff]
                %557 = vst [vmem:[%s551 + $0x20] sm:$0xff] %v556
                %v558 = vld [vmem:[%s550 + $0x18] sm:$0xff]
                %559 = vst [vmem:[%s551 + $0x30] sm:$0xff] %v558
                %v560 = vld [vmem:[%s550 + $0x20] sm:$0xff]
                %561 = vst [vmem:[%s551 + $0x40] sm:$0xff] %v560
                %v562 = vld [vmem:[%s550 + $0x28] sm:$0xff]
                %563 = vst [vmem:[%s551 + $0x50] sm:$0xff] %v562
                %v564 = vld [vmem:[%s550 + $0x30] sm:$0xff]
                %565 = vst [vmem:[%s551 + $0x60] sm:$0xff] %v564
                %v566 = vld [vmem:[%s550 + $0x38] sm:$0xff]
                %567 = vst [vmem:[%s551 + $0x70] sm:$0xff] %v566
              $region133: #{darknet_block.5} parent=127 // loop_footer
                %s549 = sadd.s32 1, %s545
              $region134: #{darknet_block.5} parent=127 // loop_footer_branch
                %544 = sbr.rel target = $region130
              $region135: #{darknet_block.5} parent=127 // loop_exit
                _
            $region128: #{darknet_block.5} parent=119 // pred_fallthru
              _
          $region120: #{darknet_block.5} parent=115 // pred_fallthru
            _
          %596 = vnop
        $region116: #{darknet_block.5} parent=103 // pred_fallthru
          _
      $region104: #{darknet_block.5} parent=5 // pred_fallthru
        _
      %p597 = scmp.le.s32.totalorder 2, %s10
      // Predicated region
      $region151: #{darknet_block.5} parent=5 // pred_check
        %p598 = pneg %p597
      $region152: #{darknet_block.5} parent=5 // pred_check_branch
        %600 = sbr.rel (%p598) target = $region154
      $region153: #{darknet_block.5} parent=5 // pred_region
        %s601 = ssub.s32 %s10, 2
        // Predicated region
        $region155: #{darknet_block.5} parent=153 // pred_check
          %p602 = pneg %p151
        $region156: #{darknet_block.5} parent=153 // pred_check_branch
          %604 = sbr.rel (%p602) target = $region158
        $region157: #{darknet_block.5} parent=153 // pred_region
          %s605 = sand.u32 %s136, 1
          %s606 = sand.u32 %s136, 1
          %s607 = smul.addr %s606, 64
          %s608 = scalar_lea.vmem [#allocation4], %s607
        $region158: #{darknet_block.5} parent=153 // pred_fallthru
          _
      $region154: #{darknet_block.5} parent=5 // pred_fallthru
        _
    $region6: #{darknet_block.5} parent=1 // loop_footer
      %s14 = sadd.s32 1, %s10
    $region7: #{darknet_block.5} parent=1 // loop_footer_branch
      %9 = sbr.rel target = $region3
    $region8: #{darknet_block.5} parent=1 // loop_exit
      _

// kernel: darknet_block.4
$region0: #{darknet_block.4}
  #allocation0 [shape = 'u32[]', space=smem, size = 0x4, offset = 0x4, fixed_abs, tag = 'smem constant byte address 0x4 - core index']
  #allocation1 [shape = 'u32[144,128]{1,0:T(1,128)}', space=vmem, size = 0x12000, scoped, tag = 'internal scratch']
  #allocation2 [shape = 'f32[32,512]{1,0:T(8,128)}', space=vmem, size = 0x10000, scoped, tag = 'scratch operand']
  #allocation3 [shape = 'f32[288,256]{1,0:T(8,128)}', space=vmem, size = 0x48000, scoped, tag = 'scratch operand']
  %s0 = inlined_call_operand.vmem [shape: f32[2,32,256], index: 0, kind: input, shape index: {}]
  %s1 = inlined_call_operand.vmem [shape: f32[32,1], index: 1, kind: input, shape index: {}]
  %s2 = inlined_call_operand.vmem [shape: f32[32,1], index: 2, kind: input, shape index: {}]
  %s3 = inlined_call_operand.vmem [shape: f32[64,288], index: 3, kind: input, shape index: {}]
  %s4 = inlined_call_operand.vmem [shape: f32[2,64,256], index: 4, kind: output, shape index: {0}]
  %s5 = inlined_call_operand.vmem [shape: f32[2,64,1], index: 5, kind: output, shape index: {1}]
  %s6 = inlined_call_operand.vmem [shape: f32[2,64,1], index: 6, kind: output, shape index: {2}]
  %7 = xla_tuple %s4, %s5, %s6
  %s8 = sld [smem:[#allocation0]]
  $region65: #{darknet_block.4} parent=0
    _
  %s10 = ssub.s32 1, %s8
  %s11 = scalar_select 0, %s10, %s8
  loop: start=0, step=1, limit=4
  $region2: #{darknet_block.4} parent=0 // loop_pre_header
    _
  $region3: #{darknet_block.4} parent=0 // loop_header
    %s13 = sphi 0, %s17
    %p14 = scmp.ge.s32.totalorder %s13, 4
    %s23 = sphi 0, %s25
    %s26 = sphi 0, %s23
    %s27 = sphi 0, %s26
    %s43 = sphi 0, %s27
    %s47 = sphi 0, %s47
    %s49 = sphi 0, %s47
    %s50 = sphi 0, %s49
    %s64 = sphi 0, %s50
    %s68 = sphi 0, %s68
    %s70 = sphi 0, %s68
    %s71 = sphi 0, %s70
    %s85 = sphi 0, %s71
    %s89 = sphi 0, %s89
    %s91 = sphi 0, %s89
    %s92 = sphi 0, %s91
    %s106 = sphi 0, %s92
    %s112 = sphi 0, %s114
    %s115 = sphi 0, %s112
    %s116 = sphi 0, %s115
    %s132 = sphi 0, %s116
    %s138 = sphi 0, %s140
    %s141 = sphi 0, %s138
    %s142 = sphi 0, %s141
    %s158 = sphi 0, %s142
    %s164 = sphi 0, %s166
    %s167 = sphi 0, %s164
    %s168 = sphi 0, %s167
    %s184 = sphi 0, %s168
  $region4: #{darknet_block.4} parent=0 // loop_header_branch
    %16 = sbr.rel (%p14) target = $region8
  $region5: #{darknet_block.4} parent=0 // loop_body
    %s18 = ssub.s32 %s13, 1
    %s19 = ssub.s32 %s13, 2
    %s20 = sadd.s32 %s13, 1
    %s21 = ssub.s32 %s13, %s20
    %p22 = scmp.eq.s32.totalorder %s21, 0
    %s24 = sadd.s32 %s23, 1
    %s25 = scalar_select %p22, %s23, %s24
    %p28 = pneg %p22
    %p29 = scmp.eq.s32.totalorder %s13, 1
    %p30 = por %p28, %p29
    %p31 = scmp.ne.s32.totalorder %s23, %s26
    %p32 = scmp.eq.s32.totalorder %s13, 0
    %p33 = por %p31, %p32
    %p34 = scmp.ne.s32.totalorder %s23, %s26
    %p35 = scmp.eq.s32.totalorder %s18, 1
    %p36 = por %p34, %p35
    %p37 = scmp.ne.s32.totalorder %s26, %s27
    %p38 = scmp.eq.s32.totalorder %s18, 0
    %p39 = por %p37, %p38
    %p40 = scmp.ne.s32.totalorder %s26, %s27
    %p41 = scmp.eq.s32.totalorder %s19, 1
    %p42 = por %p40, %p41
    %p44 = scmp.ne.s32.totalorder %s27, %s43
    %p45 = scmp.eq.s32.totalorder %s19, 0
    %p46 = por %p44, %p45
    %s48 = sadd.s32 %s47, 1
    %p51 = scmp.eq.s32.totalorder %s13, 1
    %p52 = scmp.ne.s32.totalorder %s47, %s49
    %p53 = scmp.eq.s32.totalorder %s13, 0
    %p54 = por %p52, %p53
    %p55 = scmp.ne.s32.totalorder %s47, %s49
    %p56 = scmp.eq.s32.totalorder %s18, 1
    %p57 = por %p55, %p56
    %p58 = scmp.ne.s32.totalorder %s49, %s50
    %p59 = scmp.eq.s32.totalorder %s18, 0
    %p60 = por %p58, %p59
    %p61 = scmp.ne.s32.totalorder %s49, %s50
    %p62 = scmp.eq.s32.totalorder %s19, 1
    %p63 = por %p61, %p62
    %p65 = scmp.ne.s32.totalorder %s50, %s64
    %p66 = scmp.eq.s32.totalorder %s19, 0
    %p67 = por %p65, %p66
    %s69 = sadd.s32 %s68, 1
    %p72 = scmp.eq.s32.totalorder %s13, 1
    %p73 = scmp.ne.s32.totalorder %s68, %s70
    %p74 = scmp.eq.s32.totalorder %s13, 0
    %p75 = por %p73, %p74
    %p76 = scmp.ne.s32.totalorder %s68, %s70
    %p77 = scmp.eq.s32.totalorder %s18, 1
    %p78 = por %p76, %p77
    %p79 = scmp.ne.s32.totalorder %s70, %s71
    %p80 = scmp.eq.s32.totalorder %s18, 0
    %p81 = por %p79, %p80
    %p82 = scmp.ne.s32.totalorder %s70, %s71
    %p83 = scmp.eq.s32.totalorder %s19, 1
    %p84 = por %p82, %p83
    %p86 = scmp.ne.s32.totalorder %s71, %s85
    %p87 = scmp.eq.s32.totalorder %s19, 0
    %p88 = por %p86, %p87
    %s90 = sadd.s32 %s89, 1
    %p93 = scmp.eq.s32.totalorder %s13, 1
    %p94 = scmp.ne.s32.totalorder %s89, %s91
    %p95 = scmp.eq.s32.totalorder %s13, 0
    %p96 = por %p94, %p95
    %p97 = scmp.ne.s32.totalorder %s89, %s91
    %p98 = scmp.eq.s32.totalorder %s18, 1
    %p99 = por %p97, %p98
    %p100 = scmp.ne.s32.totalorder %s91, %s92
    %p101 = scmp.eq.s32.totalorder %s18, 0
    %p102 = por %p100, %p101
    %p103 = scmp.ne.s32.totalorder %s91, %s92
    %p104 = scmp.eq.s32.totalorder %s19, 1
    %p105 = por %p103, %p104
    %p107 = scmp.ne.s32.totalorder %s92, %s106
    %p108 = scmp.eq.s32.totalorder %s19, 0
    %p109 = por %p107, %p108
    %s110 = ssub.s32 %s13, %s20
    %p111 = scmp.eq.s32.totalorder %s110, 0
    %s113 = sadd.s32 %s112, 1
    %s114 = scalar_select %p111, %s112, %s113
    %p117 = pneg %p111
    %p118 = scmp.eq.s32.totalorder %s13, 1
    %p119 = por %p117, %p118
    %p120 = scmp.ne.s32.totalorder %s112, %s115
    %p121 = scmp.eq.s32.totalorder %s13, 0
    %p122 = por %p120, %p121
    %p123 = scmp.ne.s32.totalorder %s112, %s115
    %p124 = scmp.eq.s32.totalorder %s18, 1
    %p125 = por %p123, %p124
    %p126 = scmp.ne.s32.totalorder %s115, %s116
    %p127 = scmp.eq.s32.totalorder %s18, 0
    %p128 = por %p126, %p127
    %p129 = scmp.ne.s32.totalorder %s115, %s116
    %p130 = scmp.eq.s32.totalorder %s19, 1
    %p131 = por %p129, %p130
    %p133 = scmp.ne.s32.totalorder %s116, %s132
    %p134 = scmp.eq.s32.totalorder %s19, 0
    %p135 = por %p133, %p134
    %s136 = ssub.s32 %s13, %s20
    %p137 = scmp.eq.s32.totalorder %s136, 0
    %s139 = sadd.s32 %s138, 1
    %s140 = scalar_select %p137, %s138, %s139
    %p143 = pneg %p137
    %p144 = scmp.eq.s32.totalorder %s13, 1
    %p145 = por %p143, %p144
    %p146 = scmp.ne.s32.totalorder %s138, %s141
    %p147 = scmp.eq.s32.totalorder %s13, 0
    %p148 = por %p146, %p147
    %p149 = scmp.ne.s32.totalorder %s138, %s141
    %p150 = scmp.eq.s32.totalorder %s18, 1
    %p151 = por %p149, %p150
    %p152 = scmp.ne.s32.totalorder %s141, %s142
    %p153 = scmp.eq.s32.totalorder %s18, 0
    %p154 = por %p152, %p153
    %p155 = scmp.ne.s32.totalorder %s141, %s142
    %p156 = scmp.eq.s32.totalorder %s19, 1
    %p157 = por %p155, %p156
    %p159 = scmp.ne.s32.totalorder %s142, %s158
    %p160 = scmp.eq.s32.totalorder %s19, 0
    %p161 = por %p159, %p160
    %s162 = ssub.s32 %s13, %s20
    %p163 = scmp.eq.s32.totalorder %s162, 0
    %s165 = sadd.s32 %s164, 1
    %s166 = scalar_select %p163, %s164, %s165
    %p169 = pneg %p163
    %p170 = scmp.eq.s32.totalorder %s13, 1
    %p171 = por %p169, %p170
    %p172 = scmp.ne.s32.totalorder %s164, %s167
    %p173 = scmp.eq.s32.totalorder %s13, 0
    %p174 = por %p172, %p173
    %p175 = scmp.ne.s32.totalorder %s164, %s167
    %p176 = scmp.eq.s32.totalorder %s18, 1
    %p177 = por %p175, %p176
    %p178 = scmp.ne.s32.totalorder %s167, %s168
    %p179 = scmp.eq.s32.totalorder %s18, 0
    %p180 = por %p178, %p179
    %p181 = scmp.ne.s32.totalorder %s167, %s168
    %p182 = scmp.eq.s32.totalorder %s19, 1
    %p183 = por %p181, %p182
    %p185 = scmp.ne.s32.totalorder %s168, %s184
    %p186 = scmp.eq.s32.totalorder %s19, 0
    %p187 = por %p185, %p186
    %p188 = scmp.le.s32.totalorder 1, %s13
    %p189 = scmp.lt.s32.totalorder %s13, 3
    %p190 = pnand %p188, %p189
    %p191 = pneg %p190
    // Predicated region
    $region9: #{darknet_block.4} parent=5 // pred_check
      _
    $region10: #{darknet_block.4} parent=5 // pred_check_branch
      %193 = sbr.rel (%p190) target = $region12
    $region11: #{darknet_block.4} parent=5 // pred_region
      %s194 = ssub.s32 %s13, 1
      // Predicated region
      $region13: #{darknet_block.4} parent=11 // pred_check
        %p195 = pneg %p60
      $region14: #{darknet_block.4} parent=11 // pred_check_branch
        %197 = sbr.rel (%p195) target = $region16
      $region15: #{darknet_block.4} parent=11 // pred_region
        _
      $region16: #{darknet_block.4} parent=11 // pred_fallthru
        _
      // Predicated region
      $region17: #{darknet_block.4} parent=11 // pred_check
        %p198 = pneg %p81
      $region18: #{darknet_block.4} parent=11 // pred_check_branch
        %200 = sbr.rel (%p198) target = $region20
      $region19: #{darknet_block.4} parent=11 // pred_region
        _
      $region20: #{darknet_block.4} parent=11 // pred_fallthru
        _
      // Predicated region
      $region21: #{darknet_block.4} parent=11 // pred_check
        %p201 = pneg %p102
      $region22: #{darknet_block.4} parent=11 // pred_check_branch
        %203 = sbr.rel (%p201) target = $region24
      $region23: #{darknet_block.4} parent=11 // pred_region
        _
      $region24: #{darknet_block.4} parent=11 // pred_fallthru
        _
    $region12: #{darknet_block.4} parent=5 // pred_fallthru
      _
    %p204 = scmp.lt.s32.totalorder %s13, 2
    // Predicated region
    $region25: #{darknet_block.4} parent=5 // pred_check
      %p205 = pneg %p204
    $region26: #{darknet_block.4} parent=5 // pred_check_branch
      %207 = sbr.rel (%p205) target = $region28
    $region27: #{darknet_block.4} parent=5 // pred_region
      // Predicated region
      $region29: #{darknet_block.4} parent=27 // pred_check
        %p208 = pneg %p33
      $region30: #{darknet_block.4} parent=27 // pred_check_branch
        %210 = sbr.rel (%p208) target = $region32
      $region31: #{darknet_block.4} parent=27 // pred_region
        %p211 = scmp.lt.s32.totalorder %s13, 1
        %s212 = scalar_select %p211, %s13, 1
        %s213 = smul.addr %s212, 8
        %s214 = smul.addr %s213, 8
        %s215 = scalar_lea.vmem %s0, %s214
      $region32: #{darknet_block.4} parent=27 // pred_fallthru
        _
    $region28: #{darknet_block.4} parent=5 // pred_fallthru
      _
    %p216 = scmp.le.s32.totalorder 1, %s13
    %p217 = scmp.lt.s32.totalorder %s13, 3
    %p218 = pnand %p216, %p217
    %p219 = pneg %p218
    // Predicated region
    $region33: #{darknet_block.4} parent=5 // pred_check
      _
    $region34: #{darknet_block.4} parent=5 // pred_check_branch
      %221 = sbr.rel (%p218) target = $region36
    $region35: #{darknet_block.4} parent=5 // pred_region
      %s222 = ssub.s32 %s13, 1
      %p223 = scmp.lt.s32.totalorder %s18, 1
      %s224 = scalar_select %p223, %s18, 1
      %s225 = smul.addr %s224, 8
      %s226 = smul.addr %s225, 8
      %s227 = scalar_lea.vmem %s0, %s226
      %p228 = pneg %p39
      %p229 = pneg %p36
      %p230 = pneg %p60
      %p231 = pneg %p57
      %p232 = pneg %p81
      %p233 = pneg %p78
      %p234 = pneg %p102
      %p235 = pneg %p99
      %p236 = pneg %p128
      %p237 = pneg %p125
      %p238 = scmp.lt.s32.totalorder %s18, 1
      %s239 = scalar_select %p238, %s18, 1
      %s240 = smul.addr %s239, 16
      %s241 = smul.addr %s240, 8
      %s242 = scalar_lea.vmem %s4, %s241
      %p243 = pneg %p154
      %p244 = pneg %p151
      %p245 = scmp.lt.s32.totalorder %s18, 1
      %s246 = scalar_select %p245, %s18, 1
      %s247 = smul.addr %s246, 8
      %s248 = smul.addr %s247, 8
      %s249 = scalar_lea.vmem %s5, %s248
      %p250 = pneg %p180
      %p251 = pneg %p177
      %p252 = scmp.lt.s32.totalorder %s18, 1
      %s253 = scalar_select %p252, %s18, 1
      %s254 = smul.addr %s253, 8
      %s255 = smul.addr %s254, 8
      %s256 = scalar_lea.vmem %s6, %s255
      %p257 = scmp.lt.s32.totalorder %s18, 1
      %s258 = scalar_select %p257, %s18, 1
      %s259 = smul.addr %s258, 8
      %s260 = smul.addr %s259, 8
      %s261 = scalar_lea.vmem %s0, %s260
      %p262 = scmp.lt.s32.totalorder %s18, 1
      %s263 = scalar_select %p262, %s18, 1
      %s264 = smul.addr %s263, 16
      %s265 = smul.addr %s264, 8
      %s266 = scalar_lea.vmem %s4, %s265
      %p267 = scmp.lt.s32.totalorder %s18, 1
      %s268 = scalar_select %p267, %s18, 1
      %s269 = smul.addr %s268, 8
      %s270 = smul.addr %s269, 8
      %s271 = scalar_lea.vmem %s5, %s270
      %p272 = scmp.lt.s32.totalorder %s18, 1
      %s273 = scalar_select %p272, %s18, 1
      %s274 = smul.addr %s273, 8
      %s275 = smul.addr %s274, 8
      %s276 = scalar_lea.vmem %s6, %s275
      %v277 = vld [vmem:[%s261] sm:$0xff]
      %v278 = vld [vmem:[%s261 + $0x8] sm:$0xff]
      %v279 = vld [vmem:[%s261 + $0x10] sm:$0xff]
      %v280 = vld [vmem:[%s261 + $0x18] sm:$0xff]
      %v281 = vld [vmem:[%s261 + $0x20] sm:$0xff]
      %v282 = vld [vmem:[%s261 + $0x28] sm:$0xff]
      %v283 = vld [vmem:[%s261 + $0x30] sm:$0xff]
      %v284 = vld [vmem:[%s261 + $0x38] sm:$0xff]
      %v285 = vld [vmem:[%s1] sm:$0xff]
      %v286 = vld [vmem:[%s1 + $0x8] sm:$0xff]
      %v287 = vld [vmem:[%s1 + $0x10] sm:$0xff]
      %v288 = vld [vmem:[%s1 + $0x18] sm:$0xff]
      %290 = vset.pattern.permute.xlu0 0
      %291 = vperm.xlu0 %290, %v285
      %v292 = vpop.permute.xlu0 %291
      %295 = vset.pattern.permute.xlu0 0
      %296 = vperm.xlu0 %295, %v286
      %v297 = vpop.permute.xlu0 %296
      %300 = vset.pattern.permute.xlu0 0
      %301 = vperm.xlu0 %300, %v287
      %v302 = vpop.permute.xlu0 %301
      %305 = vset.pattern.permute.xlu0 0
      %306 = vperm.xlu0 %305, %v288
      %v307 = vpop.permute.xlu0 %306
      %v309 = vmul.f32 %v277, %v292
      %v310 = vmul.f32 %v278, %v292
      %v311 = vmul.f32 %v279, %v297
      %v312 = vmul.f32 %v280, %v297
      %v313 = vmul.f32 %v281, %v302
      %v314 = vmul.f32 %v282, %v302
      %v315 = vmul.f32 %v283, %v307
      %v316 = vmul.f32 %v284, %v307
      %v317 = vld [vmem:[%s2] sm:$0xff]
      %v318 = vld [vmem:[%s2 + $0x8] sm:$0xff]
      %v319 = vld [vmem:[%s2 + $0x10] sm:$0xff]
      %v320 = vld [vmem:[%s2 + $0x18] sm:$0xff]
      %322 = vset.pattern.permute.xlu0 0
      %323 = vperm.xlu0 %322, %v317
      %v324 = vpop.permute.xlu0 %323
      %327 = vset.pattern.permute.xlu0 0
      %328 = vperm.xlu0 %327, %v318
      %v329 = vpop.permute.xlu0 %328
      %332 = vset.pattern.permute.xlu0 0
      %333 = vperm.xlu0 %332, %v319
      %v334 = vpop.permute.xlu0 %333
      %337 = vset.pattern.permute.xlu0 0
      %338 = vperm.xlu0 %337, %v320
      %v339 = vpop.permute.xlu0 %338
      %v341 = vadd.f32 %v309, %v324
      %v342 = vadd.f32 %v310, %v324
      %v343 = vadd.f32 %v311, %v329
      %v344 = vadd.f32 %v312, %v329
      %v345 = vadd.f32 %v313, %v334
      %v346 = vadd.f32 %v314, %v334
      %v347 = vadd.f32 %v315, %v339
      %v348 = vadd.f32 %v316, %v339
      %vm349 = vcmp.gt.f32.partialorder %v341, 0.0
      %vm350 = vcmp.gt.f32.partialorder %v342, 0.0
      %vm351 = vcmp.gt.f32.partialorder %v343, 0.0
      %vm352 = vcmp.gt.f32.partialorder %v344, 0.0
      %vm353 = vcmp.gt.f32.partialorder %v345, 0.0
      %vm354 = vcmp.gt.f32.partialorder %v346, 0.0
      %vm355 = vcmp.gt.f32.partialorder %v347, 0.0
      %vm356 = vcmp.gt.f32.partialorder %v348, 0.0
      %v357 = vmul.f32 %v341, 0.1
      %v358 = vmul.f32 %v342, 0.1
      %v359 = vmul.f32 %v343, 0.1
      %v360 = vmul.f32 %v344, 0.1
      %v361 = vmul.f32 %v345, 0.1
      %v362 = vmul.f32 %v346, 0.1
      %v363 = vmul.f32 %v347, 0.1
      %v364 = vmul.f32 %v348, 0.1
      %v365 = vsel %vm349, %v341, %v357
      %v366 = vsel %vm350, %v342, %v358
      %v367 = vsel %vm351, %v343, %v359
      %v368 = vsel %vm352, %v344, %v360
      %v369 = vsel %vm353, %v345, %v361
      %v370 = vsel %vm354, %v346, %v362
      %v371 = vsel %vm355, %v347, %v363
      %v372 = vsel %vm356, %v348, %v364
      %373 = vst [vmem:[#allocation2] sm:$0xff] 0.0
      %374 = vst [vmem:[#allocation2 + $0x20] sm:$0xff] 0.0
      %375 = vst [vmem:[#allocation2 + $0x40] sm:$0xff] 0.0
      %376 = vst [vmem:[#allocation2 + $0x60] sm:$0xff] 0.0
      %377 = vst [vmem:[#allocation2 + $0x18] sm:$0xff] 0.0
      %378 = vst [vmem:[#allocation2 + $0x38] sm:$0xff] 0.0
      %379 = vst [vmem:[#allocation2 + $0x58] sm:$0xff] 0.0
      %380 = vst [vmem:[#allocation2 + $0x78] sm:$0xff] 0.0
      %381 = vst [vmem:[#allocation2 + $0x8] sm:$0xff] %v365
      %382 = vst [vmem:[#allocation2 + $0x10] sm:$0xff] %v366
      %383 = vst [vmem:[#allocation2 + $0x28] sm:$0xff] %v367
      %384 = vst [vmem:[#allocation2 + $0x30] sm:$0xff] %v368
      %385 = vst [vmem:[#allocation2 + $0x48] sm:$0xff] %v369
      %386 = vst [vmem:[#allocation2 + $0x50] sm:$0xff] %v370
      %387 = vst [vmem:[#allocation2 + $0x68] sm:$0xff] %v371
      %388 = vst [vmem:[#allocation2 + $0x70] sm:$0xff] %v372
      %v389 = vlaneseq
      %v390 = vand.u32 %v389, 127
      %v391 = vadd.s32 %v390, 128
      %vm392 = vcmp.lt.s32.totalorder %v390, 0
      %v393 = vsub.s32 0, %v390
      %v394 = vsel %vm392, %v393, %v390
      %v395 = vshrl.u32 %v394, 4
      %v396 = vand.u32 %v394, 15
      %v397 = vsub.s32 0, %v396
      %v398 = vsel %vm392, %v397, %v396
      %vm399 = vcmp.lt.s32.totalorder %v391, 0
      %v400 = vsub.s32 0, %v391
      %v401 = vsel %vm399, %v400, %v391
      %v402 = vshrl.u32 %v401, 4
      %v403 = vand.u32 %v401, 15
      %v404 = vsub.s32 0, %v403
      %v405 = vsel %vm399, %v404, %v403
      %vm406 = vcmp.ne.s32.totalorder %v398, 0
      %vm407 = vcmp.ne.s32.totalorder %v405, 0
      %vm408 = vcmp.lt.s32.totalorder %v398, 0
      %vm409 = vcmp.lt.s32.totalorder %v405, 0
      %vm410 = vmand %vm408, %vm406
      %vm411 = vmand %vm409, %vm407
      %v412 = vadd.s32 %v398, 16
      %v413 = vadd.s32 %v405, 16
      %v414 = vsel %vm410, %v412, %v398
      %v415 = vsel %vm411, %v413, %v405
      %vm416 = vcmp.ne.s32.totalorder %v414, 0
      %vm417 = vcmp.ne.s32.totalorder %v415, 0
      %vm418 = vcmp.ne.s32.totalorder %v414, 15
      %vm419 = vcmp.ne.s32.totalorder %v415, 15
      %v420 = vld [vmem:[#allocation2] sm:$0xff]
      %v421 = vld [vmem:[#allocation2 + $0x8] sm:$0xff]
      %v422 = vld [vmem:[#allocation2 + $0x10] sm:$0xff]
      %v423 = vld [vmem:[#allocation2 + $0x20] sm:$0xff]
      %v424 = vld [vmem:[#allocation2 + $0x28] sm:$0xff]
      %v425 = vld [vmem:[#allocation2 + $0x30] sm:$0xff]
      %v426 = vld [vmem:[#allocation2 + $0x40] sm:$0xff]
      %v427 = vld [vmem:[#allocation2 + $0x48] sm:$0xff]
      %v428 = vld [vmem:[#allocation2 + $0x50] sm:$0xff]
      %v429 = vld [vmem:[#allocation2 + $0x60] sm:$0xff]
      %v430 = vld [vmem:[#allocation2 + $0x68] sm:$0xff]
      %v431 = vld [vmem:[#allocation2 + $0x70] sm:$0xff]
      %v432 = vsel %vm416, 1, 0
      %v433 = vsel %vm417, 1, 0
      %vm434 = vcmp.eq.s32.totalorder %v432, 1
      %vm435 = vcmp.eq.s32.totalorder %v433, 1
      %448 = vrot.lane.b32.xlu0 %v420, 17
      %v449 = vpop.permute.xlu0 %448
      %450 = vrot.lane.b32.xlu0 %v421, 17
      %v451 = vpop.permute.xlu0 %450
      %452 = vrot.lane.b32.xlu0 %v422, 17
      %v453 = vpop.permute.xlu0 %452
      %454 = vrot.lane.b32.xlu0 %v423, 17
      %v455 = vpop.permute.xlu0 %454
      %456 = vrot.lane.b32.xlu0 %v424, 17
      %v457 = vpop.permute.xlu0 %456
      %458 = vrot.lane.b32.xlu0 %v425, 17
      %v459 = vpop.permute.xlu0 %458
      %460 = vrot.lane.b32.xlu0 %v426, 17
      %v461 = vpop.permute.xlu0 %460
      %462 = vrot.lane.b32.xlu0 %v427, 17
      %v463 = vpop.permute.xlu0 %462
      %464 = vrot.lane.b32.xlu0 %v428, 17
      %v465 = vpop.permute.xlu0 %464
      %466 = vrot.lane.b32.xlu0 %v429, 17
      %v467 = vpop.permute.xlu0 %466
      %468 = vrot.lane.b32.xlu0 %v430, 17
      %v469 = vpop.permute.xlu0 %468
      %470 = vrot.lane.b32.xlu0 %v431, 17
      %v471 = vpop.permute.xlu0 %470
      %vm472 = vcmask 138240
      %v473 = vsel %vm472, %v449, %v451
      %v474 = vsel %vm472, %v451, %v453
      %v475 = vsel %vm472, %v455, %v457
      %v476 = vsel %vm472, %v457, %v459
      %v477 = vsel %vm472, %v461, %v463
      %v478 = vsel %vm472, %v463, %v465
      %v479 = vsel %vm472, %v467, %v469
      %v480 = vsel %vm472, %v469, %v471
      %v489 = vsel %vm434, %v473, 0.0
      %v490 = vsel %vm435, %v474, 0.0
      %v491 = vsel %vm434, %v475, 0.0
      %v492 = vsel %vm435, %v476, 0.0
      %v493 = vsel %vm434, %v477, 0.0
      %v494 = vsel %vm435, %v478, 0.0
      %v495 = vsel %vm434, %v479, 0.0
      %v496 = vsel %vm435, %v480, 0.0
      %497 = vst [vmem:[#allocation3] sm:$0xff] %v489
      %498 = vst [vmem:[#allocation3 + $0x8] sm:$0xff] %v490
      %499 = vst [vmem:[#allocation3 + $0x10] sm:$0xff] %v491
      %500 = vst [vmem:[#allocation3 + $0x18] sm:$0xff] %v492
      %501 = vst [vmem:[#allocation3 + $0x20] sm:$0xff] %v493
      %502 = vst [vmem:[#allocation3 + $0x28] sm:$0xff] %v494
      %503 = vst [vmem:[#allocation3 + $0x30] sm:$0xff] %v495
      %504 = vst [vmem:[#allocation3 + $0x38] sm:$0xff] %v496
      %v505 = vld [vmem:[#allocation2] sm:$0xff]
      %v506 = vld [vmem:[#allocation2 + $0x8] sm:$0xff]
      %v507 = vld [vmem:[#allocation2 + $0x10] sm:$0xff]
      %v508 = vld [vmem:[#allocation2 + $0x20] sm:$0xff]
      %v509 = vld [vmem:[#allocation2 + $0x28] sm:$0xff]
      %v510 = vld [vmem:[#allocation2 + $0x30] sm:$0xff]
      %v511 = vld [vmem:[#allocation2 + $0x40] sm:$0xff]
      %v512 = vld [vmem:[#allocation2 + $0x48] sm:$0xff]
      %v513 = vld [vmem:[#allocation2 + $0x50] sm:$0xff]
      %v514 = vld [vmem:[#allocation2 + $0x60] sm:$0xff]
      %v515 = vld [vmem:[#allocation2 + $0x68] sm:$0xff]
      %v516 = vld [vmem:[#allocation2 + $0x70] sm:$0xff]
      %529 = vrot.lane.b32.xlu0 %v505, 16
      %v530 = vpop.permute.xlu0 %529
      %531 = vrot.lane.b32.xlu0 %v506, 16
      %v532 = vpop.permute.xlu0 %531
      %533 = vrot.lane.b32.xlu0 %v507, 16
      %v534 = vpop.permute.xlu0 %533
      %535 = vrot.lane.b32.xlu0 %v508, 16
      %v536 = vpop.permute.xlu0 %535
      %537 = vrot.lane.b32.xlu0 %v509, 16
      %v538 = vpop.permute.xlu0 %537
      %539 = vrot.lane.b32.xlu0 %v510, 16
      %v540 = vpop.permute.xlu0 %539
      %541 = vrot.lane.b32.xlu0 %v511, 16
      %v542 = vpop.permute.xlu0 %541
      %543 = vrot.lane.b32.xlu0 %v512, 16
      %v544 = vpop.permute.xlu0 %543
      %545 = vrot.lane.b32.xlu0 %v513, 16
      %v546 = vpop.permute.xlu0 %545
      %547 = vrot.lane.b32.xlu0 %v514, 16
      %v548 = vpop.permute.xlu0 %547
      %549 = vrot.lane.b32.xlu0 %v515, 16
      %v550 = vpop.permute.xlu0 %549
      %551 = vrot.lane.b32.xlu0 %v516, 16
      %v552 = vpop.permute.xlu0 %551
      %vm553 = vcmask 130048
      %v554 = vsel %vm553, %v530, %v532
      %v555 = vsel %vm553, %v532, %v534
      %v556 = vsel %vm553, %v536, %v538
      %v557 = vsel %vm553, %v538, %v540
      %v558 = vsel %vm553, %v542, %v544
      %v559 = vsel %vm553, %v544, %v546
      %v560 = vsel %vm553, %v548, %v550
      %v561 = vsel %vm553, %v550, %v552
      %570 = vst [vmem:[#allocation3 + $0x40] sm:$0xff] %v554
      %571 = vst [vmem:[#allocation3 + $0x48] sm:$0xff] %v555
      %572 = vst [vmem:[#allocation3 + $0x50] sm:$0xff] %v556
      %573 = vst [vmem:[#allocation3 + $0x58] sm:$0xff] %v557
      %574 = vst [vmem:[#allocation3 + $0x60] sm:$0xff] %v558
      %575 = vst [vmem:[#allocation3 + $0x68] sm:$0xff] %v559
      %576 = vst [vmem:[#allocation3 + $0x70] sm:$0xff] %v560
      %577 = vst [vmem:[#allocation3 + $0x78] sm:$0xff] %v561
      %v578 = vld [vmem:[#allocation2] sm:$0xff]
      %v579 = vld [vmem:[#allocation2 + $0x8] sm:$0xff]
      %v580 = vld [vmem:[#allocation2 + $0x10] sm:$0xff]
      %v581 = vld [vmem:[#allocation2 + $0x20] sm:$0xff]
      %v582 = vld [vmem:[#allocation2 + $0x28] sm:$0xff]
      %v583 = vld [vmem:[#allocation2 + $0x30] sm:$0xff]
      %v584 = vld [vmem:[#allocation2 + $0x40] sm:$0xff]
      %v585 = vld [vmem:[#allocation2 + $0x48] sm:$0xff]
      %v586 = vld [vmem:[#allocation2 + $0x50] sm:$0xff]
      %v587 = vld [vmem:[#allocation2 + $0x60] sm:$0xff]
      %v588 = vld [vmem:[#allocation2 + $0x68] sm:$0xff]
      %v589 = vld [vmem:[#allocation2 + $0x70] sm:$0xff]
      %v590 = vsel %vm418, 1, 0
      %v591 = vsel %vm419, 1, 0
      %vm592 = vcmp.eq.s32.totalorder %v590, 1
      %vm593 = vcmp.eq.s32.totalorder %v591, 1
      %606 = vrot.lane.b32.xlu0 %v578, 15
      %v607 = vpop.permute.xlu0 %606
      %608 = vrot.lane.b32.xlu0 %v579, 15
      %v609 = vpop.permute.xlu0 %608
      %610 = vrot.lane.b32.xlu0 %v580, 15
      %v611 = vpop.permute.xlu0 %610
      %612 = vrot.lane.b32.xlu0 %v581, 15
      %v613 = vpop.permute.xlu0 %612
      %614 = vrot.lane.b32.xlu0 %v582, 15
      %v615 = vpop.permute.xlu0 %614
      %616 = vrot.lane.b32.xlu0 %v583, 15
      %v617 = vpop.permute.xlu0 %616
      %618 = vrot.lane.b32.xlu0 %v584, 15
      %v619 = vpop.permute.xlu0 %618
      %620 = vrot.lane.b32.xlu0 %v585, 15
      %v621 = vpop.permute.xlu0 %620
      %622 = vrot.lane.b32.xlu0 %v586, 15
      %v623 = vpop.permute.xlu0 %622
      %624 = vrot.lane.b32.xlu0 %v587, 15
      %v625 = vpop.permute.xlu0 %624
      %626 = vrot.lane.b32.xlu0 %v588, 15
      %v627 = vpop.permute.xlu0 %626
      %628 = vrot.lane.b32.xlu0 %v589, 15
      %v629 = vpop.permute.xlu0 %628
      %vm630 = vcmask 121856
      %v631 = vsel %vm630, %v607, %v609
      %v632 = vsel %vm630, %v609, %v611
      %v633 = vsel %vm630, %v613, %v615
      %v634 = vsel %vm630, %v615, %v617
      %v635 = vsel %vm630, %v619, %v621
      %v636 = vsel %vm630, %v621, %v623
      %v637 = vsel %vm630, %v625, %v627
      %v638 = vsel %vm630, %v627, %v629
      %v647 = vsel %vm592, %v631, 0.0
      %v648 = vsel %vm593, %v632, 0.0
      %v649 = vsel %vm592, %v633, 0.0
      %v650 = vsel %vm593, %v634, 0.0
      %v651 = vsel %vm592, %v635, 0.0
      %v652 = vsel %vm593, %v636, 0.0
      %v653 = vsel %vm592, %v637, 0.0
      %v654 = vsel %vm593, %v638, 0.0
      %655 = vst [vmem:[#allocation3 + $0x80] sm:$0xff] %v647
      %656 = vst [vmem:[#allocation3 + $0x88] sm:$0xff] %v648
      %657 = vst [vmem:[#allocation3 + $0x90] sm:$0xff] %v649
      %658 = vst [vmem:[#allocation3 + $0x98] sm:$0xff] %v650
      %659 = vst [vmem:[#allocation3 + $0xa0] sm:$0xff] %v651
      %660 = vst [vmem:[#allocation3 + $0xa8] sm:$0xff] %v652
      %661 = vst [vmem:[#allocation3 + $0xb0] sm:$0xff] %v653
      %662 = vst [vmem:[#allocation3 + $0xb8] sm:$0xff] %v654
      %v663 = vld [vmem:[#allocation2] sm:$0xff]
      %v664 = vld [vmem:[#allocation2 + $0x8] sm:$0xff]
      %v665 = vld [vmem:[#allocation2 + $0x10] sm:$0xff]
      %v666 = vld [vmem:[#allocation2 + $0x20] sm:$0xff]
      %v667 = vld [vmem:[#allocation2 + $0x28] sm:$0xff]
      %v668 = vld [vmem:[#allocation2 + $0x30] sm:$0xff]
      %v669 = vld [vmem:[#allocation2 + $0x40] sm:$0xff]
      %v670 = vld [vmem:[#allocation2 + $0x48] sm:$0xff]
      %v671 = vld [vmem:[#allocation2 + $0x50] sm:$0xff]
      %v672 = vld [vmem:[#allocation2 + $0x60] sm:$0xff]
      %v673 = vld [vmem:[#allocation2 + $0x68] sm:$0xff]
      %v674 = vld [vmem:[#allocation2 + $0x70] sm:$0xff]
      %687 = vrot.lane.b32.xlu0 %v663, 1
      %v688 = vpop.permute.xlu0 %687
      %689 = vrot.lane.b32.xlu0 %v664, 1
      %v690 = vpop.permute.xlu0 %689
      %691 = vrot.lane.b32.xlu0 %v665, 1
      %v692 = vpop.permute.xlu0 %691
      %693 = vrot.lane.b32.xlu0 %v666, 1
      %v694 = vpop.permute.xlu0 %693
      %695 = vrot.lane.b32.xlu0 %v667, 1
      %v696 = vpop.permute.xlu0 %695
      %697 = vrot.lane.b32.xlu0 %v668, 1
      %v698 = vpop.permute.xlu0 %697
      %699 = vrot.lane.b32.xlu0 %v669, 1
      %v700 = vpop.permute.xlu0 %699
      %701 = vrot.lane.b32.xlu0 %v670, 1
      %v702 = vpop.permute.xlu0 %701
      %703 = vrot.lane.b32.xlu0 %v671, 1
      %v704 = vpop.permute.xlu0 %703
      %705 = vrot.lane.b32.xlu0 %v672, 1
      %v706 = vpop.permute.xlu0 %705
      %707 = vrot.lane.b32.xlu0 %v673, 1
      %v708 = vpop.permute.xlu0 %707
      %709 = vrot.lane.b32.xlu0 %v674, 1
      %v710 = vpop.permute.xlu0 %709
      %vm711 = vcmask 7168
      %v712 = vsel %vm711, %v688, %v690
      %v713 = vsel %vm711, %v690, %v692
      %v714 = vsel %vm711, %v694, %v696
      %v715 = vsel %vm711, %v696, %v698
      %v716 = vsel %vm711, %v700, %v702
      %v717 = vsel %vm711, %v702, %v704
      %v718 = vsel %vm711, %v706, %v708
      %v719 = vsel %vm711, %v708, %v710
      %v728 = vsel %vm434, %v712, 0.0
      %v729 = vsel %vm435, %v713, 0.0
      %v730 = vsel %vm434, %v714, 0.0
      %v731 = vsel %vm435, %v715, 0.0
      %v732 = vsel %vm434, %v716, 0.0
      %v733 = vsel %vm435, %v717, 0.0
      %v734 = vsel %vm434, %v718, 0.0
      %v735 = vsel %vm435, %v719, 0.0
      %736 = vst [vmem:[#allocation3 + $0xc0] sm:$0xff] %v728
      %737 = vst [vmem:[#allocation3 + $0xc8] sm:$0xff] %v729
      %738 = vst [vmem:[#allocation3 + $0xd0] sm:$0xff] %v730
      %739 = vst [vmem:[#allocation3 + $0xd8] sm:$0xff] %v731
      %740 = vst [vmem:[#allocation3 + $0xe0] sm:$0xff] %v732
      %741 = vst [vmem:[#allocation3 + $0xe8] sm:$0xff] %v733
      %742 = vst [vmem:[#allocation3 + $0xf0] sm:$0xff] %v734
      %743 = vst [vmem:[#allocation3 + $0xf8] sm:$0xff] %v735
      %v744 = vld [vmem:[#allocation2 + $0x8] sm:$0xff]
      %v745 = vld [vmem:[#allocation2 + $0x10] sm:$0xff]
      %v746 = vld [vmem:[#allocation2 + $0x28] sm:$0xff]
      %v747 = vld [vmem:[#allocation2 + $0x30] sm:$0xff]
      %v748 = vld [vmem:[#allocation2 + $0x48] sm:$0xff]
      %v749 = vld [vmem:[#allocation2 + $0x50] sm:$0xff]
      %v750 = vld [vmem:[#allocation2 + $0x68] sm:$0xff]
      %v751 = vld [vmem:[#allocation2 + $0x70] sm:$0xff]
      %752 = vst [vmem:[#allocation3 + $0x100] sm:$0xff] %v744
      %753 = vst [vmem:[#allocation3 + $0x108] sm:$0xff] %v745
      %754 = vst [vmem:[#allocation3 + $0x110] sm:$0xff] %v746
      %755 = vst [vmem:[#allocation3 + $0x118] sm:$0xff] %v747
      %756 = vst [vmem:[#allocation3 + $0x120] sm:$0xff] %v748
      %757 = vst [vmem:[#allocation3 + $0x128] sm:$0xff] %v749
      %758 = vst [vmem:[#allocation3 + $0x130] sm:$0xff] %v750
      %759 = vst [vmem:[#allocation3 + $0x138] sm:$0xff] %v751
      %v760 = vld [vmem:[#allocation2 + $0x8] sm:$0xff]
      %v761 = vld [vmem:[#allocation2 + $0x10] sm:$0xff]
      %v762 = vld [vmem:[#allocation2 + $0x18] sm:$0xff]
      %v763 = vld [vmem:[#allocation2 + $0x28] sm:$0xff]
      %v764 = vld [vmem:[#allocation2 + $0x30] sm:$0xff]
      %v765 = vld [vmem:[#allocation2 + $0x38] sm:$0xff]
      %v766 = vld [vmem:[#allocation2 + $0x48] sm:$0xff]
      %v767 = vld [vmem:[#allocation2 + $0x50] sm:$0xff]
      %v768 = vld [vmem:[#allocation2 + $0x58] sm:$0xff]
      %v769 = vld [vmem:[#allocation2 + $0x68] sm:$0xff]
      %v770 = vld [vmem:[#allocation2 + $0x70] sm:$0xff]
      %v771 = vld [vmem:[#allocation2 + $0x78] sm:$0xff]
      %784 = vrot.lane.b32.xlu0 %v760, 127
      %v785 = vpop.permute.xlu0 %784
      %786 = vrot.lane.b32.xlu0 %v761, 127
      %v787 = vpop.permute.xlu0 %786
      %788 = vrot.lane.b32.xlu0 %v762, 127
      %v789 = vpop.permute.xlu0 %788
      %790 = vrot.lane.b32.xlu0 %v763, 127
      %v791 = vpop.permute.xlu0 %790
      %792 = vrot.lane.b32.xlu0 %v764, 127
      %v793 = vpop.permute.xlu0 %792
      %794 = vrot.lane.b32.xlu0 %v765, 127
      %v795 = vpop.permute.xlu0 %794
      %796 = vrot.lane.b32.xlu0 %v766, 127
      %v797 = vpop.permute.xlu0 %796
      %798 = vrot.lane.b32.xlu0 %v767, 127
      %v799 = vpop.permute.xlu0 %798
      %800 = vrot.lane.b32.xlu0 %v768, 127
      %v801 = vpop.permute.xlu0 %800
      %802 = vrot.lane.b32.xlu0 %v769, 127
      %v803 = vpop.permute.xlu0 %802
      %804 = vrot.lane.b32.xlu0 %v770, 127
      %v805 = vpop.permute.xlu0 %804
      %806 = vrot.lane.b32.xlu0 %v771, 127
      %v807 = vpop.permute.xlu0 %806
      %vm808 = vcmask 1039360
      %v809 = vsel %vm808, %v785, %v787
      %v810 = vsel %vm808, %v787, %v789
      %v811 = vsel %vm808, %v791, %v793
      %v812 = vsel %vm808, %v793, %v795
      %v813 = vsel %vm808, %v797, %v799
      %v814 = vsel %vm808, %v799, %v801
      %v815 = vsel %vm808, %v803, %v805
      %v816 = vsel %vm808, %v805, %v807
      %v825 = vsel %vm592, %v809, 0.0
      %v826 = vsel %vm593, %v810, 0.0
      %v827 = vsel %vm592, %v811, 0.0
      %v828 = vsel %vm593, %v812, 0.0
      %v829 = vsel %vm592, %v813, 0.0
      %v830 = vsel %vm593, %v814, 0.0
      %v831 = vsel %vm592, %v815, 0.0
      %v832 = vsel %vm593, %v816, 0.0
      %833 = vst [vmem:[#allocation3 + $0x140] sm:$0xff] %v825
      %834 = vst [vmem:[#allocation3 + $0x148] sm:$0xff] %v826
      %835 = vst [vmem:[#allocation3 + $0x150] sm:$0xff] %v827
      %836 = vst [vmem:[#allocation3 + $0x158] sm:$0xff] %v828
      %837 = vst [vmem:[#allocation3 + $0x160] sm:$0xff] %v829
      %838 = vst [vmem:[#allocation3 + $0x168] sm:$0xff] %v830
      %839 = vst [vmem:[#allocation3 + $0x170] sm:$0xff] %v831
      %840 = vst [vmem:[#allocation3 + $0x178] sm:$0xff] %v832
      %v841 = vld [vmem:[#allocation2 + $0x8] sm:$0xff]
      %v842 = vld [vmem:[#allocation2 + $0x10] sm:$0xff]
      %v843 = vld [vmem:[#allocation2 + $0x18] sm:$0xff]
      %v844 = vld [vmem:[#allocation2 + $0x28] sm:$0xff]
      %v845 = vld [vmem:[#allocation2 + $0x30] sm:$0xff]
      %v846 = vld [vmem:[#allocation2 + $0x38] sm:$0xff]
      %v847 = vld [vmem:[#allocation2 + $0x48] sm:$0xff]
      %v848 = vld [vmem:[#allocation2 + $0x50] sm:$0xff]
      %v849 = vld [vmem:[#allocation2 + $0x58] sm:$0xff]
      %v850 = vld [vmem:[#allocation2 + $0x68] sm:$0xff]
      %v851 = vld [vmem:[#allocation2 + $0x70] sm:$0xff]
      %v852 = vld [vmem:[#allocation2 + $0x78] sm:$0xff]
      %865 = vrot.lane.b32.xlu0 %v841, 113
      %v866 = vpop.permute.xlu0 %865
      %867 = vrot.lane.b32.xlu0 %v842, 113
      %v868 = vpop.permute.xlu0 %867
      %869 = vrot.lane.b32.xlu0 %v843, 113
      %v870 = vpop.permute.xlu0 %869
      %871 = vrot.lane.b32.xlu0 %v844, 113
      %v872 = vpop.permute.xlu0 %871
      %873 = vrot.lane.b32.xlu0 %v845, 113
      %v874 = vpop.permute.xlu0 %873
      %875 = vrot.lane.b32.xlu0 %v846, 113
      %v876 = vpop.permute.xlu0 %875
      %877 = vrot.lane.b32.xlu0 %v847, 113
      %v878 = vpop.permute.xlu0 %877
      %879 = vrot.lane.b32.xlu0 %v848, 113
      %v880 = vpop.permute.xlu0 %879
      %881 = vrot.lane.b32.xlu0 %v849, 113
      %v882 = vpop.permute.xlu0 %881
      %883 = vrot.lane.b32.xlu0 %v850, 113
      %v884 = vpop.permute.xlu0 %883
      %885 = vrot.lane.b32.xlu0 %v851, 113
      %v886 = vpop.permute.xlu0 %885
      %887 = vrot.lane.b32.xlu0 %v852, 113
      %v888 = vpop.permute.xlu0 %887
      %vm889 = vcmask 924672
      %v890 = vsel %vm889, %v866, %v868
      %v891 = vsel %vm889, %v868, %v870
      %v892 = vsel %vm889, %v872, %v874
      %v893 = vsel %vm889, %v874, %v876
      %v894 = vsel %vm889, %v878, %v880
      %v895 = vsel %vm889, %v880, %v882
      %v896 = vsel %vm889, %v884, %v886
      %v897 = vsel %vm889, %v886, %v888
      %v906 = vsel %vm434, %v890, 0.0
      %v907 = vsel %vm435, %v891, 0.0
      %v908 = vsel %vm434, %v892, 0.0
      %v909 = vsel %vm435, %v893, 0.0
      %v910 = vsel %vm434, %v894, 0.0
      %v911 = vsel %vm435, %v895, 0.0
      %v912 = vsel %vm434, %v896, 0.0
      %v913 = vsel %vm435, %v897, 0.0
      %914 = vst [vmem:[#allocation3 + $0x180] sm:$0xff] %v906
      %915 = vst [vmem:[#allocation3 + $0x188] sm:$0xff] %v907
      %916 = vst [vmem:[#allocation3 + $0x190] sm:$0xff] %v908
      %917 = vst [vmem:[#allocation3 + $0x198] sm:$0xff] %v909
      %918 = vst [vmem:[#allocation3 + $0x1a0] sm:$0xff] %v910
      %919 = vst [vmem:[#allocation3 + $0x1a8] sm:$0xff] %v911
      %920 = vst [vmem:[#allocation3 + $0x1b0] sm:$0xff] %v912
      %921 = vst [vmem:[#allocation3 + $0x1b8] sm:$0xff] %v913
      %v922 = vld [vmem:[#allocation2 + $0x8] sm:$0xff]
      %v923 = vld [vmem:[#allocation2 + $0x10] sm:$0xff]
      %v924 = vld [vmem:[#allocation2 + $0x18] sm:$0xff]
      %v925 = vld [vmem:[#allocation2 + $0x28] sm:$0xff]
      %v926 = vld [vmem:[#allocation2 + $0x30] sm:$0xff]
      %v927 = vld [vmem:[#allocation2 + $0x38] sm:$0xff]
      %v928 = vld [vmem:[#allocation2 + $0x48] sm:$0xff]
      %v929 = vld [vmem:[#allocation2 + $0x50] sm:$0xff]
      %v930 = vld [vmem:[#allocation2 + $0x58] sm:$0xff]
      %v931 = vld [vmem:[#allocation2 + $0x68] sm:$0xff]
      %v932 = vld [vmem:[#allocation2 + $0x70] sm:$0xff]
      %v933 = vld [vmem:[#allocation2 + $0x78] sm:$0xff]
      %946 = vrot.lane.b32.xlu0 %v922, 112
      %v947 = vpop.permute.xlu0 %946
      %948 = vrot.lane.b32.xlu0 %v923, 112
      %v949 = vpop.permute.xlu0 %948
      %950 = vrot.lane.b32.xlu0 %v924, 112
      %v951 = vpop.permute.xlu0 %950
      %952 = vrot.lane.b32.xlu0 %v925, 112
      %v953 = vpop.permute.xlu0 %952
      %954 = vrot.lane.b32.xlu0 %v926, 112
      %v955 = vpop.permute.xlu0 %954
      %956 = vrot.lane.b32.xlu0 %v927, 112
      %v957 = vpop.permute.xlu0 %956
      %958 = vrot.lane.b32.xlu0 %v928, 112
      %v959 = vpop.permute.xlu0 %958
      %960 = vrot.lane.b32.xlu0 %v929, 112
      %v961 = vpop.permute.xlu0 %960
      %962 = vrot.lane.b32.xlu0 %v930, 112
      %v963 = vpop.permute.xlu0 %962
      %964 = vrot.lane.b32.xlu0 %v931, 112
      %v965 = vpop.permute.xlu0 %964
      %966 = vrot.lane.b32.xlu0 %v932, 112
      %v967 = vpop.permute.xlu0 %966
      %968 = vrot.lane.b32.xlu0 %v933, 112
      %v969 = vpop.permute.xlu0 %968
      %vm970 = vcmask 916480
      %v971 = vsel %vm970, %v947, %v949
      %v972 = vsel %vm970, %v949, %v951
      %v973 = vsel %vm970, %v953, %v955
      %v974 = vsel %vm970, %v955, %v957
      %v975 = vsel %vm970, %v959, %v961
      %v976 = vsel %vm970, %v961, %v963
      %v977 = vsel %vm970, %v965, %v967
      %v978 = vsel %vm970, %v967, %v969
      %987 = vst [vmem:[#allocation3 + $0x1c0] sm:$0xff] %v971
      %988 = vst [vmem:[#allocation3 + $0x1c8] sm:$0xff] %v972
      %989 = vst [vmem:[#allocation3 + $0x1d0] sm:$0xff] %v973
      %990 = vst [vmem:[#allocation3 + $0x1d8] sm:$0xff] %v974
      %991 = vst [vmem:[#allocation3 + $0x1e0] sm:$0xff] %v975
      %992 = vst [vmem:[#allocation3 + $0x1e8] sm:$0xff] %v976
      %993 = vst [vmem:[#allocation3 + $0x1f0] sm:$0xff] %v977
      %994 = vst [vmem:[#allocation3 + $0x1f8] sm:$0xff] %v978
      %v995 = vld [vmem:[#allocation2 + $0x8] sm:$0xff]
      %v996 = vld [vmem:[#allocation2 + $0x10] sm:$0xff]
      %v997 = vld [vmem:[#allocation2 + $0x18] sm:$0xff]
      %v998 = vld [vmem:[#allocation2 + $0x28] sm:$0xff]
      %v999 = vld [vmem:[#allocation2 + $0x30] sm:$0xff]
      %v1000 = vld [vmem:[#allocation2 + $0x38] sm:$0xff]
      %v1001 = vld [vmem:[#allocation2 + $0x48] sm:$0xff]
      %v1002 = vld [vmem:[#allocation2 + $0x50] sm:$0xff]
      %v1003 = vld [vmem:[#allocation2 + $0x58] sm:$0xff]
      %v1004 = vld [vmem:[#allocation2 + $0x68] sm:$0xff]
      %v1005 = vld [vmem:[#allocation2 + $0x70] sm:$0xff]
      %v1006 = vld [vmem:[#allocation2 + $0x78] sm:$0xff]
      %1019 = vrot.lane.b32.xlu0 %v995, 111
      %v1020 = vpop.permute.xlu0 %1019
      %1021 = vrot.lane.b32.xlu0 %v996, 111
      %v1022 = vpop.permute.xlu0 %1021
      %1023 = vrot.lane.b32.xlu0 %v997, 111
      %v1024 = vpop.permute.xlu0 %1023
      %1025 = vrot.lane.b32.xlu0 %v998, 111
      %v1026 = vpop.permute.xlu0 %1025
      %1027 = vrot.lane.b32.xlu0 %v999, 111
      %v1028 = vpop.permute.xlu0 %1027
      %1029 = vrot.lane.b32.xlu0 %v1000, 111
      %v1030 = vpop.permute.xlu0 %1029
      %1031 = vrot.lane.b32.xlu0 %v1001, 111
      %v1032 = vpop.permute.xlu0 %1031
      %1033 = vrot.lane.b32.xlu0 %v1002, 111
      %v1034 = vpop.permute.xlu0 %1033
      %1035 = vrot.lane.b32.xlu0 %v1003, 111
      %v1036 = vpop.permute.xlu0 %1035
      %1037 = vrot.lane.b32.xlu0 %v1004, 111
      %v1038 = vpop.permute.xlu0 %1037
      %1039 = vrot.lane.b32.xlu0 %v1005, 111
      %v1040 = vpop.permute.xlu0 %1039
      %1041 = vrot.lane.b32.xlu0 %v1006, 111
      %v1042 = vpop.permute.xlu0 %1041
      %vm1043 = vcmask 908288
      %v1044 = vsel %vm1043, %v1020, %v1022
      %v1045 = vsel %vm1043, %v1022, %v1024
      %v1046 = vsel %vm1043, %v1026, %v1028
      %v1047 = vsel %vm1043, %v1028, %v1030
      %v1048 = vsel %vm1043, %v1032, %v1034
      %v1049 = vsel %vm1043, %v1034, %v1036
      %v1050 = vsel %vm1043, %v1038, %v1040
      %v1051 = vsel %vm1043, %v1040, %v1042
      %v1060 = vsel %vm592, %v1044, 0.0
      %v1061 = vsel %vm593, %v1045, 0.0
      %v1062 = vsel %vm592, %v1046, 0.0
      %v1063 = vsel %vm593, %v1047, 0.0
      %v1064 = vsel %vm592, %v1048, 0.0
      %v1065 = vsel %vm593, %v1049, 0.0
      %v1066 = vsel %vm592, %v1050, 0.0
      %v1067 = vsel %vm593, %v1051, 0.0
      %1068 = vst [vmem:[#allocation3 + $0x200] sm:$0xff] %v1060
      %1069 = vst [vmem:[#allocation3 + $0x208] sm:$0xff] %v1061
      %1070 = vst [vmem:[#allocation3 + $0x210] sm:$0xff] %v1062
      %1071 = vst [vmem:[#allocation3 + $0x218] sm:$0xff] %v1063
      %1072 = vst [vmem:[#allocation3 + $0x220] sm:$0xff] %v1064
      %1073 = vst [vmem:[#allocation3 + $0x228] sm:$0xff] %v1065
      %1074 = vst [vmem:[#allocation3 + $0x230] sm:$0xff] %v1066
      %1075 = vst [vmem:[#allocation3 + $0x238] sm:$0xff] %v1067
      %v1076 = vld [vmem:[%s3] sm:$0xff]
      %v1077 = vld [vmem:[%s3 + $0x8] sm:$0xff]
      %v1078 = vld [vmem:[%s3 + $0x10] sm:$0xff]
      %v1079 = vld [vmem:[%s3 + $0x18] sm:$0xff]
      %v1080 = vld [vmem:[%s3 + $0x20] sm:$0xff]
      %v1081 = vld [vmem:[%s3 + $0x28] sm:$0xff]
      %v1082 = vld [vmem:[%s3 + $0x30] sm:$0xff]
      %v1083 = vld [vmem:[%s3 + $0x38] sm:$0xff]
      %v1084 = vld [vmem:[%s3 + $0x40] sm:$0xff]
      %v1085 = vld [vmem:[%s3 + $0x48] sm:$0xff]
      %v1086 = vld [vmem:[%s3 + $0x50] sm:$0xff]
      %v1087 = vld [vmem:[%s3 + $0x58] sm:$0xff]
      %v1088 = vld [vmem:[%s3 + $0x60] sm:$0xff]
      %v1089 = vld [vmem:[%s3 + $0x68] sm:$0xff]
      %v1090 = vld [vmem:[%s3 + $0x70] sm:$0xff]
      %v1091 = vld [vmem:[%s3 + $0x78] sm:$0xff]
      %v1092 = vld [vmem:[%s3 + $0x80] sm:$0xff]
      %v1093 = vld [vmem:[%s3 + $0x88] sm:$0xff]
      %v1094 = vld [vmem:[%s3 + $0x90] sm:$0xff]
      %v1095 = vld [vmem:[%s3 + $0x98] sm:$0xff]
      %v1096 = vld [vmem:[%s3 + $0xa0] sm:$0xff]
      %v1097 = vld [vmem:[%s3 + $0xa8] sm:$0xff]
      %v1098 = vld [vmem:[%s3 + $0xb0] sm:$0xff]
      %v1099 = vld [vmem:[%s3 + $0xb8] sm:$0xff]
      %v1100 = vld [vmem:[#allocation3] sm:$0xff]
      %v1101 = vld [vmem:[#allocation3 + $0x8] sm:$0xff]
      %v1102 = vld [vmem:[#allocation3 + $0x10] sm:$0xff]
      %v1103 = vld [vmem:[#allocation3 + $0x18] sm:$0xff]
      %v1104 = vld [vmem:[#allocation3 + $0x20] sm:$0xff]
      %v1105 = vld [vmem:[#allocation3 + $0x28] sm:$0xff]
      %v1106 = vld [vmem:[#allocation3 + $0x30] sm:$0xff]
      %v1107 = vld [vmem:[#allocation3 + $0x38] sm:$0xff]
      %v1108 = vld [vmem:[#allocation3 + $0x40] sm:$0xff]
      %v1109 = vld [vmem:[#allocation3 + $0x48] sm:$0xff]
      %v1110 = vld [vmem:[#allocation3 + $0x50] sm:$0xff]
      %v1111 = vld [vmem:[#allocation3 + $0x58] sm:$0xff]
      %v1112 = vld [vmem:[#allocation3 + $0x60] sm:$0xff]
      %v1113 = vld [vmem:[#allocation3 + $0x68] sm:$0xff]
      %v1114 = vld [vmem:[#allocation3 + $0x70] sm:$0xff]
      %v1115 = vld [vmem:[#allocation3 + $0x78] sm:$0xff]
      %v1116 = vld [vmem:[#allocation3 + $0x80] sm:$0xff]
      %v1117 = vld [vmem:[#allocation3 + $0x88] sm:$0xff]
      %v1118 = vld [vmem:[#allocation3 + $0x90] sm:$0xff]
      %v1119 = vld [vmem:[#allocation3 + $0x98] sm:$0xff]
      %v1120 = vld [vmem:[#allocation3 + $0xa0] sm:$0xff]
      %v1121 = vld [vmem:[#allocation3 + $0xa8] sm:$0xff]
      %v1122 = vld [vmem:[#allocation3 + $0xb0] sm:$0xff]
      %v1123 = vld [vmem:[#allocation3 + $0xb8] sm:$0xff]
      %v1124 = vld [vmem:[#allocation3 + $0xc0] sm:$0xff]
      %v1125 = vld [vmem:[#allocation3 + $0xc8] sm:$0xff]
      %v1126 = vld [vmem:[#allocation3 + $0xd0] sm:$0xff]
      %v1127 = vld [vmem:[#allocation3 + $0xd8] sm:$0xff]
      %v1128 = vld [vmem:[#allocation3 + $0xe0] sm:$0xff]
      %v1129 = vld [vmem:[#allocation3 + $0xe8] sm:$0xff]
      %v1130 = vld [vmem:[#allocation3 + $0xf0] sm:$0xff]
      %v1131 = vld [vmem:[#allocation3 + $0xf8] sm:$0xff]
      %v1132 = vld [vmem:[#allocation3 + $0x100] sm:$0xff]
      %v1133 = vld [vmem:[#allocation3 + $0x108] sm:$0xff]
      %v1134 = vld [vmem:[#allocation3 + $0x110] sm:$0xff]
      %v1135 = vld [vmem:[#allocation3 + $0x118] sm:$0xff]
      %v1136 = vld [vmem:[#allocation3 + $0x120] sm:$0xff]
      %v1137 = vld [vmem:[#allocation3 + $0x128] sm:$0xff]
      %v1138 = vld [vmem:[#allocation3 + $0x130] sm:$0xff]
      %v1139 = vld [vmem:[#allocation3 + $0x138] sm:$0xff]
      %v1140 = vld [vmem:[#allocation3 + $0x140] sm:$0xff]
      %v1141 = vld [vmem:[#allocation3 + $0x148] sm:$0xff]
      %v1142 = vld [vmem:[#allocation3 + $0x150] sm:$0xff]
      %v1143 = vld [vmem:[#allocation3 + $0x158] sm:$0xff]
      %v1144 = vld [vmem:[#allocation3 + $0x160] sm:$0xff]
      %v1145 = vld [vmem:[#allocation3 + $0x168] sm:$0xff]
      %v1146 = vld [vmem:[#allocation3 + $0x170] sm:$0xff]
      %v1147 = vld [vmem:[#allocation3 + $0x178] sm:$0xff]
      %v1148 = vld [vmem:[#allocation3 + $0x180] sm:$0xff]
      %v1149 = vld [vmem:[#allocation3 + $0x188] sm:$0xff]
      %v1150 = vld [vmem:[#allocation3 + $0x190] sm:$0xff]
      %v1151 = vld [vmem:[#allocation3 + $0x198] sm:$0xff]
      %v1152 = vld [vmem:[#allocation3 + $0x1a0] sm:$0xff]
      %v1153 = vld [vmem:[#allocation3 + $0x1a8] sm:$0xff]
      %v1154 = vld [vmem:[#allocation3 + $0x1b0] sm:$0xff]
      %v1155 = vld [vmem:[#allocation3 + $0x1b8] sm:$0xff]
      %v1156 = vld [vmem:[#allocation3 + $0x1c0] sm:$0xff]
      %v1157 = vld [vmem:[#allocation3 + $0x1c8] sm:$0xff]
      %v1158 = vld [vmem:[#allocation3 + $0x1d0] sm:$0xff]
      %v1159 = vld [vmem:[#allocation3 + $0x1d8] sm:$0xff]
      %v1160 = vld [vmem:[#allocation3 + $0x1e0] sm:$0xff]
      %v1161 = vld [vmem:[#allocation3 + $0x1e8] sm:$0xff]
      %v1162 = vld [vmem:[#allocation3 + $0x1f0] sm:$0xff]
      %v1163 = vld [vmem:[#allocation3 + $0x1f8] sm:$0xff]
      %v1164 = vld [vmem:[#allocation3 + $0x200] sm:$0xff]
      %v1165 = vld [vmem:[#allocation3 + $0x208] sm:$0xff]
      %v1166 = vld [vmem:[#allocation3 + $0x210] sm:$0xff]
      %v1167 = vld [vmem:[#allocation3 + $0x218] sm:$0xff]
      %v1168 = vld [vmem:[#allocation3 + $0x220] sm:$0xff]
      %v1169 = vld [vmem:[#allocation3 + $0x228] sm:$0xff]
      %v1170 = vld [vmem:[#allocation3 + $0x230] sm:$0xff]
      %v1171 = vld [vmem:[#allocation3 + $0x238] sm:$0xff]
      %vm1172 = vcmask 261120
      %v1174 = vsel %vm1172, %v1078, 0
      %v1177 = vsel %vm1172, %v1081, 0
      %v1180 = vsel %vm1172, %v1084, 0
      %v1183 = vsel %vm1172, %v1087, 0
      %v1186 = vsel %vm1172, %v1090, 0
      %v1189 = vsel %vm1172, %v1093, 0
      %v1192 = vsel %vm1172, %v1096, 0
      %v1195 = vsel %vm1172, %v1099, 0
      %1197 = vmatprep.subr.mxu0 %v1101
      %1198 = vmatpush1.msra.mxu0 %v1100
      %1199 = vmatprep.subr.mxu0 %v1103
      %1200 = vmatpush1.msra.mxu0 %v1102
      %1201 = vmatprep.subr.mxu0 %v1105
      %1202 = vmatpush1.msra.mxu0 %v1104
      %1203 = vmatprep.subr.mxu0 %v1107
      %1204 = vmatpush1.msra.mxu0 %v1106
      %1205 = vmatprep.subr.mxu0 %v1109
      %1206 = vmatpush1.msra.mxu0 %v1108
      %1207 = vmatprep.subr.mxu0 %v1111
      %1208 = vmatpush1.msra.mxu0 %v1110
      %1209 = vmatprep.subr.mxu0 %v1113
      %1210 = vmatpush1.msra.mxu0 %v1112
      %1211 = vmatprep.subr.mxu0 %v1115
      %1212 = vmatpush1.msra.mxu0 %v1114
      %1213 = vmatprep.subr.mxu0 %v1117
      %1214 = vmatpush1.msra.mxu0 %v1116
      %1215 = vmatprep.subr.mxu0 %v1119
      %1216 = vmatpush1.msra.mxu0 %v1118
      %1217 = vmatprep.subr.mxu0 %v1121
      %1218 = vmatpush1.msra.mxu0 %v1120
      %1219 = vmatprep.subr.mxu0 %v1123
      %1220 = vmatpush1.msra.mxu0 %v1122
      %1221 = vmatprep.subr.mxu0 %v1125
      %1222 = vmatpush1.msra.mxu0 %v1124
      %1223 = vmatprep.subr.mxu0 %v1127
      %1224 = vmatpush1.msra.mxu0 %v1126
      %1225 = vmatprep.subr.mxu0 %v1129
      %1226 = vmatpush1.msra.mxu0 %v1128
      %1227 = vmatprep.subr.mxu0 %v1131
      %1228 = vmatpush1.msra.mxu0 %v1130
      %1229 = vmatprep.subr.mxu0 %v1133
      %1230 = vmatpush1.msra.mxu0 %v1132
      %1231 = vmatprep.subr.mxu0 %v1135
      %1232 = vmatpush1.msra.mxu0 %v1134
      %1233 = vmatprep.subr.mxu0 %v1137
      %1234 = vmatpush1.msra.mxu0 %v1136
      %1235 = vmatprep.subr.mxu0 %v1139
      %1236 = vmatpush1.msra.mxu0 %v1138
      %1237 = vmatprep.subr.mxu0 %v1141
      %1238 = vmatpush1.msra.mxu0 %v1140
      %1239 = vmatprep.subr.mxu0 %v1143
      %1240 = vmatpush1.msra.mxu0 %v1142
      %1241 = vmatprep.subr.mxu0 %v1145
      %1242 = vmatpush1.msra.mxu0 %v1144
      %1243 = vmatprep.subr.mxu0 %v1147
      %1244 = vmatpush1.msra.mxu0 %v1146
      %1245 = vmatprep.subr.mxu0 %v1149
      %1246 = vmatpush1.msra.mxu0 %v1148
      %1247 = vmatprep.subr.mxu0 %v1151
      %1248 = vmatpush1.msra.mxu0 %v1150
      %1249 = vmatprep.subr.mxu0 %v1153
      %1250 = vmatpush1.msra.mxu0 %v1152
      %1251 = vmatprep.subr.mxu0 %v1155
      %1252 = vmatpush1.msra.mxu0 %v1154
      %1253 = vmatprep.subr.mxu0 %v1157
      %1254 = vmatpush1.msra.mxu0 %v1156
      %1255 = vmatprep.subr.mxu0 %v1159
      %1256 = vmatpush1.msra.mxu0 %v1158
      %1257 = vmatprep.subr.mxu0 %v1161
      %1258 = vmatpush1.msra.mxu0 %v1160
      %1259 = vmatprep.subr.mxu0 %v1163
      %1260 = vmatpush1.msra.mxu0 %v1162
      %1261 = vmatprep.mubr.f32.mxu0 %v1077
      %1262 = vmatmul.mubr.f32.gmra.mrb[0].mxu0 %v1076
      %v1263 = vpop.f32.mrb[0].mxu0
      %v1264 = vadd.f32 0.0, %v1263
      %v1265 = vpop.f32.mrb[0].mxu0
      %v1266 = vadd.f32 0.0, %v1265
      %1267 = vmatprep.mubr.f32.mxu0 %v1080
      %1268 = vmatmul.mubr.f32.gmra.mrb[0].mxu0 %v1079
      %v1269 = vpop.f32.mrb[0].mxu0
      %v1270 = vadd.f32 0.0, %v1269
      %v1271 = vpop.f32.mrb[0].mxu0
      %v1272 = vadd.f32 0.0, %v1271
      %1273 = vmatprep.mubr.f32.mxu0 %v1083
      %1274 = vmatmul.mubr.f32.gmra.mrb[0].mxu0 %v1082
      %v1275 = vpop.f32.mrb[0].mxu0
      %v1276 = vadd.f32 0.0, %v1275
      %v1277 = vpop.f32.mrb[0].mxu0
      %v1278 = vadd.f32 0.0, %v1277
      %1279 = vmatprep.mubr.f32.mxu0 %v1086
      %1280 = vmatmul.mubr.f32.gmra.mrb[0].mxu0 %v1085
      %v1281 = vpop.f32.mrb[0].mxu0
      %v1282 = vadd.f32 0.0, %v1281
      %v1283 = vpop.f32.mrb[0].mxu0
      %v1284 = vadd.f32 0.0, %v1283
      %1285 = vmatprep.mubr.f32.mxu0 %v1089
      %1286 = vmatmul.mubr.f32.gmra.mrb[0].mxu0 %v1088
      %v1287 = vpop.f32.mrb[0].mxu0
      %v1288 = vadd.f32 0.0, %v1287
      %v1289 = vpop.f32.mrb[0].mxu0
      %v1290 = vadd.f32 0.0, %v1289
      %1291 = vmatprep.mubr.f32.mxu0 %v1092
      %1292 = vmatmul.mubr.f32.gmra.mrb[0].mxu0 %v1091
      %v1293 = vpop.f32.mrb[0].mxu0
      %v1294 = vadd.f32 0.0, %v1293
      %v1295 = vpop.f32.mrb[0].mxu0
      %v1296 = vadd.f32 0.0, %v1295
      %1297 = vmatprep.mubr.f32.mxu0 %v1095
      %1298 = vmatmul.mubr.f32.gmra.mrb[0].mxu0 %v1094
      %v1299 = vpop.f32.mrb[0].mxu0
      %v1300 = vadd.f32 0.0, %v1299
      %v1301 = vpop.f32.mrb[0].mxu0
      %v1302 = vadd.f32 0.0, %v1301
      %1303 = vmatprep.mubr.f32.mxu0 %v1098
      %1304 = vmatmul.mubr.f32.gmra.mrb[0].mxu0 %v1097
      %v1305 = vpop.f32.mrb[0].mxu0
      %v1306 = vadd.f32 0.0, %v1305
      %v1307 = vpop.f32.mrb[0].mxu0
      %v1308 = vadd.f32 0.0, %v1307
      %1309 = vdwg.mxu0
      %1310 = vmatprep.subr.mxu0 %v1165
      %1311 = vmatpush1.msra.mxu0 %v1164
      %1312 = vmatprep.subr.mxu0 %v1167
      %1313 = vmatpush1.msra.mxu0 %v1166
      %1314 = vmatprep.subr.mxu0 %v1169
      %1315 = vmatpush1.msra.mxu0 %v1168
      %1316 = vmatprep.subr.mxu0 %v1171
      %1317 = vmatpush1.msra.mxu0 %v1170
      %1318 = vmatprep.subr.mxu0 0.0
      %1319 = vmatpush1.msra.mxu0 0.0
      %1320 = vmatprep.subr.mxu0 0.0
      %1321 = vmatpush1.msra.mxu0 0.0
      %1322 = vmatprep.subr.mxu0 0.0
      %1323 = vmatpush1.msra.mxu0 0.0
      %1324 = vmatprep.subr.mxu0 0.0
      %1325 = vmatpush1.msra.mxu0 0.0
      %1326 = vmatprep.subr.mxu0 0.0
      %1327 = vmatpush1.msra.mxu0 0.0
      %1328 = vmatprep.subr.mxu0 0.0
      %1329 = vmatpush1.msra.mxu0 0.0
      %1330 = vmatprep.subr.mxu0 0.0
      %1331 = vmatpush1.msra.mxu0 0.0
      %1332 = vmatprep.subr.mxu0 0.0
      %1333 = vmatpush1.msra.mxu0 0.0
      %1334 = vmatprep.subr.mxu0 0.0
      %1335 = vmatpush1.msra.mxu0 0.0
      %1336 = vmatprep.subr.mxu0 0.0
      %1337 = vmatpush1.msra.mxu0 0.0
      %1338 = vmatprep.subr.mxu0 0.0
      %1339 = vmatpush1.msra.mxu0 0.0
      %1340 = vmatprep.subr.mxu0 0.0
      %1341 = vmatpush1.msra.mxu0 0.0
      %1342 = vmatprep.subr.mxu0 0.0
      %1343 = vmatpush1.msra.mxu0 0.0
      %1344 = vmatprep.subr.mxu0 0.0
      %1345 = vmatpush1.msra.mxu0 0.0
      %1346 = vmatprep.subr.mxu0 0.0
      %1347 = vmatpush1.msra.mxu0 0.0
      %1348 = vmatprep.subr.mxu0 0.0
      %1349 = vmatpush1.msra.mxu0 0.0
      %1350 = vmatprep.subr.mxu0 0.0
      %1351 = vmatpush1.msra.mxu0 0.0
      %1352 = vmatprep.subr.mxu0 0.0
      %1353 = vmatpush1.msra.mxu0 0.0
      %1354 = vmatprep.subr.mxu0 0.0
      %1355 = vmatpush1.msra.mxu0 0.0
      %1356 = vmatprep.subr.mxu0 0.0
      %1357 = vmatpush1.msra.mxu0 0.0
      %1358 = vmatprep.subr.mxu0 0.0
      %1359 = vmatpush1.msra.mxu0 0.0
      %1360 = vmatprep.subr.mxu0 0.0
      %1361 = vmatpush1.msra.mxu0 0.0
      %1362 = vmatprep.subr.mxu0 0.0
      %1363 = vmatpush1.msra.mxu0 0.0
      %1364 = vmatprep.subr.mxu0 0.0
      %1365 = vmatpush1.msra.mxu0 0.0
      %1366 = vmatprep.subr.mxu0 0.0
      %1367 = vmatpush1.msra.mxu0 0.0
      %1368 = vmatprep.subr.mxu0 0.0
      %1369 = vmatpush1.msra.mxu0 0.0
      %1370 = vmatprep.subr.mxu0 0.0
      %1371 = vmatpush1.msra.mxu0 0.0
      %1372 = vmatprep.subr.mxu0 0.0
      %1373 = vmatpush1.msra.mxu0 0.0
      %1374 = vmatprep.mubr.f32.mxu0 0.0
      %1375 = vmatmul.mubr.f32.gmra.mrb[0].mxu0 %v1174
      %v1376 = vpop.f32.mrb[0].mxu0
      %v1377 = vadd.f32 %v1264, %v1376
      %v1378 = vpop.f32.mrb[0].mxu0
      %v1379 = vadd.f32 %v1266, %v1378
      %1380 = vmatprep.mubr.f32.mxu0 0.0
      %1381 = vmatmul.mubr.f32.gmra.mrb[0].mxu0 %v1177
      %v1382 = vpop.f32.mrb[0].mxu0
      %v1383 = vadd.f32 %v1270, %v1382
      %v1384 = vpop.f32.mrb[0].mxu0
      %v1385 = vadd.f32 %v1272, %v1384
      %1386 = vmatprep.mubr.f32.mxu0 0.0
      %1387 = vmatmul.mubr.f32.gmra.mrb[0].mxu0 %v1180
      %v1388 = vpop.f32.mrb[0].mxu0
      %v1389 = vadd.f32 %v1276, %v1388
      %v1390 = vpop.f32.mrb[0].mxu0
      %v1391 = vadd.f32 %v1278, %v1390
      %1392 = vmatprep.mubr.f32.mxu0 0.0
      %1393 = vmatmul.mubr.f32.gmra.mrb[0].mxu0 %v1183
      %v1394 = vpop.f32.mrb[0].mxu0
      %v1395 = vadd.f32 %v1282, %v1394
      %v1396 = vpop.f32.mrb[0].mxu0
      %v1397 = vadd.f32 %v1284, %v1396
      %1398 = vmatprep.mubr.f32.mxu0 0.0
      %1399 = vmatmul.mubr.f32.gmra.mrb[0].mxu0 %v1186
      %v1400 = vpop.f32.mrb[0].mxu0
      %v1401 = vadd.f32 %v1288, %v1400
      %v1402 = vpop.f32.mrb[0].mxu0
      %v1403 = vadd.f32 %v1290, %v1402
      %1404 = vmatprep.mubr.f32.mxu0 0.0
      %1405 = vmatmul.mubr.f32.gmra.mrb[0].mxu0 %v1189
      %v1406 = vpop.f32.mrb[0].mxu0
      %v1407 = vadd.f32 %v1294, %v1406
      %v1408 = vpop.f32.mrb[0].mxu0
      %v1409 = vadd.f32 %v1296, %v1408
      %1410 = vmatprep.mubr.f32.mxu0 0.0
      %1411 = vmatmul.mubr.f32.gmra.mrb[0].mxu0 %v1192
      %v1412 = vpop.f32.mrb[0].mxu0
      %v1413 = vadd.f32 %v1300, %v1412
      %v1414 = vpop.f32.mrb[0].mxu0
      %v1415 = vadd.f32 %v1302, %v1414
      %1416 = vmatprep.mubr.f32.mxu0 0.0
      %1417 = vmatmul.mubr.f32.gmra.mrb[0].mxu0 %v1195
      %v1418 = vpop.f32.mrb[0].mxu0
      %v1419 = vadd.f32 %v1306, %v1418
      %v1420 = vpop.f32.mrb[0].mxu0
      %v1421 = vadd.f32 %v1308, %v1420
      %1422 = vdwg.mxu0
      %1423 = vst [vmem:[%s266] sm:$0xff] %v1377
      %1424 = vst [vmem:[%s266 + $0x8] sm:$0xff] %v1379
      %1425 = vst [vmem:[%s266 + $0x10] sm:$0xff] %v1383
      %1426 = vst [vmem:[%s266 + $0x18] sm:$0xff] %v1385
      %1427 = vst [vmem:[%s266 + $0x20] sm:$0xff] %v1389
      %1428 = vst [vmem:[%s266 + $0x28] sm:$0xff] %v1391
      %1429 = vst [vmem:[%s266 + $0x30] sm:$0xff] %v1395
      %1430 = vst [vmem:[%s266 + $0x38] sm:$0xff] %v1397
      %1431 = vst [vmem:[%s266 + $0x40] sm:$0xff] %v1401
      %1432 = vst [vmem:[%s266 + $0x48] sm:$0xff] %v1403
      %1433 = vst [vmem:[%s266 + $0x50] sm:$0xff] %v1407
      %1434 = vst [vmem:[%s266 + $0x58] sm:$0xff] %v1409
      %1435 = vst [vmem:[%s266 + $0x60] sm:$0xff] %v1413
      %1436 = vst [vmem:[%s266 + $0x68] sm:$0xff] %v1415
      %1437 = vst [vmem:[%s266 + $0x70] sm:$0xff] %v1419
      %1438 = vst [vmem:[%s266 + $0x78] sm:$0xff] %v1421
      %v1439 = vadd.f32 %v1377, %v1379
      %1440 = vadd.xlane.f32.xlu0 %v1439
      %v1441 = vpop.xlane.xlu0 %1440
      %v1442 = vadd.f32 %v1383, %v1385
      %1443 = vadd.xlane.f32.xlu0 %v1442
      %v1444 = vpop.xlane.xlu0 %1443
      %v1445 = vadd.f32 %v1389, %v1391
      %1446 = vadd.xlane.f32.xlu0 %v1445
      %v1447 = vpop.xlane.xlu0 %1446
      %v1448 = vadd.f32 %v1395, %v1397
      %1449 = vadd.xlane.f32.xlu0 %v1448
      %v1450 = vpop.xlane.xlu0 %1449
      %v1451 = vadd.f32 %v1401, %v1403
      %1452 = vadd.xlane.f32.xlu0 %v1451
      %v1453 = vpop.xlane.xlu0 %1452
      %v1454 = vadd.f32 %v1407, %v1409
      %1455 = vadd.xlane.f32.xlu0 %v1454
      %v1456 = vpop.xlane.xlu0 %1455
      %v1457 = vadd.f32 %v1413, %v1415
      %1458 = vadd.xlane.f32.xlu0 %v1457
      %v1459 = vpop.xlane.xlu0 %1458
      %v1460 = vadd.f32 %v1419, %v1421
      %1461 = vadd.xlane.f32.xlu0 %v1460
      %v1462 = vpop.xlane.xlu0 %1461
      %1463 = vst.msk [vmem:[%s271] sm:$0xff] %vm711, %v1441
      %1464 = vst.msk [vmem:[%s271 + $0x8] sm:$0xff] %vm711, %v1444
      %1465 = vst.msk [vmem:[%s271 + $0x10] sm:$0xff] %vm711, %v1447
      %1466 = vst.msk [vmem:[%s271 + $0x18] sm:$0xff] %vm711, %v1450
      %1467 = vst.msk [vmem:[%s271 + $0x20] sm:$0xff] %vm711, %v1453
      %1468 = vst.msk [vmem:[%s271 + $0x28] sm:$0xff] %vm711, %v1456
      %1469 = vst.msk [vmem:[%s271 + $0x30] sm:$0xff] %vm711, %v1459
      %1470 = vst.msk [vmem:[%s271 + $0x38] sm:$0xff] %vm711, %v1462
      %v1471 = vmul.f32 %v1377, %v1377
      %v1472 = vmul.f32 %v1379, %v1379
      %v1473 = vmul.f32 %v1383, %v1383
      %v1474 = vmul.f32 %v1385, %v1385
      %v1475 = vmul.f32 %v1389, %v1389
      %v1476 = vmul.f32 %v1391, %v1391
      %v1477 = vmul.f32 %v1395, %v1395
      %v1478 = vmul.f32 %v1397, %v1397
      %v1479 = vmul.f32 %v1401, %v1401
      %v1480 = vmul.f32 %v1403, %v1403
      %v1481 = vmul.f32 %v1407, %v1407
      %v1482 = vmul.f32 %v1409, %v1409
      %v1483 = vmul.f32 %v1413, %v1413
      %v1484 = vmul.f32 %v1415, %v1415
      %v1485 = vmul.f32 %v1419, %v1419
      %v1486 = vmul.f32 %v1421, %v1421
      %v1487 = vadd.f32 %v1471, %v1472
      %1488 = vadd.xlane.f32.xlu0 %v1487
      %v1489 = vpop.xlane.xlu0 %1488
      %v1490 = vadd.f32 %v1473, %v1474
      %1491 = vadd.xlane.f32.xlu0 %v1490
      %v1492 = vpop.xlane.xlu0 %1491
      %v1493 = vadd.f32 %v1475, %v1476
      %1494 = vadd.xlane.f32.xlu0 %v1493
      %v1495 = vpop.xlane.xlu0 %1494
      %v1496 = vadd.f32 %v1477, %v1478
      %1497 = vadd.xlane.f32.xlu0 %v1496
      %v1498 = vpop.xlane.xlu0 %1497
      %v1499 = vadd.f32 %v1479, %v1480
      %1500 = vadd.xlane.f32.xlu0 %v1499
      %v1501 = vpop.xlane.xlu0 %1500
      %v1502 = vadd.f32 %v1481, %v1482
      %1503 = vadd.xlane.f32.xlu0 %v1502
      %v1504 = vpop.xlane.xlu0 %1503
      %v1505 = vadd.f32 %v1483, %v1484
      %1506 = vadd.xlane.f32.xlu0 %v1505
      %v1507 = vpop.xlane.xlu0 %1506
      %v1508 = vadd.f32 %v1485, %v1486
      %1509 = vadd.xlane.f32.xlu0 %v1508
      %v1510 = vpop.xlane.xlu0 %1509
      %1511 = vst.msk [vmem:[%s276] sm:$0xff] %vm711, %v1489
      %1512 = vst.msk [vmem:[%s276 + $0x8] sm:$0xff] %vm711, %v1492
      %1513 = vst.msk [vmem:[%s276 + $0x10] sm:$0xff] %vm711, %v1495
      %1514 = vst.msk [vmem:[%s276 + $0x18] sm:$0xff] %vm711, %v1498
      %1515 = vst.msk [vmem:[%s276 + $0x20] sm:$0xff] %vm711, %v1501
      %1516 = vst.msk [vmem:[%s276 + $0x28] sm:$0xff] %vm711, %v1504
      %1517 = vst.msk [vmem:[%s276 + $0x30] sm:$0xff] %vm711, %v1507
      %1518 = vst.msk [vmem:[%s276 + $0x38] sm:$0xff] %vm711, %v1510
      %p1519 = scmp.lt.s32.totalorder %s18, 1
      %s1520 = scalar_select %p1519, %s18, 1
      %s1521 = smul.addr %s1520, 16
      %s1522 = smul.addr %s1521, 8
      %s1523 = scalar_lea.vmem %s4, %s1522
      %p1524 = scmp.lt.s32.totalorder %s18, 1
      %s1525 = scalar_select %p1524, %s18, 1
      %s1526 = smul.addr %s1525, 8
      %s1527 = smul.addr %s1526, 8
      %s1528 = scalar_lea.vmem %s5, %s1527
      %p1529 = scmp.lt.s32.totalorder %s18, 1
      %s1530 = scalar_select %p1529, %s18, 1
      %s1531 = smul.addr %s1530, 8
      %s1532 = smul.addr %s1531, 8
      %s1533 = scalar_lea.vmem %s6, %s1532
      // Predicated region
      $region37: #{darknet_block.4} parent=35 // pred_check
        %p1534 = pneg %p125
      $region38: #{darknet_block.4} parent=35 // pred_check_branch
        %1536 = sbr.rel (%p1534) target = $region40
      $region39: #{darknet_block.4} parent=35 // pred_region
        _
      $region40: #{darknet_block.4} parent=35 // pred_fallthru
        _
      // Predicated region
      $region41: #{darknet_block.4} parent=35 // pred_check
        %p1537 = pneg %p151
      $region42: #{darknet_block.4} parent=35 // pred_check_branch
        %1539 = sbr.rel (%p1537) target = $region44
      $region43: #{darknet_block.4} parent=35 // pred_region
        _
      $region44: #{darknet_block.4} parent=35 // pred_fallthru
        _
      // Predicated region
      $region45: #{darknet_block.4} parent=35 // pred_check
        %p1540 = pneg %p177
      $region46: #{darknet_block.4} parent=35 // pred_check_branch
        %1542 = sbr.rel (%p1540) target = $region48
      $region47: #{darknet_block.4} parent=35 // pred_region
        _
      $region48: #{darknet_block.4} parent=35 // pred_fallthru
        _
    $region36: #{darknet_block.4} parent=5 // pred_fallthru
      _
    %p1543 = scmp.le.s32.totalorder 2, %s13
    // Predicated region
    $region49: #{darknet_block.4} parent=5 // pred_check
      %p1544 = pneg %p1543
    $region50: #{darknet_block.4} parent=5 // pred_check_branch
      %1546 = sbr.rel (%p1544) target = $region52
    $region51: #{darknet_block.4} parent=5 // pred_region
      %s1547 = ssub.s32 %s13, 2
      // Predicated region
      $region53: #{darknet_block.4} parent=51 // pred_check
        %p1548 = pneg %p131
      $region54: #{darknet_block.4} parent=51 // pred_check_branch
        %1550 = sbr.rel (%p1548) target = $region56
      $region55: #{darknet_block.4} parent=51 // pred_region
        %p1551 = scmp.lt.s32.totalorder %s19, 1
        %s1552 = scalar_select %p1551, %s19, 1
        %s1553 = smul.addr %s1552, 16
        %s1554 = smul.addr %s1553, 8
        %s1555 = scalar_lea.vmem %s4, %s1554
      $region56: #{darknet_block.4} parent=51 // pred_fallthru
        _
      // Predicated region
      $region57: #{darknet_block.4} parent=51 // pred_check
        %p1556 = pneg %p157
      $region58: #{darknet_block.4} parent=51 // pred_check_branch
        %1558 = sbr.rel (%p1556) target = $region60
      $region59: #{darknet_block.4} parent=51 // pred_region
        %p1559 = scmp.lt.s32.totalorder %s19, 1
        %s1560 = scalar_select %p1559, %s19, 1
        %s1561 = smul.addr %s1560, 8
        %s1562 = smul.addr %s1561, 8
        %s1563 = scalar_lea.vmem %s5, %s1562
      $region60: #{darknet_block.4} parent=51 // pred_fallthru
        _
      // Predicated region
      $region61: #{darknet_block.4} parent=51 // pred_check
        %p1564 = pneg %p183
      $region62: #{darknet_block.4} parent=51 // pred_check_branch
        %1566 = sbr.rel (%p1564) target = $region64
      $region63: #{darknet_block.4} parent=51 // pred_region
        %p1567 = scmp.lt.s32.totalorder %s19, 1
        %s1568 = scalar_select %p1567, %s19, 1
        %s1569 = smul.addr %s1568, 8
        %s1570 = smul.addr %s1569, 8
        %s1571 = scalar_lea.vmem %s6, %s1570
      $region64: #{darknet_block.4} parent=51 // pred_fallthru
        _
    $region52: #{darknet_block.4} parent=5 // pred_fallthru
      _
  $region6: #{darknet_block.4} parent=0 // loop_footer
    %s17 = sadd.s32 1, %s13
  $region7: #{darknet_block.4} parent=0 // loop_footer_branch
    %12 = sbr.rel target = $region3
  $region8: #{darknet_block.4} parent=0 // loop_exit
    _

</llo_original>
